<compile_context>
chip_gen: v6e
topology: v6e:2x2x1
jax: 0.10.0
libtpu: 0.0.40
codegen_flags: <defaults>
</compile_context>

<pallas_src>
import functools

import jax
import jax.numpy as jnp
from jax import lax
from jax.experimental import pallas as pl
from jax.experimental.pallas import tpu as pltpu


OUT_PAD = 128  # lane-dense padded output width (real out_dim=1 sliced in wrapper)


# ----------------------------------------------------------------------------
# Pallas kernel: bidirectional LSTM recurrence + 2-layer MLP head, all in VMEM.
# ----------------------------------------------------------------------------
def lstm_bi_fc_kernel(x_ref,                          # (T*Bt, D)          bf16
                      wih_f_ref, whh_f_ref, bf_ref,   # (D,4H)(H,4H)(1,4H)
                      wih_b_ref, whh_b_ref, bb_ref,
                      w1f_ref, w1b_ref, b1_ref,       # (H,512)(H,512)(1,512)
                      w2_ref, b2_ref,                 # (512,OP)(1,OP)
                      out_ref,                        # (T*Bt, OP)         f32
                      gf_ref, gb_ref,                 # scratch (T*Bt,4H)  f32
                      hf_ref, hb_ref,                 # scratch (T*Bt,H)   f32
                      *, seq_len, b_tile):
    T, Bt = seq_len, b_tile
    H = whh_f_ref.shape[0]
    G = 4 * H

    # ---- hoisted input projections: one tall MXU matmul per direction -------
    x2 = x_ref[...]                                              # (T*Bt, D) bf16
    gf_ref[...] = (jnp.dot(x2, wih_f_ref[...],
                           preferred_element_type=jnp.float32) + bf_ref[...])
    gb_ref[...] = (jnp.dot(x2, wih_b_ref[...],
                           preferred_element_type=jnp.float32) + bb_ref[...])

    whh_f = whh_f_ref[...]                                       # (H, 4H) bf16
    whh_b = whh_b_ref[...]

    # PyTorch gate order [i | f | g | o]; g (tanh) occupies lanes [2H, 3H).
    lane = lax.broadcasted_iota(jnp.int32, (Bt, G), 1)
    g_mask = (lane >= 2 * H) & (lane < 3 * H)

    def cell(gates, c):
        # full-vreg EUP activations + single lane-mask select
        act = jnp.where(g_mask, jnp.tanh(gates), jax.nn.sigmoid(gates))
        i = act[:, 0 * H:1 * H]
        f = act[:, 1 * H:2 * H]
        g = act[:, 2 * H:3 * H]
        o = act[:, 3 * H:4 * H]
        c_new = f * c + i * g
        h_new = o * jnp.tanh(c_new)
        return h_new, c_new

    # ---- interleaved fwd/bwd recurrence (two independent carries) -----------
    def body(t, carry):
        hf, cf, hb, cb = carry
        rf = pl.multiple_of(t * Bt, Bt)
        rb = pl.multiple_of((T - 1 - t) * Bt, Bt)
        gates_f = gf_ref[pl.ds(rf, Bt), :] + jnp.dot(
            hf.astype(jnp.bfloat16), whh_f, preferred_element_type=jnp.float32)
        gates_b = gb_ref[pl.ds(rb, Bt), :] + jnp.dot(
            hb.astype(jnp.bfloat16), whh_b, preferred_element_type=jnp.float32)
        hf, cf = cell(gates_f, cf)
        hb, cb = cell(gates_b, cb)
        hf_ref[pl.ds(rf, Bt), :] = hf
        hb_ref[pl.ds(rb, Bt), :] = hb
        return (hf, cf, hb, cb)

    z0 = jnp.zeros((Bt, H), jnp.float32)
    lax.fori_loop(0, T, body, (z0, z0, z0, z0), unroll=True)

    # ---- FC head: batched matmuls over all T*Bt rows, one lane-dense store --
    hf_all = hf_ref[...].astype(jnp.bfloat16)
    hb_all = hb_ref[...].astype(jnp.bfloat16)
    z1 = (jnp.dot(hf_all, w1f_ref[...], preferred_element_type=jnp.float32)
          + jnp.dot(hb_all, w1b_ref[...], preferred_element_type=jnp.float32)
          + b1_ref[...])
    z1 = jnp.maximum(z1, 0.0)
    z2 = (jnp.dot(z1.astype(jnp.bfloat16), w2_ref[...],
                  preferred_element_type=jnp.float32) + b2_ref[...])
    z2 = jnp.maximum(z2, 0.0)   # TODO(synk): assumed ReLU on final LinBnReLu
    out_ref[...] = z2


# ----------------------------------------------------------------------------
# Wrapper (glue): embedding gather, layout conversion, pallas_call.
# ----------------------------------------------------------------------------
@jax.jit
def lstm_model_forward(x_cat, x_num, params):
    # Embedding lookup + concat (glue, plain JAX).
    embs = [jnp.take(params["emb"][i], x_cat[:, :, i], axis=0)
            for i in range(len(params["emb"]))]
    x = jnp.concatenate([x_num] + embs, axis=-1).astype(jnp.float32)   # (B,T,D)
    B, T, D = x.shape
    H = params["whh_f"].shape[1]
    O = params["w2"].shape[0]                                          # = 1
    OP = OUT_PAD

    # Batch padded to sublane multiple; (B,T,D) -> (nb, T*B_TILE, D) time-major slabs.
    B_TILE = 8
    Bp = ((B + B_TILE - 1) // B_TILE) * B_TILE
    nb = Bp // B_TILE
    TB = T * B_TILE
    xp = jnp.pad(x, ((0, Bp - B), (0, 0), (0, 0)))
    x_r = (xp.transpose(1, 0, 2)                        # (T, Bp, D)
             .reshape(T, nb, B_TILE, D)
             .transpose(1, 0, 2, 3)                     # (nb, T, B_TILE, D)
             .reshape(nb, TB, D)
             .astype(jnp.bfloat16))

    # Weights into kernel-friendly layouts (glue); matmul operands in bf16.
    f32, bf16 = jnp.float32, jnp.bfloat16
    wih_f = params["wih_f"].T.astype(bf16)              # (D, 4H)
    whh_f = params["whh_f"].T.astype(bf16)              # (H, 4H)
    bf = (params["bih_f"] + params["bhh_f"])[None, :].astype(f32)
    wih_b = params["wih_b"].T.astype(bf16)
    whh_b = params["whh_b"].T.astype(bf16)
    bb = (params["bih_b"] + params["bhh_b"])[None, :].astype(f32)
    w1t = params["w1"].T                                # (2H, 512)
    w1f = w1t[:H].astype(bf16)
    w1b = w1t[H:].astype(bf16)
    b1 = params["b1"][None, :].astype(f32)
    w2p = jnp.zeros((512, OP), f32).at[:, :O].set(params["w2"].T).astype(bf16)
    b2p = jnp.zeros((1, OP), f32).at[:, :O].set(params["b2"][None, :])

    full = lambda r, c: pl.BlockSpec((r, c), lambda b: (0, 0))
    kernel = functools.partial(lstm_bi_fc_kernel, seq_len=T, b_tile=B_TILE)

    out = pl.pallas_call(
        kernel,
        out_shape=jax.ShapeDtypeStruct((nb, TB, OP), jnp.float32),
        grid_spec=pltpu.PrefetchScalarGridSpec(
            num_scalar_prefetch=0,
            grid=(nb,),
            in_specs=[
                pl.BlockSpec((None, TB, D), lambda b: (b, 0, 0)),
                full(D, 4 * H), full(H, 4 * H), full(1, 4 * H),
                full(D, 4 * H), full(H, 4 * H), full(1, 4 * H),
                full(H, 512), full(H, 512), full(1, 512),
                full(512, OP), full(1, OP),
            ],
            out_specs=pl.BlockSpec((None, TB, OP), lambda b: (b, 0, 0)),
            scratch_shapes=[pltpu.VMEM((TB, 4 * H), jnp.float32),
                            pltpu.VMEM((TB, 4 * H), jnp.float32),
                            pltpu.VMEM((TB, H), jnp.float32),
                            pltpu.VMEM((TB, H), jnp.float32)]),
        compiler_params=pltpu.CompilerParams(
            dimension_semantics=("parallel",),
            vmem_limit_bytes=64 * 1024 * 1024),
    )(x_r, wih_f, whh_f, bf, wih_b, whh_b, bb, w1f, w1b, b1, w2p, b2p)

    # Undo layout, drop batch padding and lane padding, squeeze out_dim=1.
    out = (out.reshape(nb, T, B_TILE, OP)
              .transpose(1, 0, 2, 3)
              .reshape(T, Bp, OP)
              .transpose(1, 0, 2))[:B, :, :O]           # (B, T, 1)
    return out[..., 0]                                  # (B, T), matches squeeze(-1)


# ----------------------------------------------------------------------------
# Pure-JAX reference (for correctness check only).
# ----------------------------------------------------------------------------
def reference_forward(x_cat, x_num, params):
    hp = jax.lax.Precision.HIGHEST
    embs = [jnp.take(params["emb"][i], x_cat[:, :, i], axis=0)
            for i in range(len(params["emb"]))]
    x = jnp.concatenate([x_num] + embs, axis=-1)
    x_tm = jnp.transpose(x, (1, 0, 2)).astype(jnp.float32)   # (T, B, D)
    T, B, D = x_tm.shape
    H = params["whh_f"].shape[1]

    def run_dir(wih, whh, bih, bhh, reverse):
        b = bih + bhh

        def step(carry, xt):
            h, c = carry
            gates = (jnp.dot(xt, wih.T, precision=hp)
                     + jnp.dot(h, whh.T, precision=hp) + b)
            i = jax.nn.sigmoid(gates[:, 0 * H:1 * H])
            f = jax.nn.sigmoid(gates[:, 1 * H:2 * H])
            g = jnp.tanh(gates[:, 2 * H:3 * H])
            o = jax.nn.sigmoid(gates[:, 3 * H:4 * H])
            c = f * c + i * g
            h = o * jnp.tanh(c)
            return (h, c), h

        h0 = jnp.zeros((B, H), jnp.float32)
        xs = x_tm[::-1] if reverse else x_tm
        _, hs = lax.scan(step, (h0, h0), xs)
        return hs[::-1] if reverse else hs

    hf = run_dir(params["wih_f"], params["whh_f"], params["bih_f"], params["bhh_f"], False)
    hb = run_dir(params["wih_b"], params["whh_b"], params["bih_b"], params["bhh_b"], True)
    hcat = jnp.concatenate([hf, hb], axis=-1)               # (T, B, 2H)
    z1 = jnp.maximum(jnp.dot(hcat, params["w1"].T, precision=hp) + params["b1"], 0.0)
    z2 = jnp.maximum(jnp.dot(z1, params["w2"].T, precision=hp) + params["b2"], 0.0)
    return jnp.transpose(z2, (1, 0, 2))[..., 0]             # (B, T)


# ----------------------------------------------------------------------------
# Deterministic parameter construction (shapes follow the PyTorch module).
# ----------------------------------------------------------------------------
def make_params(key, n_cat, n_vocab, emb_dim, n_num, hidden, out_dim):
    D = n_num + n_cat * emb_dim
    ks = jax.random.split(key, 32)
    ki = iter(range(32))

    def u(k, shape, scale):
        return jax.random.uniform(k, shape, jnp.float32, -scale, scale)

    s_lstm = 1.0 / jnp.sqrt(hidden)
    params = {
        "emb": [jax.random.normal(ks[next(ki)], (n_vocab, emb_dim), jnp.float32)
                for _ in range(n_cat)],
        # forward direction (PyTorch layout: (4H, D), (4H, H), (4H,))
        "wih_f": u(ks[next(ki)], (4 * hidden, D), s_lstm),
        "whh_f": u(ks[next(ki)], (4 * hidden, hidden), s_lstm),
        "bih_f": u(ks[next(ki)], (4 * hidden,), s_lstm),
        "bhh_f": u(ks[next(ki)], (4 * hidden,), s_lstm),
        # reverse direction
        "wih_b": u(ks[next(ki)], (4 * hidden, D), s_lstm),
        "whh_b": u(ks[next(ki)], (4 * hidden, hidden), s_lstm),
        "bih_b": u(ks[next(ki)], (4 * hidden,), s_lstm),
        "bhh_b": u(ks[next(ki)], (4 * hidden,), s_lstm),
        # fc head: LinBnReLu(2H, 512) then LinBnReLu(512, out_dim=1)
        "w1": u(ks[next(ki)], (512, 2 * hidden), 1.0 / jnp.sqrt(2 * hidden)),
        "b1": u(ks[next(ki)], (512,), 1.0 / jnp.sqrt(2 * hidden)),
        "w2": u(ks[next(ki)], (out_dim, 512), 1.0 / jnp.sqrt(512)),
        "b2": u(ks[next(ki)], (out_dim,), 1.0 / jnp.sqrt(512)),
    }
    return params


if __name__ == "__main__":
    # Small shapes consistent with the module's forward.
    B, T = 2, 8          # batch, sequence length
    N_CAT, VOCAB, EMB = 2, 16, 8
    N_NUM = 8            # numeric features  -> D = 8 + 2*8 = 24
    HIDDEN = 32          # LSTM hidden size  -> fc in_dim = 64
    OUT_DIM = 1          # fc head ends in LinBnReLu(512, 1); forward squeezes it

    key = jax.random.PRNGKey(0)
    k_cat, k_num, k_par = jax.random.split(key, 3)

    x_cat = jax.random.randint(k_cat, (B, T, N_CAT), 0, VOCAB, dtype=jnp.int32)
    x_num = jax.random.normal(k_num, (B, T, N_NUM), jnp.float32)
    params = make_params(k_par, N_CAT, VOCAB, EMB, N_NUM, HIDDEN, OUT_DIM)

    out = lstm_model_forward(x_cat, x_num, params)
    out = jax.block_until_ready(out)
    assert out.shape == (B, T), out.shape

    ref = jax.block_until_ready(reference_forward(x_cat, x_num, params))
    err = jnp.max(jnp.abs(out - ref))
    # bf16 MXU operands (f32 accumulation) -> relaxed tolerance vs f32 HIGHEST reference.
    assert jnp.allclose(out, ref, atol=2e-2, rtol=2e-2), f"max abs diff {err}"

    print("KERNEL_OK")
</pallas_src>

<mosaic_0001>
module attributes {stable_mosaic.version = 11 : i64} {
  func.func @lstm_bi_fc_kernel(%arg0: i32, %arg1: memref<1x64x24xbf16, #tpu.memory_space<vmem>>, %arg2: memref<24x128xbf16, #tpu.memory_space<vmem>>, %arg3: memref<32x128xbf16, #tpu.memory_space<vmem>>, %arg4: memref<1x128xf32, #tpu.memory_space<vmem>>, %arg5: memref<24x128xbf16, #tpu.memory_space<vmem>>, %arg6: memref<32x128xbf16, #tpu.memory_space<vmem>>, %arg7: memref<1x128xf32, #tpu.memory_space<vmem>>, %arg8: memref<32x512xbf16, #tpu.memory_space<vmem>>, %arg9: memref<32x512xbf16, #tpu.memory_space<vmem>>, %arg10: memref<1x512xf32, #tpu.memory_space<vmem>>, %arg11: memref<512x128xbf16, #tpu.memory_space<vmem>>, %arg12: memref<1x128xf32, #tpu.memory_space<vmem>>, %arg13: memref<1x64x128xf32, #tpu.memory_space<vmem>>, %arg14: memref<64x128xf32, #tpu.memory_space<vmem>>, %arg15: memref<64x128xf32, #tpu.memory_space<vmem>>, %arg16: memref<64x32xf32, #tpu.memory_space<vmem>>, %arg17: memref<64x32xf32, #tpu.memory_space<vmem>>) attributes {dimension_semantics = [#tpu.dimension_semantics<parallel>], iteration_bounds = array<i64: 1>, scalar_prefetch = 0 : i64, scratch_operands = 4 : i64, tpu.core_type = #tpu.core_type<tc>, window_params = [{transform_indices = @transform_0, window_bounds = array<i64: 1, 64, 24>}, {pipeline_mode = #tpu.pipeline_mode<synchronous>, transform_indices = @transform_1, window_bounds = array<i64: 24, 128>}, {pipeline_mode = #tpu.pipeline_mode<synchronous>, transform_indices = @transform_2, window_bounds = array<i64: 32, 128>}, {pipeline_mode = #tpu.pipeline_mode<synchronous>, transform_indices = @transform_3, window_bounds = array<i64: 1, 128>}, {pipeline_mode = #tpu.pipeline_mode<synchronous>, transform_indices = @transform_4, window_bounds = array<i64: 24, 128>}, {pipeline_mode = #tpu.pipeline_mode<synchronous>, transform_indices = @transform_5, window_bounds = array<i64: 32, 128>}, {pipeline_mode = #tpu.pipeline_mode<synchronous>, transform_indices = @transform_6, window_bounds = array<i64: 1, 128>}, {pipeline_mode = #tpu.pipeline_mode<synchronous>, transform_indices = @transform_7, window_bounds = array<i64: 32, 512>}, {pipeline_mode = #tpu.pipeline_mode<synchronous>, transform_indices = @transform_8, window_bounds = array<i64: 32, 512>}, {pipeline_mode = #tpu.pipeline_mode<synchronous>, transform_indices = @transform_9, window_bounds = array<i64: 1, 512>}, {pipeline_mode = #tpu.pipeline_mode<synchronous>, transform_indices = @transform_10, window_bounds = array<i64: 512, 128>}, {pipeline_mode = #tpu.pipeline_mode<synchronous>, transform_indices = @transform_11, window_bounds = array<i64: 1, 128>}, {transform_indices = @transform_12, window_bounds = array<i64: 1, 64, 128>}]} {
    %c0 = arith.constant 0 : index
    %c0_0 = arith.constant 0 : index
    %c0_1 = arith.constant 0 : index
    %0 = vector.load %arg1[%c0, %c0_0, %c0_1] : memref<1x64x24xbf16, #tpu.memory_space<vmem>>, vector<1x64x24xbf16>
    %1 = vector.shape_cast %0 : vector<1x64x24xbf16> to vector<64x24xbf16>
    %c0_2 = arith.constant 0 : index
    %c0_3 = arith.constant 0 : index
    %2 = vector.load %arg2[%c0_2, %c0_3] : memref<24x128xbf16, #tpu.memory_space<vmem>>, vector<24x128xbf16>
    %cst = arith.constant dense<0.000000e+00> : vector<64x128xf32>
    %3 = tpu.matmul %1, %2, %cst {dimension_numbers = #tpu.dot_dimension_numbers<[1], [0], [0], [1], [0, 0, 1, 1], [], []>} : vector<64x24xbf16>, vector<24x128xbf16>, vector<64x128xf32> -> vector<64x128xf32>
    %c0_4 = arith.constant 0 : index
    %c0_5 = arith.constant 0 : index
    %4 = vector.load %arg4[%c0_4, %c0_5] : memref<1x128xf32, #tpu.memory_space<vmem>>, vector<1x128xf32>
    %5 = vector.broadcast %4 : vector<1x128xf32> to vector<64x128xf32>
    %6 = arith.addf %3, %5 : vector<64x128xf32>
    %c0_6 = arith.constant 0 : index
    %c0_7 = arith.constant 0 : index
    %7 = vector.load %arg14[%c0_6, %c0_7] : memref<64x128xf32, #tpu.memory_space<vmem>>, vector<64x128xf32>
    tpu.vector_store %arg14[%c0_6, %c0_7], %6 {strides = array<i32>} : memref<64x128xf32, #tpu.memory_space<vmem>>, vector<64x128xf32>,
    %c0_8 = arith.constant 0 : index
    %c0_9 = arith.constant 0 : index
    %8 = vector.load %arg5[%c0_8, %c0_9] : memref<24x128xbf16, #tpu.memory_space<vmem>>, vector<24x128xbf16>
    %cst_10 = arith.constant dense<0.000000e+00> : vector<64x128xf32>
    %9 = tpu.matmul %1, %8, %cst_10 {dimension_numbers = #tpu.dot_dimension_numbers<[1], [0], [0], [1], [0, 0, 1, 1], [], []>} : vector<64x24xbf16>, vector<24x128xbf16>, vector<64x128xf32> -> vector<64x128xf32>
    %c0_11 = arith.constant 0 : index
    %c0_12 = arith.constant 0 : index
    %10 = vector.load %arg7[%c0_11, %c0_12] : memref<1x128xf32, #tpu.memory_space<vmem>>, vector<1x128xf32>
    %11 = vector.broadcast %10 : vector<1x128xf32> to vector<64x128xf32>
    %12 = arith.addf %9, %11 : vector<64x128xf32>
    %c0_13 = arith.constant 0 : index
    %c0_14 = arith.constant 0 : index
    %13 = vector.load %arg15[%c0_13, %c0_14] : memref<64x128xf32, #tpu.memory_space<vmem>>, vector<64x128xf32>
    tpu.vector_store %arg15[%c0_13, %c0_14], %12 {strides = array<i32>} : memref<64x128xf32, #tpu.memory_space<vmem>>, vector<64x128xf32>,
    %c0_15 = arith.constant 0 : index
    %c0_16 = arith.constant 0 : index
    %14 = vector.load %arg3[%c0_15, %c0_16] : memref<32x128xbf16, #tpu.memory_space<vmem>>, vector<32x128xbf16>
    %c0_17 = arith.constant 0 : index
    %c0_18 = arith.constant 0 : index
    %15 = vector.load %arg6[%c0_17, %c0_18] : memref<32x128xbf16, #tpu.memory_space<vmem>>, vector<32x128xbf16>
    %16 = tpu.iota {dimensions = array<i32: 1>} : vector<8x128xi32>
    %c64_i32 = arith.constant 64 : i32
    %17 = vector.broadcast %c64_i32 : i32 to vector<8x128xi32>
    %18 = arith.cmpi sge, %16, %17 : vector<8x128xi32>
    %c96_i32 = arith.constant 96 : i32
    %19 = vector.broadcast %c96_i32 : i32 to vector<8x128xi32>
    %20 = arith.cmpi slt, %16, %19 : vector<8x128xi32>
    %21 = arith.andi %18, %20 : vector<8x128xi1>
    %cst_19 = arith.constant 0.000000e+00 : f32
    %22 = vector.broadcast %cst_19 : f32 to vector<8x32xf32>
    %c0_i32 = arith.constant 0 : i32
    %c8_i32 = arith.constant 8 : i32
    %23 = arith.muli %c0_i32, %c8_i32 : i32
    %24 = tpu.assume_multiple %23, 8 : i32
    %c7_i32 = arith.constant 7 : i32
    %25 = arith.subi %c7_i32, %c0_i32 : i32
    %c8_i32_20 = arith.constant 8 : i32
    %26 = arith.muli %25, %c8_i32_20 : i32
    %27 = tpu.assume_multiple %26, 8 : i32
    %28 = arith.index_cast %24 : i32 to index
    %c0_21 = arith.constant 0 : index
    %29 = vector.load %arg14[%28, %c0_21] : memref<64x128xf32, #tpu.memory_space<vmem>>, vector<8x128xf32>
    %30 = arith.truncf %22 : vector<8x32xf32> to vector<8x32xbf16>
    %cst_22 = arith.constant dense<0.000000e+00> : vector<8x128xf32>
    %31 = tpu.matmul %30, %14, %cst_22 {dimension_numbers = #tpu.dot_dimension_numbers<[1], [0], [0], [1], [0, 0, 1, 1], [], []>} : vector<8x32xbf16>, vector<32x128xbf16>, vector<8x128xf32> -> vector<8x128xf32>
    %32 = arith.addf %29, %31 : vector<8x128xf32>
    %33 = arith.index_cast %27 : i32 to index
    %c0_23 = arith.constant 0 : index
    %34 = vector.load %arg15[%33, %c0_23] : memref<64x128xf32, #tpu.memory_space<vmem>>, vector<8x128xf32>
    %35 = arith.truncf %22 : vector<8x32xf32> to vector<8x32xbf16>
    %cst_24 = arith.constant dense<0.000000e+00> : vector<8x128xf32>
    %36 = tpu.matmul %35, %15, %cst_24 {dimension_numbers = #tpu.dot_dimension_numbers<[1], [0], [0], [1], [0, 0, 1, 1], [], []>} : vector<8x32xbf16>, vector<32x128xbf16>, vector<8x128xf32> -> vector<8x128xf32>
    %37 = arith.addf %34, %36 : vector<8x128xf32>
    %38 = math.tanh %32 : vector<8x128xf32>
    %39 = arith.negf %32 : vector<8x128xf32>
    %40 = math.exp %39 : vector<8x128xf32>
    %cst_25 = arith.constant 1.000000e+00 : f32
    %41 = vector.broadcast %cst_25 : f32 to vector<8x128xf32>
    %42 = arith.addf %41, %40 : vector<8x128xf32>
    %43 = arith.divf %41, %42 : vector<8x128xf32>
    %44 = arith.select %21, %38, %43 : vector<8x128xi1>, vector<8x128xf32>
    %45 = vector.extract_strided_slice %44 {offsets = [0, 0], sizes = [8, 32], strides = [1, 1]} : vector<8x128xf32> to vector<8x32xf32>
    %46 = vector.extract_strided_slice %44 {offsets = [0, 32], sizes = [8, 32], strides = [1, 1]} : vector<8x128xf32> to vector<8x32xf32>
    %47 = vector.extract_strided_slice %44 {offsets = [0, 64], sizes = [8, 32], strides = [1, 1]} : vector<8x128xf32> to vector<8x32xf32>
    %48 = vector.extract_strided_slice %44 {offsets = [0, 96], sizes = [8, 32], strides = [1, 1]} : vector<8x128xf32> to vector<8x32xf32>
    %49 = arith.mulf %46, %22 : vector<8x32xf32>
    %50 = arith.mulf %45, %47 : vector<8x32xf32>
    %51 = arith.addf %49, %50 : vector<8x32xf32>
    %52 = math.tanh %51 : vector<8x32xf32>
    %53 = arith.mulf %48, %52 : vector<8x32xf32>
    %54 = math.tanh %37 : vector<8x128xf32>
    %55 = arith.negf %37 : vector<8x128xf32>
    %56 = math.exp %55 : vector<8x128xf32>
    %cst_26 = arith.constant 1.000000e+00 : f32
    %57 = vector.broadcast %cst_26 : f32 to vector<8x128xf32>
    %58 = arith.addf %57, %56 : vector<8x128xf32>
    %59 = arith.divf %57, %58 : vector<8x128xf32>
    %60 = arith.select %21, %54, %59 : vector<8x128xi1>, vector<8x128xf32>
    %61 = vector.extract_strided_slice %60 {offsets = [0, 0], sizes = [8, 32], strides = [1, 1]} : vector<8x128xf32> to vector<8x32xf32>
    %62 = vector.extract_strided_slice %60 {offsets = [0, 32], sizes = [8, 32], strides = [1, 1]} : vector<8x128xf32> to vector<8x32xf32>
    %63 = vector.extract_strided_slice %60 {offsets = [0, 64], sizes = [8, 32], strides = [1, 1]} : vector<8x128xf32> to vector<8x32xf32>
    %64 = vector.extract_strided_slice %60 {offsets = [0, 96], sizes = [8, 32], strides = [1, 1]} : vector<8x128xf32> to vector<8x32xf32>
    %65 = arith.mulf %62, %22 : vector<8x32xf32>
    %66 = arith.mulf %61, %63 : vector<8x32xf32>
    %67 = arith.addf %65, %66 : vector<8x32xf32>
    %68 = math.tanh %67 : vector<8x32xf32>
    %69 = arith.mulf %64, %68 : vector<8x32xf32>
    %70 = arith.index_cast %24 : i32 to index
    %c0_27 = arith.constant 0 : index
    %71 = vector.load %arg16[%70, %c0_27] : memref<64x32xf32, #tpu.memory_space<vmem>>, vector<8x32xf32>
    tpu.vector_store %arg16[%70, %c0_27], %53 {strides = array<i32>} : memref<64x32xf32, #tpu.memory_space<vmem>>, vector<8x32xf32>,
    %72 = arith.index_cast %27 : i32 to index
    %c0_28 = arith.constant 0 : index
    %73 = vector.load %arg17[%72, %c0_28] : memref<64x32xf32, #tpu.memory_space<vmem>>, vector<8x32xf32>
    tpu.vector_store %arg17[%72, %c0_28], %69 {strides = array<i32>} : memref<64x32xf32, #tpu.memory_space<vmem>>, vector<8x32xf32>,
    %c1_i32 = arith.constant 1 : i32
    %c8_i32_29 = arith.constant 8 : i32
    %74 = arith.muli %c1_i32, %c8_i32_29 : i32
    %75 = tpu.assume_multiple %74, 8 : i32
    %c7_i32_30 = arith.constant 7 : i32
    %76 = arith.subi %c7_i32_30, %c1_i32 : i32
    %c8_i32_31 = arith.constant 8 : i32
    %77 = arith.muli %76, %c8_i32_31 : i32
    %78 = tpu.assume_multiple %77, 8 : i32
    %79 = arith.index_cast %75 : i32 to index
    %c0_32 = arith.constant 0 : index
    %80 = vector.load %arg14[%79, %c0_32] : memref<64x128xf32, #tpu.memory_space<vmem>>, vector<8x128xf32>
    %81 = arith.truncf %53 : vector<8x32xf32> to vector<8x32xbf16>
    %cst_33 = arith.constant dense<0.000000e+00> : vector<8x128xf32>
    %82 = tpu.matmul %81, %14, %cst_33 {dimension_numbers = #tpu.dot_dimension_numbers<[1], [0], [0], [1], [0, 0, 1, 1], [], []>} : vector<8x32xbf16>, vector<32x128xbf16>, vector<8x128xf32> -> vector<8x128xf32>
    %83 = arith.addf %80, %82 : vector<8x128xf32>
    %84 = arith.index_cast %78 : i32 to index
    %c0_34 = arith.constant 0 : index
    %85 = vector.load %arg15[%84, %c0_34] : memref<64x128xf32, #tpu.memory_space<vmem>>, vector<8x128xf32>
    %86 = arith.truncf %69 : vector<8x32xf32> to vector<8x32xbf16>
    %cst_35 = arith.constant dense<0.000000e+00> : vector<8x128xf32>
    %87 = tpu.matmul %86, %15, %cst_35 {dimension_numbers = #tpu.dot_dimension_numbers<[1], [0], [0], [1], [0, 0, 1, 1], [], []>} : vector<8x32xbf16>, vector<32x128xbf16>, vector<8x128xf32> -> vector<8x128xf32>
    %88 = arith.addf %85, %87 : vector<8x128xf32>
    %89 = math.tanh %83 : vector<8x128xf32>
    %90 = arith.negf %83 : vector<8x128xf32>
    %91 = math.exp %90 : vector<8x128xf32>
    %cst_36 = arith.constant 1.000000e+00 : f32
    %92 = vector.broadcast %cst_36 : f32 to vector<8x128xf32>
    %93 = arith.addf %92, %91 : vector<8x128xf32>
    %94 = arith.divf %92, %93 : vector<8x128xf32>
    %95 = arith.select %21, %89, %94 : vector<8x128xi1>, vector<8x128xf32>
    %96 = vector.extract_strided_slice %95 {offsets = [0, 0], sizes = [8, 32], strides = [1, 1]} : vector<8x128xf32> to vector<8x32xf32>
    %97 = vector.extract_strided_slice %95 {offsets = [0, 32], sizes = [8, 32], strides = [1, 1]} : vector<8x128xf32> to vector<8x32xf32>
    %98 = vector.extract_strided_slice %95 {offsets = [0, 64], sizes = [8, 32], strides = [1, 1]} : vector<8x128xf32> to vector<8x32xf32>
    %99 = vector.extract_strided_slice %95 {offsets = [0, 96], sizes = [8, 32], strides = [1, 1]} : vector<8x128xf32> to vector<8x32xf32>
    %100 = arith.mulf %97, %51 : vector<8x32xf32>
    %101 = arith.mulf %96, %98 : vector<8x32xf32>
    %102 = arith.addf %100, %101 : vector<8x32xf32>
    %103 = math.tanh %102 : vector<8x32xf32>
    %104 = arith.mulf %99, %103 : vector<8x32xf32>
    %105 = math.tanh %88 : vector<8x128xf32>
    %106 = arith.negf %88 : vector<8x128xf32>
    %107 = math.exp %106 : vector<8x128xf32>
    %cst_37 = arith.constant 1.000000e+00 : f32
    %108 = vector.broadcast %cst_37 : f32 to vector<8x128xf32>
    %109 = arith.addf %108, %107 : vector<8x128xf32>
    %110 = arith.divf %108, %109 : vector<8x128xf32>
    %111 = arith.select %21, %105, %110 : vector<8x128xi1>, vector<8x128xf32>
    %112 = vector.extract_strided_slice %111 {offsets = [0, 0], sizes = [8, 32], strides = [1, 1]} : vector<8x128xf32> to vector<8x32xf32>
    %113 = vector.extract_strided_slice %111 {offsets = [0, 32], sizes = [8, 32], strides = [1, 1]} : vector<8x128xf32> to vector<8x32xf32>
    %114 = vector.extract_strided_slice %111 {offsets = [0, 64], sizes = [8, 32], strides = [1, 1]} : vector<8x128xf32> to vector<8x32xf32>
    %115 = vector.extract_strided_slice %111 {offsets = [0, 96], sizes = [8, 32], strides = [1, 1]} : vector<8x128xf32> to vector<8x32xf32>
    %116 = arith.mulf %113, %67 : vector<8x32xf32>
    %117 = arith.mulf %112, %114 : vector<8x32xf32>
    %118 = arith.addf %116, %117 : vector<8x32xf32>
    %119 = math.tanh %118 : vector<8x32xf32>
    %120 = arith.mulf %115, %119 : vector<8x32xf32>
    %121 = arith.index_cast %75 : i32 to index
    %c0_38 = arith.constant 0 : index
    %122 = vector.load %arg16[%121, %c0_38] : memref<64x32xf32, #tpu.memory_space<vmem>>, vector<8x32xf32>
    tpu.vector_store %arg16[%121, %c0_38], %104 {strides = array<i32>} : memref<64x32xf32, #tpu.memory_space<vmem>>, vector<8x32xf32>,
    %123 = arith.index_cast %78 : i32 to index
    %c0_39 = arith.constant 0 : index
    %124 = vector.load %arg17[%123, %c0_39] : memref<64x32xf32, #tpu.memory_space<vmem>>, vector<8x32xf32>
    tpu.vector_store %arg17[%123, %c0_39], %120 {strides = array<i32>} : memref<64x32xf32, #tpu.memory_space<vmem>>, vector<8x32xf32>,
    %c2_i32 = arith.constant 2 : i32
    %c8_i32_40 = arith.constant 8 : i32
    %125 = arith.muli %c2_i32, %c8_i32_40 : i32
    %126 = tpu.assume_multiple %125, 8 : i32
    %c7_i32_41 = arith.constant 7 : i32
    %127 = arith.subi %c7_i32_41, %c2_i32 : i32
    %c8_i32_42 = arith.constant 8 : i32
    %128 = arith.muli %127, %c8_i32_42 : i32
    %129 = tpu.assume_multiple %128, 8 : i32
    %130 = arith.index_cast %126 : i32 to index
    %c0_43 = arith.constant 0 : index
    %131 = vector.load %arg14[%130, %c0_43] : memref<64x128xf32, #tpu.memory_space<vmem>>, vector<8x128xf32>
    %132 = arith.truncf %104 : vector<8x32xf32> to vector<8x32xbf16>
    %cst_44 = arith.constant dense<0.000000e+00> : vector<8x128xf32>
    %133 = tpu.matmul %132, %14, %cst_44 {dimension_numbers = #tpu.dot_dimension_numbers<[1], [0], [0], [1], [0, 0, 1, 1], [], []>} : vector<8x32xbf16>, vector<32x128xbf16>, vector<8x128xf32> -> vector<8x128xf32>
    %134 = arith.addf %131, %133 : vector<8x128xf32>
    %135 = arith.index_cast %129 : i32 to index
    %c0_45 = arith.constant 0 : index
    %136 = vector.load %arg15[%135, %c0_45] : memref<64x128xf32, #tpu.memory_space<vmem>>, vector<8x128xf32>
    %137 = arith.truncf %120 : vector<8x32xf32> to vector<8x32xbf16>
    %cst_46 = arith.constant dense<0.000000e+00> : vector<8x128xf32>
    %138 = tpu.matmul %137, %15, %cst_46 {dimension_numbers = #tpu.dot_dimension_numbers<[1], [0], [0], [1], [0, 0, 1, 1], [], []>} : vector<8x32xbf16>, vector<32x128xbf16>, vector<8x128xf32> -> vector<8x128xf32>
    %139 = arith.addf %136, %138 : vector<8x128xf32>
    %140 = math.tanh %134 : vector<8x128xf32>
    %141 = arith.negf %134 : vector<8x128xf32>
    %142 = math.exp %141 : vector<8x128xf32>
    %cst_47 = arith.constant 1.000000e+00 : f32
    %143 = vector.broadcast %cst_47 : f32 to vector<8x128xf32>
    %144 = arith.addf %143, %142 : vector<8x128xf32>
    %145 = arith.divf %143, %144 : vector<8x128xf32>
    %146 = arith.select %21, %140, %145 : vector<8x128xi1>, vector<8x128xf32>
    %147 = vector.extract_strided_slice %146 {offsets = [0, 0], sizes = [8, 32], strides = [1, 1]} : vector<8x128xf32> to vector<8x32xf32>
    %148 = vector.extract_strided_slice %146 {offsets = [0, 32], sizes = [8, 32], strides = [1, 1]} : vector<8x128xf32> to vector<8x32xf32>
    %149 = vector.extract_strided_slice %146 {offsets = [0, 64], sizes = [8, 32], strides = [1, 1]} : vector<8x128xf32> to vector<8x32xf32>
    %150 = vector.extract_strided_slice %146 {offsets = [0, 96], sizes = [8, 32], strides = [1, 1]} : vector<8x128xf32> to vector<8x32xf32>
    %151 = arith.mulf %148, %102 : vector<8x32xf32>
    %152 = arith.mulf %147, %149 : vector<8x32xf32>
    %153 = arith.addf %151, %152 : vector<8x32xf32>
    %154 = math.tanh %153 : vector<8x32xf32>
    %155 = arith.mulf %150, %154 : vector<8x32xf32>
    %156 = math.tanh %139 : vector<8x128xf32>
    %157 = arith.negf %139 : vector<8x128xf32>
    %158 = math.exp %157 : vector<8x128xf32>
    %cst_48 = arith.constant 1.000000e+00 : f32
    %159 = vector.broadcast %cst_48 : f32 to vector<8x128xf32>
    %160 = arith.addf %159, %158 : vector<8x128xf32>
    %161 = arith.divf %159, %160 : vector<8x128xf32>
    %162 = arith.select %21, %156, %161 : vector<8x128xi1>, vector<8x128xf32>
    %163 = vector.extract_strided_slice %162 {offsets = [0, 0], sizes = [8, 32], strides = [1, 1]} : vector<8x128xf32> to vector<8x32xf32>
    %164 = vector.extract_strided_slice %162 {offsets = [0, 32], sizes = [8, 32], strides = [1, 1]} : vector<8x128xf32> to vector<8x32xf32>
    %165 = vector.extract_strided_slice %162 {offsets = [0, 64], sizes = [8, 32], strides = [1, 1]} : vector<8x128xf32> to vector<8x32xf32>
    %166 = vector.extract_strided_slice %162 {offsets = [0, 96], sizes = [8, 32], strides = [1, 1]} : vector<8x128xf32> to vector<8x32xf32>
    %167 = arith.mulf %164, %118 : vector<8x32xf32>
    %168 = arith.mulf %163, %165 : vector<8x32xf32>
    %169 = arith.addf %167, %168 : vector<8x32xf32>
    %170 = math.tanh %169 : vector<8x32xf32>
    %171 = arith.mulf %166, %170 : vector<8x32xf32>
    %172 = arith.index_cast %126 : i32 to index
    %c0_49 = arith.constant 0 : index
    %173 = vector.load %arg16[%172, %c0_49] : memref<64x32xf32, #tpu.memory_space<vmem>>, vector<8x32xf32>
    tpu.vector_store %arg16[%172, %c0_49], %155 {strides = array<i32>} : memref<64x32xf32, #tpu.memory_space<vmem>>, vector<8x32xf32>,
    %174 = arith.index_cast %129 : i32 to index
    %c0_50 = arith.constant 0 : index
    %175 = vector.load %arg17[%174, %c0_50] : memref<64x32xf32, #tpu.memory_space<vmem>>, vector<8x32xf32>
    tpu.vector_store %arg17[%174, %c0_50], %171 {strides = array<i32>} : memref<64x32xf32, #tpu.memory_space<vmem>>, vector<8x32xf32>,
    %c3_i32 = arith.constant 3 : i32
    %c8_i32_51 = arith.constant 8 : i32
    %176 = arith.muli %c3_i32, %c8_i32_51 : i32
    %177 = tpu.assume_multiple %176, 8 : i32
    %c7_i32_52 = arith.constant 7 : i32
    %178 = arith.subi %c7_i32_52, %c3_i32 : i32
    %c8_i32_53 = arith.constant 8 : i32
    %179 = arith.muli %178, %c8_i32_53 : i32
    %180 = tpu.assume_multiple %179, 8 : i32
    %181 = arith.index_cast %177 : i32 to index
    %c0_54 = arith.constant 0 : index
    %182 = vector.load %arg14[%181, %c0_54] : memref<64x128xf32, #tpu.memory_space<vmem>>, vector<8x128xf32>
    %183 = arith.truncf %155 : vector<8x32xf32> to vector<8x32xbf16>
    %cst_55 = arith.constant dense<0.000000e+00> : vector<8x128xf32>
    %184 = tpu.matmul %183, %14, %cst_55 {dimension_numbers = #tpu.dot_dimension_numbers<[1], [0], [0], [1], [0, 0, 1, 1], [], []>} : vector<8x32xbf16>, vector<32x128xbf16>, vector<8x128xf32> -> vector<8x128xf32>
    %185 = arith.addf %182, %184 : vector<8x128xf32>
    %186 = arith.index_cast %180 : i32 to index
    %c0_56 = arith.constant 0 : index
    %187 = vector.load %arg15[%186, %c0_56] : memref<64x128xf32, #tpu.memory_space<vmem>>, vector<8x128xf32>
    %188 = arith.truncf %171 : vector<8x32xf32> to vector<8x32xbf16>
    %cst_57 = arith.constant dense<0.000000e+00> : vector<8x128xf32>
    %189 = tpu.matmul %188, %15, %cst_57 {dimension_numbers = #tpu.dot_dimension_numbers<[1], [0], [0], [1], [0, 0, 1, 1], [], []>} : vector<8x32xbf16>, vector<32x128xbf16>, vector<8x128xf32> -> vector<8x128xf32>
    %190 = arith.addf %187, %189 : vector<8x128xf32>
    %191 = math.tanh %185 : vector<8x128xf32>
    %192 = arith.negf %185 : vector<8x128xf32>
    %193 = math.exp %192 : vector<8x128xf32>
    %cst_58 = arith.constant 1.000000e+00 : f32
    %194 = vector.broadcast %cst_58 : f32 to vector<8x128xf32>
    %195 = arith.addf %194, %193 : vector<8x128xf32>
    %196 = arith.divf %194, %195 : vector<8x128xf32>
    %197 = arith.select %21, %191, %196 : vector<8x128xi1>, vector<8x128xf32>
    %198 = vector.extract_strided_slice %197 {offsets = [0, 0], sizes = [8, 32], strides = [1, 1]} : vector<8x128xf32> to vector<8x32xf32>
    %199 = vector.extract_strided_slice %197 {offsets = [0, 32], sizes = [8, 32], strides = [1, 1]} : vector<8x128xf32> to vector<8x32xf32>
    %200 = vector.extract_strided_slice %197 {offsets = [0, 64], sizes = [8, 32], strides = [1, 1]} : vector<8x128xf32> to vector<8x32xf32>
    %201 = vector.extract_strided_slice %197 {offsets = [0, 96], sizes = [8, 32], strides = [1, 1]} : vector<8x128xf32> to vector<8x32xf32>
    %202 = arith.mulf %199, %153 : vector<8x32xf32>
    %203 = arith.mulf %198, %200 : vector<8x32xf32>
    %204 = arith.addf %202, %203 : vector<8x32xf32>
    %205 = math.tanh %204 : vector<8x32xf32>
    %206 = arith.mulf %201, %205 : vector<8x32xf32>
    %207 = math.tanh %190 : vector<8x128xf32>
    %208 = arith.negf %190 : vector<8x128xf32>
    %209 = math.exp %208 : vector<8x128xf32>
    %cst_59 = arith.constant 1.000000e+00 : f32
    %210 = vector.broadcast %cst_59 : f32 to vector<8x128xf32>
    %211 = arith.addf %210, %209 : vector<8x128xf32>
    %212 = arith.divf %210, %211 : vector<8x128xf32>
    %213 = arith.select %21, %207, %212 : vector<8x128xi1>, vector<8x128xf32>
    %214 = vector.extract_strided_slice %213 {offsets = [0, 0], sizes = [8, 32], strides = [1, 1]} : vector<8x128xf32> to vector<8x32xf32>
    %215 = vector.extract_strided_slice %213 {offsets = [0, 32], sizes = [8, 32], strides = [1, 1]} : vector<8x128xf32> to vector<8x32xf32>
    %216 = vector.extract_strided_slice %213 {offsets = [0, 64], sizes = [8, 32], strides = [1, 1]} : vector<8x128xf32> to vector<8x32xf32>
    %217 = vector.extract_strided_slice %213 {offsets = [0, 96], sizes = [8, 32], strides = [1, 1]} : vector<8x128xf32> to vector<8x32xf32>
    %218 = arith.mulf %215, %169 : vector<8x32xf32>
    %219 = arith.mulf %214, %216 : vector<8x32xf32>
    %220 = arith.addf %218, %219 : vector<8x32xf32>
    %221 = math.tanh %220 : vector<8x32xf32>
    %222 = arith.mulf %217, %221 : vector<8x32xf32>
    %223 = arith.index_cast %177 : i32 to index
    %c0_60 = arith.constant 0 : index
    %224 = vector.load %arg16[%223, %c0_60] : memref<64x32xf32, #tpu.memory_space<vmem>>, vector<8x32xf32>
    tpu.vector_store %arg16[%223, %c0_60], %206 {strides = array<i32>} : memref<64x32xf32, #tpu.memory_space<vmem>>, vector<8x32xf32>,
    %225 = arith.index_cast %180 : i32 to index
    %c0_61 = arith.constant 0 : index
    %226 = vector.load %arg17[%225, %c0_61] : memref<64x32xf32, #tpu.memory_space<vmem>>, vector<8x32xf32>
    tpu.vector_store %arg17[%225, %c0_61], %222 {strides = array<i32>} : memref<64x32xf32, #tpu.memory_space<vmem>>, vector<8x32xf32>,
    %c4_i32 = arith.constant 4 : i32
    %c8_i32_62 = arith.constant 8 : i32
    %227 = arith.muli %c4_i32, %c8_i32_62 : i32
    %228 = tpu.assume_multiple %227, 8 : i32
    %c7_i32_63 = arith.constant 7 : i32
    %229 = arith.subi %c7_i32_63, %c4_i32 : i32
    %c8_i32_64 = arith.constant 8 : i32
    %230 = arith.muli %229, %c8_i32_64 : i32
    %231 = tpu.assume_multiple %230, 8 : i32
    %232 = arith.index_cast %228 : i32 to index
    %c0_65 = arith.constant 0 : index
    %233 = vector.load %arg14[%232, %c0_65] : memref<64x128xf32, #tpu.memory_space<vmem>>, vector<8x128xf32>
    %234 = arith.truncf %206 : vector<8x32xf32> to vector<8x32xbf16>
    %cst_66 = arith.constant dense<0.000000e+00> : vector<8x128xf32>
    %235 = tpu.matmul %234, %14, %cst_66 {dimension_numbers = #tpu.dot_dimension_numbers<[1], [0], [0], [1], [0, 0, 1, 1], [], []>} : vector<8x32xbf16>, vector<32x128xbf16>, vector<8x128xf32> -> vector<8x128xf32>
    %236 = arith.addf %233, %235 : vector<8x128xf32>
    %237 = arith.index_cast %231 : i32 to index
    %c0_67 = arith.constant 0 : index
    %238 = vector.load %arg15[%237, %c0_67] : memref<64x128xf32, #tpu.memory_space<vmem>>, vector<8x128xf32>
    %239 = arith.truncf %222 : vector<8x32xf32> to vector<8x32xbf16>
    %cst_68 = arith.constant dense<0.000000e+00> : vector<8x128xf32>
    %240 = tpu.matmul %239, %15, %cst_68 {dimension_numbers = #tpu.dot_dimension_numbers<[1], [0], [0], [1], [0, 0, 1, 1], [], []>} : vector<8x32xbf16>, vector<32x128xbf16>, vector<8x128xf32> -> vector<8x128xf32>
    %241 = arith.addf %238, %240 : vector<8x128xf32>
    %242 = math.tanh %236 : vector<8x128xf32>
    %243 = arith.negf %236 : vector<8x128xf32>
    %244 = math.exp %243 : vector<8x128xf32>
    %cst_69 = arith.constant 1.000000e+00 : f32
    %245 = vector.broadcast %cst_69 : f32 to vector<8x128xf32>
    %246 = arith.addf %245, %244 : vector<8x128xf32>
    %247 = arith.divf %245, %246 : vector<8x128xf32>
    %248 = arith.select %21, %242, %247 : vector<8x128xi1>, vector<8x128xf32>
    %249 = vector.extract_strided_slice %248 {offsets = [0, 0], sizes = [8, 32], strides = [1, 1]} : vector<8x128xf32> to vector<8x32xf32>
    %250 = vector.extract_strided_slice %248 {offsets = [0, 32], sizes = [8, 32], strides = [1, 1]} : vector<8x128xf32> to vector<8x32xf32>
    %251 = vector.extract_strided_slice %248 {offsets = [0, 64], sizes = [8, 32], strides = [1, 1]} : vector<8x128xf32> to vector<8x32xf32>
    %252 = vector.extract_strided_slice %248 {offsets = [0, 96], sizes = [8, 32], strides = [1, 1]} : vector<8x128xf32> to vector<8x32xf32>
    %253 = arith.mulf %250, %204 : vector<8x32xf32>
    %254 = arith.mulf %249, %251 : vector<8x32xf32>
    %255 = arith.addf %253, %254 : vector<8x32xf32>
    %256 = math.tanh %255 : vector<8x32xf32>
    %257 = arith.mulf %252, %256 : vector<8x32xf32>
    %258 = math.tanh %241 : vector<8x128xf32>
    %259 = arith.negf %241 : vector<8x128xf32>
    %260 = math.exp %259 : vector<8x128xf32>
    %cst_70 = arith.constant 1.000000e+00 : f32
    %261 = vector.broadcast %cst_70 : f32 to vector<8x128xf32>
    %262 = arith.addf %261, %260 : vector<8x128xf32>
    %263 = arith.divf %261, %262 : vector<8x128xf32>
    %264 = arith.select %21, %258, %263 : vector<8x128xi1>, vector<8x128xf32>
    %265 = vector.extract_strided_slice %264 {offsets = [0, 0], sizes = [8, 32], strides = [1, 1]} : vector<8x128xf32> to vector<8x32xf32>
    %266 = vector.extract_strided_slice %264 {offsets = [0, 32], sizes = [8, 32], strides = [1, 1]} : vector<8x128xf32> to vector<8x32xf32>
    %267 = vector.extract_strided_slice %264 {offsets = [0, 64], sizes = [8, 32], strides = [1, 1]} : vector<8x128xf32> to vector<8x32xf32>
    %268 = vector.extract_strided_slice %264 {offsets = [0, 96], sizes = [8, 32], strides = [1, 1]} : vector<8x128xf32> to vector<8x32xf32>
    %269 = arith.mulf %266, %220 : vector<8x32xf32>
    %270 = arith.mulf %265, %267 : vector<8x32xf32>
    %271 = arith.addf %269, %270 : vector<8x32xf32>
    %272 = math.tanh %271 : vector<8x32xf32>
    %273 = arith.mulf %268, %272 : vector<8x32xf32>
    %274 = arith.index_cast %228 : i32 to index
    %c0_71 = arith.constant 0 : index
    %275 = vector.load %arg16[%274, %c0_71] : memref<64x32xf32, #tpu.memory_space<vmem>>, vector<8x32xf32>
    tpu.vector_store %arg16[%274, %c0_71], %257 {strides = array<i32>} : memref<64x32xf32, #tpu.memory_space<vmem>>, vector<8x32xf32>,
    %276 = arith.index_cast %231 : i32 to index
    %c0_72 = arith.constant 0 : index
    %277 = vector.load %arg17[%276, %c0_72] : memref<64x32xf32, #tpu.memory_space<vmem>>, vector<8x32xf32>
    tpu.vector_store %arg17[%276, %c0_72], %273 {strides = array<i32>} : memref<64x32xf32, #tpu.memory_space<vmem>>, vector<8x32xf32>,
    %c5_i32 = arith.constant 5 : i32
    %c8_i32_73 = arith.constant 8 : i32
    %278 = arith.muli %c5_i32, %c8_i32_73 : i32
    %279 = tpu.assume_multiple %278, 8 : i32
    %c7_i32_74 = arith.constant 7 : i32
    %280 = arith.subi %c7_i32_74, %c5_i32 : i32
    %c8_i32_75 = arith.constant 8 : i32
    %281 = arith.muli %280, %c8_i32_75 : i32
    %282 = tpu.assume_multiple %281, 8 : i32
    %283 = arith.index_cast %279 : i32 to index
    %c0_76 = arith.constant 0 : index
    %284 = vector.load %arg14[%283, %c0_76] : memref<64x128xf32, #tpu.memory_space<vmem>>, vector<8x128xf32>
    %285 = arith.truncf %257 : vector<8x32xf32> to vector<8x32xbf16>
    %cst_77 = arith.constant dense<0.000000e+00> : vector<8x128xf32>
    %286 = tpu.matmul %285, %14, %cst_77 {dimension_numbers = #tpu.dot_dimension_numbers<[1], [0], [0], [1], [0, 0, 1, 1], [], []>} : vector<8x32xbf16>, vector<32x128xbf16>, vector<8x128xf32> -> vector<8x128xf32>
    %287 = arith.addf %284, %286 : vector<8x128xf32>
    %288 = arith.index_cast %282 : i32 to index
    %c0_78 = arith.constant 0 : index
    %289 = vector.load %arg15[%288, %c0_78] : memref<64x128xf32, #tpu.memory_space<vmem>>, vector<8x128xf32>
    %290 = arith.truncf %273 : vector<8x32xf32> to vector<8x32xbf16>
    %cst_79 = arith.constant dense<0.000000e+00> : vector<8x128xf32>
    %291 = tpu.matmul %290, %15, %cst_79 {dimension_numbers = #tpu.dot_dimension_numbers<[1], [0], [0], [1], [0, 0, 1, 1], [], []>} : vector<8x32xbf16>, vector<32x128xbf16>, vector<8x128xf32> -> vector<8x128xf32>
    %292 = arith.addf %289, %291 : vector<8x128xf32>
    %293 = math.tanh %287 : vector<8x128xf32>
    %294 = arith.negf %287 : vector<8x128xf32>
    %295 = math.exp %294 : vector<8x128xf32>
    %cst_80 = arith.constant 1.000000e+00 : f32
    %296 = vector.broadcast %cst_80 : f32 to vector<8x128xf32>
    %297 = arith.addf %296, %295 : vector<8x128xf32>
    %298 = arith.divf %296, %297 : vector<8x128xf32>
    %299 = arith.select %21, %293, %298 : vector<8x128xi1>, vector<8x128xf32>
    %300 = vector.extract_strided_slice %299 {offsets = [0, 0], sizes = [8, 32], strides = [1, 1]} : vector<8x128xf32> to vector<8x32xf32>
    %301 = vector.extract_strided_slice %299 {offsets = [0, 32], sizes = [8, 32], strides = [1, 1]} : vector<8x128xf32> to vector<8x32xf32>
    %302 = vector.extract_strided_slice %299 {offsets = [0, 64], sizes = [8, 32], strides = [1, 1]} : vector<8x128xf32> to vector<8x32xf32>
    %303 = vector.extract_strided_slice %299 {offsets = [0, 96], sizes = [8, 32], strides = [1, 1]} : vector<8x128xf32> to vector<8x32xf32>
    %304 = arith.mulf %301, %255 : vector<8x32xf32>
    %305 = arith.mulf %300, %302 : vector<8x32xf32>
    %306 = arith.addf %304, %305 : vector<8x32xf32>
    %307 = math.tanh %306 : vector<8x32xf32>
    %308 = arith.mulf %303, %307 : vector<8x32xf32>
    %309 = math.tanh %292 : vector<8x128xf32>
    %310 = arith.negf %292 : vector<8x128xf32>
    %311 = math.exp %310 : vector<8x128xf32>
    %cst_81 = arith.constant 1.000000e+00 : f32
    %312 = vector.broadcast %cst_81 : f32 to vector<8x128xf32>
    %313 = arith.addf %312, %311 : vector<8x128xf32>
    %314 = arith.divf %312, %313 : vector<8x128xf32>
    %315 = arith.select %21, %309, %314 : vector<8x128xi1>, vector<8x128xf32>
    %316 = vector.extract_strided_slice %315 {offsets = [0, 0], sizes = [8, 32], strides = [1, 1]} : vector<8x128xf32> to vector<8x32xf32>
    %317 = vector.extract_strided_slice %315 {offsets = [0, 32], sizes = [8, 32], strides = [1, 1]} : vector<8x128xf32> to vector<8x32xf32>
    %318 = vector.extract_strided_slice %315 {offsets = [0, 64], sizes = [8, 32], strides = [1, 1]} : vector<8x128xf32> to vector<8x32xf32>
    %319 = vector.extract_strided_slice %315 {offsets = [0, 96], sizes = [8, 32], strides = [1, 1]} : vector<8x128xf32> to vector<8x32xf32>
    %320 = arith.mulf %317, %271 : vector<8x32xf32>
    %321 = arith.mulf %316, %318 : vector<8x32xf32>
    %322 = arith.addf %320, %321 : vector<8x32xf32>
    %323 = math.tanh %322 : vector<8x32xf32>
    %324 = arith.mulf %319, %323 : vector<8x32xf32>
    %325 = arith.index_cast %279 : i32 to index
    %c0_82 = arith.constant 0 : index
    %326 = vector.load %arg16[%325, %c0_82] : memref<64x32xf32, #tpu.memory_space<vmem>>, vector<8x32xf32>
    tpu.vector_store %arg16[%325, %c0_82], %308 {strides = array<i32>} : memref<64x32xf32, #tpu.memory_space<vmem>>, vector<8x32xf32>,
    %327 = arith.index_cast %282 : i32 to index
    %c0_83 = arith.constant 0 : index
    %328 = vector.load %arg17[%327, %c0_83] : memref<64x32xf32, #tpu.memory_space<vmem>>, vector<8x32xf32>
    tpu.vector_store %arg17[%327, %c0_83], %324 {strides = array<i32>} : memref<64x32xf32, #tpu.memory_space<vmem>>, vector<8x32xf32>,
    %c6_i32 = arith.constant 6 : i32
    %c8_i32_84 = arith.constant 8 : i32
    %329 = arith.muli %c6_i32, %c8_i32_84 : i32
    %330 = tpu.assume_multiple %329, 8 : i32
    %c7_i32_85 = arith.constant 7 : i32
    %331 = arith.subi %c7_i32_85, %c6_i32 : i32
    %c8_i32_86 = arith.constant 8 : i32
    %332 = arith.muli %331, %c8_i32_86 : i32
    %333 = tpu.assume_multiple %332, 8 : i32
    %334 = arith.index_cast %330 : i32 to index
    %c0_87 = arith.constant 0 : index
    %335 = vector.load %arg14[%334, %c0_87] : memref<64x128xf32, #tpu.memory_space<vmem>>, vector<8x128xf32>
    %336 = arith.truncf %308 : vector<8x32xf32> to vector<8x32xbf16>
    %cst_88 = arith.constant dense<0.000000e+00> : vector<8x128xf32>
    %337 = tpu.matmul %336, %14, %cst_88 {dimension_numbers = #tpu.dot_dimension_numbers<[1], [0], [0], [1], [0, 0, 1, 1], [], []>} : vector<8x32xbf16>, vector<32x128xbf16>, vector<8x128xf32> -> vector<8x128xf32>
    %338 = arith.addf %335, %337 : vector<8x128xf32>
    %339 = arith.index_cast %333 : i32 to index
    %c0_89 = arith.constant 0 : index
    %340 = vector.load %arg15[%339, %c0_89] : memref<64x128xf32, #tpu.memory_space<vmem>>, vector<8x128xf32>
    %341 = arith.truncf %324 : vector<8x32xf32> to vector<8x32xbf16>
    %cst_90 = arith.constant dense<0.000000e+00> : vector<8x128xf32>
    %342 = tpu.matmul %341, %15, %cst_90 {dimension_numbers = #tpu.dot_dimension_numbers<[1], [0], [0], [1], [0, 0, 1, 1], [], []>} : vector<8x32xbf16>, vector<32x128xbf16>, vector<8x128xf32> -> vector<8x128xf32>
    %343 = arith.addf %340, %342 : vector<8x128xf32>
    %344 = math.tanh %338 : vector<8x128xf32>
    %345 = arith.negf %338 : vector<8x128xf32>
    %346 = math.exp %345 : vector<8x128xf32>
    %cst_91 = arith.constant 1.000000e+00 : f32
    %347 = vector.broadcast %cst_91 : f32 to vector<8x128xf32>
    %348 = arith.addf %347, %346 : vector<8x128xf32>
    %349 = arith.divf %347, %348 : vector<8x128xf32>
    %350 = arith.select %21, %344, %349 : vector<8x128xi1>, vector<8x128xf32>
    %351 = vector.extract_strided_slice %350 {offsets = [0, 0], sizes = [8, 32], strides = [1, 1]} : vector<8x128xf32> to vector<8x32xf32>
    %352 = vector.extract_strided_slice %350 {offsets = [0, 32], sizes = [8, 32], strides = [1, 1]} : vector<8x128xf32> to vector<8x32xf32>
    %353 = vector.extract_strided_slice %350 {offsets = [0, 64], sizes = [8, 32], strides = [1, 1]} : vector<8x128xf32> to vector<8x32xf32>
    %354 = vector.extract_strided_slice %350 {offsets = [0, 96], sizes = [8, 32], strides = [1, 1]} : vector<8x128xf32> to vector<8x32xf32>
    %355 = arith.mulf %352, %306 : vector<8x32xf32>
    %356 = arith.mulf %351, %353 : vector<8x32xf32>
    %357 = arith.addf %355, %356 : vector<8x32xf32>
    %358 = math.tanh %357 : vector<8x32xf32>
    %359 = arith.mulf %354, %358 : vector<8x32xf32>
    %360 = math.tanh %343 : vector<8x128xf32>
    %361 = arith.negf %343 : vector<8x128xf32>
    %362 = math.exp %361 : vector<8x128xf32>
    %cst_92 = arith.constant 1.000000e+00 : f32
    %363 = vector.broadcast %cst_92 : f32 to vector<8x128xf32>
    %364 = arith.addf %363, %362 : vector<8x128xf32>
    %365 = arith.divf %363, %364 : vector<8x128xf32>
    %366 = arith.select %21, %360, %365 : vector<8x128xi1>, vector<8x128xf32>
    %367 = vector.extract_strided_slice %366 {offsets = [0, 0], sizes = [8, 32], strides = [1, 1]} : vector<8x128xf32> to vector<8x32xf32>
    %368 = vector.extract_strided_slice %366 {offsets = [0, 32], sizes = [8, 32], strides = [1, 1]} : vector<8x128xf32> to vector<8x32xf32>
    %369 = vector.extract_strided_slice %366 {offsets = [0, 64], sizes = [8, 32], strides = [1, 1]} : vector<8x128xf32> to vector<8x32xf32>
    %370 = vector.extract_strided_slice %366 {offsets = [0, 96], sizes = [8, 32], strides = [1, 1]} : vector<8x128xf32> to vector<8x32xf32>
    %371 = arith.mulf %368, %322 : vector<8x32xf32>
    %372 = arith.mulf %367, %369 : vector<8x32xf32>
    %373 = arith.addf %371, %372 : vector<8x32xf32>
    %374 = math.tanh %373 : vector<8x32xf32>
    %375 = arith.mulf %370, %374 : vector<8x32xf32>
    %376 = arith.index_cast %330 : i32 to index
    %c0_93 = arith.constant 0 : index
    %377 = vector.load %arg16[%376, %c0_93] : memref<64x32xf32, #tpu.memory_space<vmem>>, vector<8x32xf32>
    tpu.vector_store %arg16[%376, %c0_93], %359 {strides = array<i32>} : memref<64x32xf32, #tpu.memory_space<vmem>>, vector<8x32xf32>,
    %378 = arith.index_cast %333 : i32 to index
    %c0_94 = arith.constant 0 : index
    %379 = vector.load %arg17[%378, %c0_94] : memref<64x32xf32, #tpu.memory_space<vmem>>, vector<8x32xf32>
    tpu.vector_store %arg17[%378, %c0_94], %375 {strides = array<i32>} : memref<64x32xf32, #tpu.memory_space<vmem>>, vector<8x32xf32>,
    %c7_i32_95 = arith.constant 7 : i32
    %c8_i32_96 = arith.constant 8 : i32
    %380 = arith.muli %c7_i32_95, %c8_i32_96 : i32
    %381 = tpu.assume_multiple %380, 8 : i32
    %c7_i32_97 = arith.constant 7 : i32
    %382 = arith.subi %c7_i32_97, %c7_i32_95 : i32
    %c8_i32_98 = arith.constant 8 : i32
    %383 = arith.muli %382, %c8_i32_98 : i32
    %384 = tpu.assume_multiple %383, 8 : i32
    %385 = arith.index_cast %381 : i32 to index
    %c0_99 = arith.constant 0 : index
    %386 = vector.load %arg14[%385, %c0_99] : memref<64x128xf32, #tpu.memory_space<vmem>>, vector<8x128xf32>
    %387 = arith.truncf %359 : vector<8x32xf32> to vector<8x32xbf16>
    %cst_100 = arith.constant dense<0.000000e+00> : vector<8x128xf32>
    %388 = tpu.matmul %387, %14, %cst_100 {dimension_numbers = #tpu.dot_dimension_numbers<[1], [0], [0], [1], [0, 0, 1, 1], [], []>} : vector<8x32xbf16>, vector<32x128xbf16>, vector<8x128xf32> -> vector<8x128xf32>
    %389 = arith.addf %386, %388 : vector<8x128xf32>
    %390 = arith.index_cast %384 : i32 to index
    %c0_101 = arith.constant 0 : index
    %391 = vector.load %arg15[%390, %c0_101] : memref<64x128xf32, #tpu.memory_space<vmem>>, vector<8x128xf32>
    %392 = arith.truncf %375 : vector<8x32xf32> to vector<8x32xbf16>
    %cst_102 = arith.constant dense<0.000000e+00> : vector<8x128xf32>
    %393 = tpu.matmul %392, %15, %cst_102 {dimension_numbers = #tpu.dot_dimension_numbers<[1], [0], [0], [1], [0, 0, 1, 1], [], []>} : vector<8x32xbf16>, vector<32x128xbf16>, vector<8x128xf32> -> vector<8x128xf32>
    %394 = arith.addf %391, %393 : vector<8x128xf32>
    %395 = math.tanh %389 : vector<8x128xf32>
    %396 = arith.negf %389 : vector<8x128xf32>
    %397 = math.exp %396 : vector<8x128xf32>
    %cst_103 = arith.constant 1.000000e+00 : f32
    %398 = vector.broadcast %cst_103 : f32 to vector<8x128xf32>
    %399 = arith.addf %398, %397 : vector<8x128xf32>
    %400 = arith.divf %398, %399 : vector<8x128xf32>
    %401 = arith.select %21, %395, %400 : vector<8x128xi1>, vector<8x128xf32>
    %402 = vector.extract_strided_slice %401 {offsets = [0, 0], sizes = [8, 32], strides = [1, 1]} : vector<8x128xf32> to vector<8x32xf32>
    %403 = vector.extract_strided_slice %401 {offsets = [0, 32], sizes = [8, 32], strides = [1, 1]} : vector<8x128xf32> to vector<8x32xf32>
    %404 = vector.extract_strided_slice %401 {offsets = [0, 64], sizes = [8, 32], strides = [1, 1]} : vector<8x128xf32> to vector<8x32xf32>
    %405 = vector.extract_strided_slice %401 {offsets = [0, 96], sizes = [8, 32], strides = [1, 1]} : vector<8x128xf32> to vector<8x32xf32>
    %406 = arith.mulf %403, %357 : vector<8x32xf32>
    %407 = arith.mulf %402, %404 : vector<8x32xf32>
    %408 = arith.addf %406, %407 : vector<8x32xf32>
    %409 = math.tanh %408 : vector<8x32xf32>
    %410 = arith.mulf %405, %409 : vector<8x32xf32>
    %411 = math.tanh %394 : vector<8x128xf32>
    %412 = arith.negf %394 : vector<8x128xf32>
    %413 = math.exp %412 : vector<8x128xf32>
    %cst_104 = arith.constant 1.000000e+00 : f32
    %414 = vector.broadcast %cst_104 : f32 to vector<8x128xf32>
    %415 = arith.addf %414, %413 : vector<8x128xf32>
    %416 = arith.divf %414, %415 : vector<8x128xf32>
    %417 = arith.select %21, %411, %416 : vector<8x128xi1>, vector<8x128xf32>
    %418 = vector.extract_strided_slice %417 {offsets = [0, 0], sizes = [8, 32], strides = [1, 1]} : vector<8x128xf32> to vector<8x32xf32>
    %419 = vector.extract_strided_slice %417 {offsets = [0, 32], sizes = [8, 32], strides = [1, 1]} : vector<8x128xf32> to vector<8x32xf32>
    %420 = vector.extract_strided_slice %417 {offsets = [0, 64], sizes = [8, 32], strides = [1, 1]} : vector<8x128xf32> to vector<8x32xf32>
    %421 = vector.extract_strided_slice %417 {offsets = [0, 96], sizes = [8, 32], strides = [1, 1]} : vector<8x128xf32> to vector<8x32xf32>
    %422 = arith.mulf %419, %373 : vector<8x32xf32>
    %423 = arith.mulf %418, %420 : vector<8x32xf32>
    %424 = arith.addf %422, %423 : vector<8x32xf32>
    %425 = math.tanh %424 : vector<8x32xf32>
    %426 = arith.mulf %421, %425 : vector<8x32xf32>
    %427 = arith.index_cast %381 : i32 to index
    %c0_105 = arith.constant 0 : index
    %428 = vector.load %arg16[%427, %c0_105] : memref<64x32xf32, #tpu.memory_space<vmem>>, vector<8x32xf32>
    tpu.vector_store %arg16[%427, %c0_105], %410 {strides = array<i32>} : memref<64x32xf32, #tpu.memory_space<vmem>>, vector<8x32xf32>,
    %429 = arith.index_cast %384 : i32 to index
    %c0_106 = arith.constant 0 : index
    %430 = vector.load %arg17[%429, %c0_106] : memref<64x32xf32, #tpu.memory_space<vmem>>, vector<8x32xf32>
    tpu.vector_store %arg17[%429, %c0_106], %426 {strides = array<i32>} : memref<64x32xf32, #tpu.memory_space<vmem>>, vector<8x32xf32>,
    %c8_i32_107 = arith.constant 8 : i32
    %c0_108 = arith.constant 0 : index
    %c0_109 = arith.constant 0 : index
    %431 = vector.load %arg16[%c0_108, %c0_109] : memref<64x32xf32, #tpu.memory_space<vmem>>, vector<64x32xf32>
    %432 = arith.truncf %431 : vector<64x32xf32> to vector<64x32xbf16>
    %c0_110 = arith.constant 0 : index
    %c0_111 = arith.constant 0 : index
    %433 = vector.load %arg17[%c0_110, %c0_111] : memref<64x32xf32, #tpu.memory_space<vmem>>, vector<64x32xf32>
    %434 = arith.truncf %433 : vector<64x32xf32> to vector<64x32xbf16>
    %c0_112 = arith.constant 0 : index
    %c0_113 = arith.constant 0 : index
    %435 = vector.load %arg8[%c0_112, %c0_113] : memref<32x512xbf16, #tpu.memory_space<vmem>>, vector<32x512xbf16>
    %cst_114 = arith.constant dense<0.000000e+00> : vector<64x512xf32>
    %436 = tpu.matmul %432, %435, %cst_114 {dimension_numbers = #tpu.dot_dimension_numbers<[1], [0], [0], [1], [0, 0, 1, 1], [], []>} : vector<64x32xbf16>, vector<32x512xbf16>, vector<64x512xf32> -> vector<64x512xf32>
    %c0_115 = arith.constant 0 : index
    %c0_116 = arith.constant 0 : index
    %437 = vector.load %arg9[%c0_115, %c0_116] : memref<32x512xbf16, #tpu.memory_space<vmem>>, vector<32x512xbf16>
    %cst_117 = arith.constant dense<0.000000e+00> : vector<64x512xf32>
    %438 = tpu.matmul %434, %437, %cst_117 {dimension_numbers = #tpu.dot_dimension_numbers<[1], [0], [0], [1], [0, 0, 1, 1], [], []>} : vector<64x32xbf16>, vector<32x512xbf16>, vector<64x512xf32> -> vector<64x512xf32>
    %439 = arith.addf %436, %438 : vector<64x512xf32>
    %c0_118 = arith.constant 0 : index
    %c0_119 = arith.constant 0 : index
    %440 = vector.load %arg10[%c0_118, %c0_119] : memref<1x512xf32, #tpu.memory_space<vmem>>, vector<1x512xf32>
    %441 = vector.broadcast %440 : vector<1x512xf32> to vector<64x512xf32>
    %442 = arith.addf %439, %441 : vector<64x512xf32>
    %cst_120 = arith.constant 0.000000e+00 : f32
    %443 = vector.broadcast %cst_120 : f32 to vector<64x512xf32>
    %444 = arith.maximumf %442, %443 : vector<64x512xf32>
    %445 = arith.truncf %444 : vector<64x512xf32> to vector<64x512xbf16>
    %c0_121 = arith.constant 0 : index
    %c0_122 = arith.constant 0 : index
    %446 = vector.load %arg11[%c0_121, %c0_122] : memref<512x128xbf16, #tpu.memory_space<vmem>>, vector<512x128xbf16>
    %cst_123 = arith.constant dense<0.000000e+00> : vector<64x128xf32>
    %447 = tpu.matmul %445, %446, %cst_123 {dimension_numbers = #tpu.dot_dimension_numbers<[1], [0], [0], [1], [0, 0, 1, 1], [], []>} : vector<64x512xbf16>, vector<512x128xbf16>, vector<64x128xf32> -> vector<64x128xf32>
    %c0_124 = arith.constant 0 : index
    %c0_125 = arith.constant 0 : index
    %448 = vector.load %arg12[%c0_124, %c0_125] : memref<1x128xf32, #tpu.memory_space<vmem>>, vector<1x128xf32>
    %449 = vector.broadcast %448 : vector<1x128xf32> to vector<64x128xf32>
    %450 = arith.addf %447, %449 : vector<64x128xf32>
    %cst_126 = arith.constant 0.000000e+00 : f32
    %451 = vector.broadcast %cst_126 : f32 to vector<64x128xf32>
    %452 = arith.maximumf %450, %451 : vector<64x128xf32>
    %c0_127 = arith.constant 0 : index
    %c0_128 = arith.constant 0 : index
    %c0_129 = arith.constant 0 : index
    %453 = vector.load %arg13[%c0_127, %c0_128, %c0_129] : memref<1x64x128xf32, #tpu.memory_space<vmem>>, vector<1x64x128xf32>
    %454 = vector.shape_cast %453 : vector<1x64x128xf32> to vector<64x128xf32>
    %455 = vector.shape_cast %452 : vector<64x128xf32> to vector<1x64x128xf32>
    tpu.vector_store %arg13[%c0_127, %c0_128, %c0_129], %455 {strides = array<i32>} : memref<1x64x128xf32, #tpu.memory_space<vmem>>, vector<1x64x128xf32>,
    return
  }
  func.func @transform_0(%arg0: i32) -> (i32, i32, i32) {
    %c0_i32 = arith.constant 0 : i32
    %c0_i32_0 = arith.constant 0 : i32
    %c0_i32_1 = arith.constant 0 : i32
    return %arg0, %c0_i32, %c0_i32_0 : i32, i32, i32
  }
  func.func @transform_1(%arg0: i32) -> (i32, i32) {
    %c0_i32 = arith.constant 0 : i32
    %c0_i32_0 = arith.constant 0 : i32
    %c0_i32_1 = arith.constant 0 : i32
    return %c0_i32, %c0_i32_0 : i32, i32
  }
  func.func @transform_2(%arg0: i32) -> (i32, i32) {
    %c0_i32 = arith.constant 0 : i32
    %c0_i32_0 = arith.constant 0 : i32
    %c0_i32_1 = arith.constant 0 : i32
    return %c0_i32, %c0_i32_0 : i32, i32
  }
  func.func @transform_3(%arg0: i32) -> (i32, i32) {
    %c0_i32 = arith.constant 0 : i32
    %c0_i32_0 = arith.constant 0 : i32
    %c0_i32_1 = arith.constant 0 : i32
    return %c0_i32, %c0_i32_0 : i32, i32
  }
  func.func @transform_4(%arg0: i32) -> (i32, i32) {
    %c0_i32 = arith.constant 0 : i32
    %c0_i32_0 = arith.constant 0 : i32
    %c0_i32_1 = arith.constant 0 : i32
    return %c0_i32, %c0_i32_0 : i32, i32
  }
  func.func @transform_5(%arg0: i32) -> (i32, i32) {
    %c0_i32 = arith.constant 0 : i32
    %c0_i32_0 = arith.constant 0 : i32
    %c0_i32_1 = arith.constant 0 : i32
    return %c0_i32, %c0_i32_0 : i32, i32
  }
  func.func @transform_6(%arg0: i32) -> (i32, i32) {
    %c0_i32 = arith.constant 0 : i32
    %c0_i32_0 = arith.constant 0 : i32
    %c0_i32_1 = arith.constant 0 : i32
    return %c0_i32, %c0_i32_0 : i32, i32
  }
  func.func @transform_7(%arg0: i32) -> (i32, i32) {
    %c0_i32 = arith.constant 0 : i32
    %c0_i32_0 = arith.constant 0 : i32
    %c0_i32_1 = arith.constant 0 : i32
    return %c0_i32, %c0_i32_0 : i32, i32
  }
  func.func @transform_8(%arg0: i32) -> (i32, i32) {
    %c0_i32 = arith.constant 0 : i32
    %c0_i32_0 = arith.constant 0 : i32
    %c0_i32_1 = arith.constant 0 : i32
    return %c0_i32, %c0_i32_0 : i32, i32
  }
  func.func @transform_9(%arg0: i32) -> (i32, i32) {
    %c0_i32 = arith.constant 0 : i32
    %c0_i32_0 = arith.constant 0 : i32
    %c0_i32_1 = arith.constant 0 : i32
    return %c0_i32, %c0_i32_0 : i32, i32
  }
  func.func @transform_10(%arg0: i32) -> (i32, i32) {
    %c0_i32 = arith.constant 0 : i32
    %c0_i32_0 = arith.constant 0 : i32
    %c0_i32_1 = arith.constant 0 : i32
    return %c0_i32, %c0_i32_0 : i32, i32
  }
  func.func @transform_11(%arg0: i32) -> (i32, i32) {
    %c0_i32 = arith.constant 0 : i32
    %c0_i32_0 = arith.constant 0 : i32
    %c0_i32_1 = arith.constant 0 : i32
    return %c0_i32, %c0_i32_0 : i32, i32
  }
  func.func @transform_12(%arg0: i32) -> (i32, i32, i32) {
    %c0_i32 = arith.constant 0 : i32
    %c0_i32_0 = arith.constant 0 : i32
    %c0_i32_1 = arith.constant 0 : i32
    return %arg0, %c0_i32, %c0_i32_0 : i32, i32, i32
  }
}

</mosaic_0001>

<llo_original>
// kernel: lstm_model_forward.1
$region0: #{lstm_model_forward.1}
  #allocation0 [shape = 'u32[]', space=smem, size = 0x4, offset = 0x4, fixed_abs, tag = 'smem constant byte address 0x4 - core index']
  #allocation1 [shape = 'u32[144,128]{1,0:T(1,128)}', space=vmem, size = 0x12000, scoped, tag = 'internal scratch']
  #allocation2 [shape = 'f32[64,128]{1,0:T(8,128)}', space=vmem, size = 0x8000, scoped, tag = 'scratch operand']
  #allocation3 [shape = 'f32[64,128]{1,0:T(8,128)}', space=vmem, size = 0x8000, scoped, tag = 'scratch operand']
  #allocation4 [shape = 'f32[64,32]{1,0:T(8,128)}', space=vmem, size = 0x8000, scoped, tag = 'scratch operand']
  #allocation5 [shape = 'f32[64,32]{1,0:T(8,128)}', space=vmem, size = 0x8000, scoped, tag = 'scratch operand']
  %s0 = inlined_call_operand.vmem [shape: bf16[1,64,24], index: 0, kind: input, shape index: {}]
  %s1 = inlined_call_operand.vmem [shape: bf16[24,128], index: 1, kind: input, shape index: {}]
  %s2 = inlined_call_operand.vmem [shape: bf16[32,128], index: 2, kind: input, shape index: {}]
  %s3 = inlined_call_operand.vmem [shape: f32[1,128], index: 3, kind: input, shape index: {}]
  %s4 = inlined_call_operand.vmem [shape: bf16[24,128], index: 4, kind: input, shape index: {}]
  %s5 = inlined_call_operand.vmem [shape: bf16[32,128], index: 5, kind: input, shape index: {}]
  %s6 = inlined_call_operand.vmem [shape: f32[1,128], index: 6, kind: input, shape index: {}]
  %s7 = inlined_call_operand.vmem [shape: bf16[32,512], index: 7, kind: input, shape index: {}]
  %s8 = inlined_call_operand.vmem [shape: bf16[32,512], index: 8, kind: input, shape index: {}]
  %s9 = inlined_call_operand.vmem [shape: f32[1,512], index: 9, kind: input, shape index: {}]
  %s10 = inlined_call_operand.vmem [shape: bf16[512,128], index: 10, kind: input, shape index: {}]
  %s11 = inlined_call_operand.vmem [shape: f32[1,128], index: 11, kind: input, shape index: {}]
  %s12 = inlined_call_operand.vmem [shape: f32[1,64,128], index: 12, kind: output, shape index: {}]
  %s13 = sld [smem:[#allocation0]]
  $region58: #{lstm_model_forward.1} parent=0
    _
  %s15 = ssub.s32 1, %s13
  %s16 = scalar_select 0, %s15, %s13
  // Predicated region
  $region2: #{lstm_model_forward.1} parent=0 // pred_check
    _
  $region3: #{lstm_model_forward.1} parent=0 // pred_check_branch
    %18 = sbr.rel (0) target = $region5
  $region4: #{lstm_model_forward.1} parent=0 // pred_region
    _
  $region5: #{lstm_model_forward.1} parent=0 // pred_fallthru
    _
  // Predicated region
  $region6: #{lstm_model_forward.1} parent=0 // pred_check
    _
  $region7: #{lstm_model_forward.1} parent=0 // pred_check_branch
    %20 = sbr.rel (0) target = $region9
  $region8: #{lstm_model_forward.1} parent=0 // pred_region
    _
  $region9: #{lstm_model_forward.1} parent=0 // pred_fallthru
    _
  // Predicated region
  $region10: #{lstm_model_forward.1} parent=0 // pred_check
    _
  $region11: #{lstm_model_forward.1} parent=0 // pred_check_branch
    %22 = sbr.rel (0) target = $region13
  $region12: #{lstm_model_forward.1} parent=0 // pred_region
    _
  $region13: #{lstm_model_forward.1} parent=0 // pred_fallthru
    _
  // Predicated region
  $region14: #{lstm_model_forward.1} parent=0 // pred_check
    _
  $region15: #{lstm_model_forward.1} parent=0 // pred_check_branch
    %24 = sbr.rel (0) target = $region17
  $region16: #{lstm_model_forward.1} parent=0 // pred_region
    _
  $region17: #{lstm_model_forward.1} parent=0 // pred_fallthru
    _
  // Predicated region
  $region18: #{lstm_model_forward.1} parent=0 // pred_check
    _
  $region19: #{lstm_model_forward.1} parent=0 // pred_check_branch
    %26 = sbr.rel (0) target = $region21
  $region20: #{lstm_model_forward.1} parent=0 // pred_region
    _
  $region21: #{lstm_model_forward.1} parent=0 // pred_fallthru
    _
  // Predicated region
  $region22: #{lstm_model_forward.1} parent=0 // pred_check
    _
  $region23: #{lstm_model_forward.1} parent=0 // pred_check_branch
    %28 = sbr.rel (0) target = $region25
  $region24: #{lstm_model_forward.1} parent=0 // pred_region
    _
  $region25: #{lstm_model_forward.1} parent=0 // pred_fallthru
    _
  // Predicated region
  $region26: #{lstm_model_forward.1} parent=0 // pred_check
    _
  $region27: #{lstm_model_forward.1} parent=0 // pred_check_branch
    %30 = sbr.rel (0) target = $region29
  $region28: #{lstm_model_forward.1} parent=0 // pred_region
    _
  $region29: #{lstm_model_forward.1} parent=0 // pred_fallthru
    _
  // Predicated region
  $region30: #{lstm_model_forward.1} parent=0 // pred_check
    _
  $region31: #{lstm_model_forward.1} parent=0 // pred_check_branch
    %32 = sbr.rel (0) target = $region33
  $region32: #{lstm_model_forward.1} parent=0 // pred_region
    _
  $region33: #{lstm_model_forward.1} parent=0 // pred_fallthru
    _
  // Predicated region
  $region34: #{lstm_model_forward.1} parent=0 // pred_check
    _
  $region35: #{lstm_model_forward.1} parent=0 // pred_check_branch
    %34 = sbr.rel (0) target = $region37
  $region36: #{lstm_model_forward.1} parent=0 // pred_region
    _
  $region37: #{lstm_model_forward.1} parent=0 // pred_fallthru
    _
  // Predicated region
  $region38: #{lstm_model_forward.1} parent=0 // pred_check
    _
  $region39: #{lstm_model_forward.1} parent=0 // pred_check_branch
    %36 = sbr.rel (0) target = $region41
  $region40: #{lstm_model_forward.1} parent=0 // pred_region
    _
  $region41: #{lstm_model_forward.1} parent=0 // pred_fallthru
    _
  // Predicated region
  $region42: #{lstm_model_forward.1} parent=0 // pred_check
    _
  $region43: #{lstm_model_forward.1} parent=0 // pred_check_branch
    %38 = sbr.rel (0) target = $region45
  $region44: #{lstm_model_forward.1} parent=0 // pred_region
    _
  $region45: #{lstm_model_forward.1} parent=0 // pred_fallthru
    _
  // Predicated region
  $region46: #{lstm_model_forward.1} parent=0 // pred_check
    _
  $region47: #{lstm_model_forward.1} parent=0 // pred_check_branch
    %40 = sbr.rel (0) target = $region49
  $region48: #{lstm_model_forward.1} parent=0 // pred_region
    _
  $region49: #{lstm_model_forward.1} parent=0 // pred_fallthru
    _
  %v42 = vld [vmem:[%s0] sm:$0xf]
  %v43 = vld [vmem:[%s0 + $0x4] sm:$0xf]
  %v44 = vld [vmem:[%s0 + $0x8] sm:$0xf]
  %v45 = vld [vmem:[%s0 + $0xc] sm:$0xf]
  %v46 = vld [vmem:[%s0 + $0x10] sm:$0xf]
  %v47 = vld [vmem:[%s0 + $0x14] sm:$0xf]
  %v48 = vld [vmem:[%s0 + $0x18] sm:$0xf]
  %v49 = vld [vmem:[%s0 + $0x1c] sm:$0xf]
  %v50 = vld [vmem:[%s1] sm:$0xf]
  %v51 = vld [vmem:[%s1 + $0x4] sm:$0xf]
  %v52 = vld [vmem:[%s1 + $0x8] sm:$0xf]
  %v53 = vld [vmem:[%s3] sm:$0x1]
  %v55 = vlaneseq
  %v56 = vshrl.u32 %v55, 7
  %v57 = vsub.s32 0, %v56
  %v58 = vrot.slane %v53, %v57
  %v68 = vunpack.c.l.b16 %v42
  %v69 = vunpack.c.l.b16 %v43
  %v70 = vunpack.c.l.b16 %v44
  %v71 = vunpack.c.l.b16 %v45
  %v72 = vunpack.c.l.b16 %v46
  %v73 = vunpack.c.l.b16 %v47
  %v74 = vunpack.c.l.b16 %v48
  %v75 = vunpack.c.l.b16 %v49
  %v76 = vpack.c.b16 %v69, %v68
  %v77 = vpack.c.b16 %v71, %v70
  %v78 = vpack.c.b16 %v73, %v72
  %v79 = vpack.c.b16 %v75, %v74
  %v83 = vunpack.c.l.b16 %v50
  %v84 = vunpack.c.l.b16 %v51
  %v85 = vunpack.c.l.b16 %v52
  %v86 = vpack.c.b16 %v84, %v83
  %v87 = vpack.c.b16 %v85, %v85
  %vm89 = vcmask 195584
  %v91 = vsel %vm89, %v76, 0
  %v94 = vsel %vm89, %v77, 0
  %v97 = vsel %vm89, %v78, 0
  %v100 = vsel %vm89, %v79, 0
  %vm102 = vcmask 1043456
  %v104 = vsel %vm102, %v87, 0
  %106 = vmatprep.subr.bf16.mxu0 0
  %107 = vmatpush1.bf16.msra.mxu0 0
  %108 = vmatprep.subr.bf16.mxu0 0
  %109 = vmatpush1.bf16.msra.mxu0 0
  %110 = vmatprep.subr.bf16.mxu0 0
  %111 = vmatpush1.bf16.msra.mxu0 0
  %112 = vmatprep.subr.bf16.mxu0 0
  %113 = vmatpush1.bf16.msra.mxu0 0
  %114 = vmatprep.subr.bf16.mxu0 0
  %115 = vmatpush1.bf16.msra.mxu0 0
  %116 = vmatprep.subr.bf16.mxu0 0
  %117 = vmatpush1.bf16.msra.mxu0 0
  %118 = vmatprep.subr.bf16.mxu0 0
  %119 = vmatpush1.bf16.msra.mxu0 %v104
  %120 = vmatprep.subr.bf16.mxu0 0
  %121 = vmatpush1.bf16.msra.mxu0 %v86
  %122 = vmatprep.subr.bf16.mxu0 0
  %123 = vmatpush2.bf16.msra.mxu0 0
  %124 = vmatprep.subr.bf16.mxu0 0
  %125 = vmatpush2.bf16.msra.mxu0 0
  %126 = vmatprep.subr.bf16.mxu0 0
  %127 = vmatpush2.bf16.msra.mxu0 0
  %128 = vmatprep.subr.bf16.mxu0 0
  %129 = vmatpush2.bf16.msra.mxu0 0
  %130 = vmatprep.subr.bf16.mxu0 0
  %131 = vmatpush2.bf16.msra.mxu0 0
  %132 = vmatprep.subr.bf16.mxu0 0
  %133 = vmatpush2.bf16.msra.mxu0 0
  %134 = vmatprep.subr.bf16.mxu0 0
  %135 = vmatpush2.bf16.msra.mxu0 0
  %136 = vmatprep.subr.bf16.mxu0 0
  %137 = vmatpush2.bf16.msra.mxu0 0
  %138 = vmatprep.mubr.bf16.mxu0 0
  %139 = vmatmul.mubr.bf16.gmra.mxu0 %v91
  %v140 = vpop.f32.mrf.mxu0
  %v141 = vadd.f32 %v58, %v140
  %v142 = vpop.f32.mrf.mxu0
  %v143 = vpop.f32.mrf.mxu0
  %v144 = vadd.f32 %v58, %v143
  %v145 = vpop.f32.mrf.mxu0
  %146 = vmatprep.mubr.bf16.mxu0 0
  %147 = vmatmul.mubr.bf16.gmra.mxu0 %v94
  %v148 = vpop.f32.mrf.mxu0
  %v149 = vadd.f32 %v58, %v148
  %v150 = vpop.f32.mrf.mxu0
  %v151 = vpop.f32.mrf.mxu0
  %v152 = vadd.f32 %v58, %v151
  %v153 = vpop.f32.mrf.mxu0
  %154 = vmatprep.mubr.bf16.mxu0 0
  %155 = vmatmul.mubr.bf16.gmra.mxu0 %v97
  %v156 = vpop.f32.mrf.mxu0
  %v157 = vadd.f32 %v58, %v156
  %v158 = vpop.f32.mrf.mxu0
  %v159 = vpop.f32.mrf.mxu0
  %v160 = vadd.f32 %v58, %v159
  %v161 = vpop.f32.mrf.mxu0
  %162 = vmatprep.mubr.bf16.mxu0 0
  %163 = vmatmul.mubr.bf16.gmra.mxu0 %v100
  %v164 = vpop.f32.mrf.mxu0
  %v165 = vadd.f32 %v58, %v164
  %v166 = vpop.f32.mrf.mxu0
  %v167 = vpop.f32.mrf.mxu0
  %v168 = vadd.f32 %v58, %v167
  %v169 = vpop.f32.mrf.mxu0
  %170 = vdwg.mxu0
  %171 = vst [vmem:[#allocation2] sm:$0xff] %v141
  %172 = vst [vmem:[#allocation2 + $0x8] sm:$0xff] %v144
  %173 = vst [vmem:[#allocation2 + $0x10] sm:$0xff] %v149
  %174 = vst [vmem:[#allocation2 + $0x18] sm:$0xff] %v152
  %175 = vst [vmem:[#allocation2 + $0x20] sm:$0xff] %v157
  %176 = vst [vmem:[#allocation2 + $0x28] sm:$0xff] %v160
  %177 = vst [vmem:[#allocation2 + $0x30] sm:$0xff] %v165
  %178 = vst [vmem:[#allocation2 + $0x38] sm:$0xff] %v168
  %v179 = vld [vmem:[%s4] sm:$0xf]
  %v180 = vld [vmem:[%s4 + $0x4] sm:$0xf]
  %v181 = vld [vmem:[%s4 + $0x8] sm:$0xf]
  %v182 = vld [vmem:[%s6] sm:$0x1]
  %v184 = vlaneseq
  %v185 = vshrl.u32 %v184, 7
  %v186 = vsub.s32 0, %v185
  %v187 = vrot.slane %v182, %v186
  %v192 = vunpack.c.l.b16 %v179
  %v193 = vunpack.c.l.b16 %v180
  %v194 = vunpack.c.l.b16 %v181
  %v195 = vpack.c.b16 %v193, %v192
  %v196 = vpack.c.b16 %v194, %v194
  %v199 = vsel %vm102, %v196, 0
  %201 = vmatprep.subr.bf16.mxu0 0
  %202 = vmatpush1.bf16.msra.mxu0 0
  %203 = vmatprep.subr.bf16.mxu0 0
  %204 = vmatpush1.bf16.msra.mxu0 0
  %205 = vmatprep.subr.bf16.mxu0 0
  %206 = vmatpush1.bf16.msra.mxu0 0
  %207 = vmatprep.subr.bf16.mxu0 0
  %208 = vmatpush1.bf16.msra.mxu0 0
  %209 = vmatprep.subr.bf16.mxu0 0
  %210 = vmatpush1.bf16.msra.mxu0 0
  %211 = vmatprep.subr.bf16.mxu0 0
  %212 = vmatpush1.bf16.msra.mxu0 0
  %213 = vmatprep.subr.bf16.mxu0 0
  %214 = vmatpush1.bf16.msra.mxu0 %v199
  %215 = vmatprep.subr.bf16.mxu0 0
  %216 = vmatpush1.bf16.msra.mxu0 %v195
  %217 = vmatprep.subr.bf16.mxu0 0
  %218 = vmatpush2.bf16.msra.mxu0 0
  %219 = vmatprep.subr.bf16.mxu0 0
  %220 = vmatpush2.bf16.msra.mxu0 0
  %221 = vmatprep.subr.bf16.mxu0 0
  %222 = vmatpush2.bf16.msra.mxu0 0
  %223 = vmatprep.subr.bf16.mxu0 0
  %224 = vmatpush2.bf16.msra.mxu0 0
  %225 = vmatprep.subr.bf16.mxu0 0
  %226 = vmatpush2.bf16.msra.mxu0 0
  %227 = vmatprep.subr.bf16.mxu0 0
  %228 = vmatpush2.bf16.msra.mxu0 0
  %229 = vmatprep.subr.bf16.mxu0 0
  %230 = vmatpush2.bf16.msra.mxu0 0
  %231 = vmatprep.subr.bf16.mxu0 0
  %232 = vmatpush2.bf16.msra.mxu0 0
  %233 = vmatprep.mubr.bf16.mxu0 0
  %234 = vmatmul.mubr.bf16.gmra.mxu0 %v91
  %v235 = vpop.f32.mrf.mxu0
  %v236 = vadd.f32 %v187, %v235
  %v237 = vpop.f32.mrf.mxu0
  %v238 = vpop.f32.mrf.mxu0
  %v239 = vadd.f32 %v187, %v238
  %v240 = vpop.f32.mrf.mxu0
  %241 = vmatprep.mubr.bf16.mxu0 0
  %242 = vmatmul.mubr.bf16.gmra.mxu0 %v94
  %v243 = vpop.f32.mrf.mxu0
  %v244 = vadd.f32 %v187, %v243
  %v245 = vpop.f32.mrf.mxu0
  %v246 = vpop.f32.mrf.mxu0
  %v247 = vadd.f32 %v187, %v246
  %v248 = vpop.f32.mrf.mxu0
  %249 = vmatprep.mubr.bf16.mxu0 0
  %250 = vmatmul.mubr.bf16.gmra.mxu0 %v97
  %v251 = vpop.f32.mrf.mxu0
  %v252 = vadd.f32 %v187, %v251
  %v253 = vpop.f32.mrf.mxu0
  %v254 = vpop.f32.mrf.mxu0
  %v255 = vadd.f32 %v187, %v254
  %v256 = vpop.f32.mrf.mxu0
  %257 = vmatprep.mubr.bf16.mxu0 0
  %258 = vmatmul.mubr.bf16.gmra.mxu0 %v100
  %v259 = vpop.f32.mrf.mxu0
  %v260 = vadd.f32 %v187, %v259
  %v261 = vpop.f32.mrf.mxu0
  %v262 = vpop.f32.mrf.mxu0
  %v263 = vadd.f32 %v187, %v262
  %v264 = vpop.f32.mrf.mxu0
  %265 = vdwg.mxu0
  %266 = vst [vmem:[#allocation3] sm:$0xff] %v236
  %267 = vst [vmem:[#allocation3 + $0x8] sm:$0xff] %v239
  %268 = vst [vmem:[#allocation3 + $0x10] sm:$0xff] %v244
  %269 = vst [vmem:[#allocation3 + $0x18] sm:$0xff] %v247
  %270 = vst [vmem:[#allocation3 + $0x20] sm:$0xff] %v252
  %271 = vst [vmem:[#allocation3 + $0x28] sm:$0xff] %v255
  %272 = vst [vmem:[#allocation3 + $0x30] sm:$0xff] %v260
  %273 = vst [vmem:[#allocation3 + $0x38] sm:$0xff] %v263
  %v274 = vld [vmem:[%s2] sm:$0xf]
  %v275 = vld [vmem:[%s2 + $0x4] sm:$0xf]
  %v276 = vld [vmem:[%s2 + $0x8] sm:$0xf]
  %v277 = vld [vmem:[%s2 + $0xc] sm:$0xf]
  %v278 = vld [vmem:[%s5] sm:$0xf]
  %v279 = vld [vmem:[%s5 + $0x4] sm:$0xf]
  %v280 = vld [vmem:[%s5 + $0x8] sm:$0xf]
  %v281 = vld [vmem:[%s5 + $0xc] sm:$0xf]
  %v282 = vlaneseq
  %v283 = vand.u32 %v282, 127
  %vm284 = vcmp.ge.s32.totalorder %v283, 64
  %vm285 = vcmp.lt.s32.totalorder %v283, 96
  %vm286 = vmand %vm284, %vm285
  %v287 = vld [vmem:[#allocation2] sm:$0xff]
  %v292 = vunpack.c.l.b16 %v274
  %v293 = vunpack.c.l.b16 %v275
  %v294 = vunpack.c.l.b16 %v276
  %v295 = vunpack.c.l.b16 %v277
  %v296 = vpack.c.b16 %v293, %v292
  %v297 = vpack.c.b16 %v295, %v294
  %vm300 = vcmask 261120
  %v302 = vsel %vm300, 0, 0
  %304 = vmatprep.subr.bf16.mxu0 0
  %305 = vmatpush1.bf16.msra.mxu0 0
  %306 = vmatprep.subr.bf16.mxu0 0
  %307 = vmatpush1.bf16.msra.mxu0 0
  %308 = vmatprep.subr.bf16.mxu0 0
  %309 = vmatpush1.bf16.msra.mxu0 0
  %310 = vmatprep.subr.bf16.mxu0 0
  %311 = vmatpush1.bf16.msra.mxu0 0
  %312 = vmatprep.subr.bf16.mxu0 0
  %313 = vmatpush1.bf16.msra.mxu0 0
  %314 = vmatprep.subr.bf16.mxu0 0
  %315 = vmatpush1.bf16.msra.mxu0 0
  %316 = vmatprep.subr.bf16.mxu0 0
  %317 = vmatpush1.bf16.msra.mxu0 %v297
  %318 = vmatprep.subr.bf16.mxu0 0
  %319 = vmatpush1.bf16.msra.mxu0 %v296
  %320 = vmatprep.subr.bf16.mxu0 0
  %321 = vmatpush2.bf16.msra.mxu0 0
  %322 = vmatprep.subr.bf16.mxu0 0
  %323 = vmatpush2.bf16.msra.mxu0 0
  %324 = vmatprep.subr.bf16.mxu0 0
  %325 = vmatpush2.bf16.msra.mxu0 0
  %326 = vmatprep.subr.bf16.mxu0 0
  %327 = vmatpush2.bf16.msra.mxu0 0
  %328 = vmatprep.subr.bf16.mxu0 0
  %329 = vmatpush2.bf16.msra.mxu0 0
  %330 = vmatprep.subr.bf16.mxu0 0
  %331 = vmatpush2.bf16.msra.mxu0 0
  %332 = vmatprep.subr.bf16.mxu0 0
  %333 = vmatpush2.bf16.msra.mxu0 0
  %334 = vmatprep.subr.bf16.mxu0 0
  %335 = vmatpush2.bf16.msra.mxu0 0
  %336 = vmatprep.mubr.bf16.mxu0 0
  %337 = vmatmul.mubr.bf16.gmra.mxu0 %v302
  %v338 = vpop.f32.mrf.mxu0
  %v339 = vadd.f32 0.0, %v338
  %v340 = vpop.f32.mrf.mxu0
  %v341 = vpop.f32.mrf.mxu0
  %v342 = vpop.f32.mrf.mxu0
  %343 = vdwg.mxu0
  %v344 = vadd.f32 %v287, %v339
  %s345 = scalar_lea.vmem [#allocation3], 56
  %v346 = vld [vmem:[%s345] sm:$0xff]
  %v351 = vunpack.c.l.b16 %v278
  %v352 = vunpack.c.l.b16 %v279
  %v353 = vunpack.c.l.b16 %v280
  %v354 = vunpack.c.l.b16 %v281
  %v355 = vpack.c.b16 %v352, %v351
  %v356 = vpack.c.b16 %v354, %v353
  %359 = vmatprep.subr.bf16.mxu0 0
  %360 = vmatpush1.bf16.msra.mxu0 0
  %361 = vmatprep.subr.bf16.mxu0 0
  %362 = vmatpush1.bf16.msra.mxu0 0
  %363 = vmatprep.subr.bf16.mxu0 0
  %364 = vmatpush1.bf16.msra.mxu0 0
  %365 = vmatprep.subr.bf16.mxu0 0
  %366 = vmatpush1.bf16.msra.mxu0 0
  %367 = vmatprep.subr.bf16.mxu0 0
  %368 = vmatpush1.bf16.msra.mxu0 0
  %369 = vmatprep.subr.bf16.mxu0 0
  %370 = vmatpush1.bf16.msra.mxu0 0
  %371 = vmatprep.subr.bf16.mxu0 0
  %372 = vmatpush1.bf16.msra.mxu0 %v356
  %373 = vmatprep.subr.bf16.mxu0 0
  %374 = vmatpush1.bf16.msra.mxu0 %v355
  %375 = vmatprep.subr.bf16.mxu0 0
  %376 = vmatpush2.bf16.msra.mxu0 0
  %377 = vmatprep.subr.bf16.mxu0 0
  %378 = vmatpush2.bf16.msra.mxu0 0
  %379 = vmatprep.subr.bf16.mxu0 0
  %380 = vmatpush2.bf16.msra.mxu0 0
  %381 = vmatprep.subr.bf16.mxu0 0
  %382 = vmatpush2.bf16.msra.mxu0 0
  %383 = vmatprep.subr.bf16.mxu0 0
  %384 = vmatpush2.bf16.msra.mxu0 0
  %385 = vmatprep.subr.bf16.mxu0 0
  %386 = vmatpush2.bf16.msra.mxu0 0
  %387 = vmatprep.subr.bf16.mxu0 0
  %388 = vmatpush2.bf16.msra.mxu0 0
  %389 = vmatprep.subr.bf16.mxu0 0
  %390 = vmatpush2.bf16.msra.mxu0 0
  %391 = vmatprep.mubr.bf16.mxu0 0
  %392 = vmatmul.mubr.bf16.gmra.mxu0 %v302
  %v393 = vpop.f32.mrf.mxu0
  %v394 = vadd.f32 0.0, %v393
  %v395 = vpop.f32.mrf.mxu0
  %v396 = vpop.f32.mrf.mxu0
  %v397 = vpop.f32.mrf.mxu0
  %398 = vdwg.mxu0
  %v399 = vadd.f32 %v346, %v394
  %v400 = vtanh.pop %v344
  %v401 = vxor.u32 %v344, 2147483648
  %v402 = vmul.f32 %v401, 1.442695
  %v403 = vpow.pop %v402
  %v404 = vadd.f32 %v403, 1.0
  %v405 = vrcp.pop %v404
  %v406 = vmul.f32 1.0, %v405
  %v407 = vsel %vm286, %v400, %v406
  %v408 = vmul.f32 %v407, 0.0
  %410 = vrot.lane.b32.xlu0 %v407, 64
  %v411 = vpop.permute.xlu0 %410
  %v413 = vmul.f32 %v407, %v411
  %415 = vrot.lane.b32.xlu0 %v413, 32
  %v416 = vpop.permute.xlu0 %415
  %v418 = vadd.f32 %v408, %v416
  %v419 = vtanh.pop %v418
  %421 = vrot.lane.b32.xlu0 %v419, 64
  %v422 = vpop.permute.xlu0 %421
  %v424 = vmul.f32 %v407, %v422
  %v425 = vtanh.pop %v399
  %v426 = vxor.u32 %v399, 2147483648
  %v427 = vmul.f32 %v426, 1.442695
  %v428 = vpow.pop %v427
  %v429 = vadd.f32 %v428, 1.0
  %v430 = vrcp.pop %v429
  %v431 = vmul.f32 1.0, %v430
  %v432 = vsel %vm286, %v425, %v431
  %v433 = vmul.f32 %v432, 0.0
  %435 = vrot.lane.b32.xlu0 %v432, 64
  %v436 = vpop.permute.xlu0 %435
  %v438 = vmul.f32 %v432, %v436
  %440 = vrot.lane.b32.xlu0 %v438, 32
  %v441 = vpop.permute.xlu0 %440
  %v443 = vadd.f32 %v433, %v441
  %v444 = vtanh.pop %v443
  %446 = vrot.lane.b32.xlu0 %v444, 64
  %v447 = vpop.permute.xlu0 %446
  %v449 = vmul.f32 %v432, %v447
  %451 = vrot.lane.b32.xlu0 %v424, 32
  %v452 = vpop.permute.xlu0 %451
  %454 = vst.msk [vmem:[#allocation4] sm:$0xff] %vm300, %v452
  %456 = vrot.lane.b32.xlu0 %v449, 32
  %v457 = vpop.permute.xlu0 %456
  %s459 = scalar_lea.vmem [#allocation5], 56
  %460 = vst.msk [vmem:[%s459] sm:$0xff] %vm300, %v457
  %s461 = scalar_lea.vmem [#allocation2], 8
  %v462 = vld [vmem:[%s461] sm:$0xff]
  %v463 = vpack.c.bf16 %v424, %v424
  %465 = vrot.lane.b32.xlu0 %v463, 32
  %v466 = vpop.permute.xlu0 %465
  %v468 = vsel %vm300, %v466, 0
  %470 = vmatprep.subr.bf16.mxu0 0
  %471 = vmatpush1.bf16.msra.mxu0 0
  %472 = vmatprep.subr.bf16.mxu0 0
  %473 = vmatpush1.bf16.msra.mxu0 0
  %474 = vmatprep.subr.bf16.mxu0 0
  %475 = vmatpush1.bf16.msra.mxu0 0
  %476 = vmatprep.subr.bf16.mxu0 0
  %477 = vmatpush1.bf16.msra.mxu0 0
  %478 = vmatprep.subr.bf16.mxu0 0
  %479 = vmatpush1.bf16.msra.mxu0 0
  %480 = vmatprep.subr.bf16.mxu0 0
  %481 = vmatpush1.bf16.msra.mxu0 0
  %482 = vmatprep.subr.bf16.mxu0 0
  %483 = vmatpush1.bf16.msra.mxu0 %v297
  %484 = vmatprep.subr.bf16.mxu0 0
  %485 = vmatpush1.bf16.msra.mxu0 %v296
  %486 = vmatprep.subr.bf16.mxu0 0
  %487 = vmatpush2.bf16.msra.mxu0 0
  %488 = vmatprep.subr.bf16.mxu0 0
  %489 = vmatpush2.bf16.msra.mxu0 0
  %490 = vmatprep.subr.bf16.mxu0 0
  %491 = vmatpush2.bf16.msra.mxu0 0
  %492 = vmatprep.subr.bf16.mxu0 0
  %493 = vmatpush2.bf16.msra.mxu0 0
  %494 = vmatprep.subr.bf16.mxu0 0
  %495 = vmatpush2.bf16.msra.mxu0 0
  %496 = vmatprep.subr.bf16.mxu0 0
  %497 = vmatpush2.bf16.msra.mxu0 0
  %498 = vmatprep.subr.bf16.mxu0 0
  %499 = vmatpush2.bf16.msra.mxu0 0
  %500 = vmatprep.subr.bf16.mxu0 0
  %501 = vmatpush2.bf16.msra.mxu0 0
  %502 = vmatprep.mubr.bf16.mxu0 0
  %503 = vmatmul.mubr.bf16.gmra.mxu0 %v468
  %v504 = vpop.f32.mrf.mxu0
  %v505 = vadd.f32 0.0, %v504
  %v506 = vpop.f32.mrf.mxu0
  %v507 = vpop.f32.mrf.mxu0
  %v508 = vpop.f32.mrf.mxu0
  %509 = vdwg.mxu0
  %v510 = vadd.f32 %v462, %v505
  %s511 = scalar_lea.vmem [#allocation3], 48
  %v512 = vld [vmem:[%s511] sm:$0xff]
  %v513 = vpack.c.bf16 %v449, %v449
  %515 = vrot.lane.b32.xlu0 %v513, 32
  %v516 = vpop.permute.xlu0 %515
  %v518 = vsel %vm300, %v516, 0
  %520 = vmatprep.subr.bf16.mxu0 0
  %521 = vmatpush1.bf16.msra.mxu0 0
  %522 = vmatprep.subr.bf16.mxu0 0
  %523 = vmatpush1.bf16.msra.mxu0 0
  %524 = vmatprep.subr.bf16.mxu0 0
  %525 = vmatpush1.bf16.msra.mxu0 0
  %526 = vmatprep.subr.bf16.mxu0 0
  %527 = vmatpush1.bf16.msra.mxu0 0
  %528 = vmatprep.subr.bf16.mxu0 0
  %529 = vmatpush1.bf16.msra.mxu0 0
  %530 = vmatprep.subr.bf16.mxu0 0
  %531 = vmatpush1.bf16.msra.mxu0 0
  %532 = vmatprep.subr.bf16.mxu0 0
  %533 = vmatpush1.bf16.msra.mxu0 %v356
  %534 = vmatprep.subr.bf16.mxu0 0
  %535 = vmatpush1.bf16.msra.mxu0 %v355
  %536 = vmatprep.subr.bf16.mxu0 0
  %537 = vmatpush2.bf16.msra.mxu0 0
  %538 = vmatprep.subr.bf16.mxu0 0
  %539 = vmatpush2.bf16.msra.mxu0 0
  %540 = vmatprep.subr.bf16.mxu0 0
  %541 = vmatpush2.bf16.msra.mxu0 0
  %542 = vmatprep.subr.bf16.mxu0 0
  %543 = vmatpush2.bf16.msra.mxu0 0
  %544 = vmatprep.subr.bf16.mxu0 0
  %545 = vmatpush2.bf16.msra.mxu0 0
  %546 = vmatprep.subr.bf16.mxu0 0
  %547 = vmatpush2.bf16.msra.mxu0 0
  %548 = vmatprep.subr.bf16.mxu0 0
  %549 = vmatpush2.bf16.msra.mxu0 0
  %550 = vmatprep.subr.bf16.mxu0 0
  %551 = vmatpush2.bf16.msra.mxu0 0
  %552 = vmatprep.mubr.bf16.mxu0 0
  %553 = vmatmul.mubr.bf16.gmra.mxu0 %v518
  %v554 = vpop.f32.mrf.mxu0
  %v555 = vadd.f32 0.0, %v554
  %v556 = vpop.f32.mrf.mxu0
  %v557 = vpop.f32.mrf.mxu0
  %v558 = vpop.f32.mrf.mxu0
  %559 = vdwg.mxu0
  %v560 = vadd.f32 %v512, %v555
  %v561 = vtanh.pop %v510
  %v562 = vxor.u32 %v510, 2147483648
  %v563 = vmul.f32 %v562, 1.442695
  %v564 = vpow.pop %v563
  %v565 = vadd.f32 %v564, 1.0
  %v566 = vrcp.pop %v565
  %v567 = vmul.f32 1.0, %v566
  %v568 = vsel %vm286, %v561, %v567
  %v569 = vmul.f32 %v568, %v418
  %571 = vrot.lane.b32.xlu0 %v568, 64
  %v572 = vpop.permute.xlu0 %571
  %v574 = vmul.f32 %v568, %v572
  %576 = vrot.lane.b32.xlu0 %v574, 32
  %v577 = vpop.permute.xlu0 %576
  %v579 = vadd.f32 %v569, %v577
  %v580 = vtanh.pop %v579
  %582 = vrot.lane.b32.xlu0 %v580, 64
  %v583 = vpop.permute.xlu0 %582
  %v585 = vmul.f32 %v568, %v583
  %v586 = vtanh.pop %v560
  %v587 = vxor.u32 %v560, 2147483648
  %v588 = vmul.f32 %v587, 1.442695
  %v589 = vpow.pop %v588
  %v590 = vadd.f32 %v589, 1.0
  %v591 = vrcp.pop %v590
  %v592 = vmul.f32 1.0, %v591
  %v593 = vsel %vm286, %v586, %v592
  %v594 = vmul.f32 %v593, %v443
  %596 = vrot.lane.b32.xlu0 %v593, 64
  %v597 = vpop.permute.xlu0 %596
  %v599 = vmul.f32 %v593, %v597
  %601 = vrot.lane.b32.xlu0 %v599, 32
  %v602 = vpop.permute.xlu0 %601
  %v604 = vadd.f32 %v594, %v602
  %v605 = vtanh.pop %v604
  %607 = vrot.lane.b32.xlu0 %v605, 64
  %v608 = vpop.permute.xlu0 %607
  %v610 = vmul.f32 %v593, %v608
  %612 = vrot.lane.b32.xlu0 %v585, 32
  %v613 = vpop.permute.xlu0 %612
  %s615 = scalar_lea.vmem [#allocation4], 8
  %616 = vst.msk [vmem:[%s615] sm:$0xff] %vm300, %v613
  %618 = vrot.lane.b32.xlu0 %v610, 32
  %v619 = vpop.permute.xlu0 %618
  %s621 = scalar_lea.vmem [#allocation5], 48
  %622 = vst.msk [vmem:[%s621] sm:$0xff] %vm300, %v619
  %s623 = scalar_lea.vmem [#allocation2], 16
  %v624 = vld [vmem:[%s623] sm:$0xff]
  %v625 = vpack.c.bf16 %v585, %v585
  %627 = vrot.lane.b32.xlu0 %v625, 32
  %v628 = vpop.permute.xlu0 %627
  %v630 = vsel %vm300, %v628, 0
  %632 = vmatprep.subr.bf16.mxu0 0
  %633 = vmatpush1.bf16.msra.mxu0 0
  %634 = vmatprep.subr.bf16.mxu0 0
  %635 = vmatpush1.bf16.msra.mxu0 0
  %636 = vmatprep.subr.bf16.mxu0 0
  %637 = vmatpush1.bf16.msra.mxu0 0
  %638 = vmatprep.subr.bf16.mxu0 0
  %639 = vmatpush1.bf16.msra.mxu0 0
  %640 = vmatprep.subr.bf16.mxu0 0
  %641 = vmatpush1.bf16.msra.mxu0 0
  %642 = vmatprep.subr.bf16.mxu0 0
  %643 = vmatpush1.bf16.msra.mxu0 0
  %644 = vmatprep.subr.bf16.mxu0 0
  %645 = vmatpush1.bf16.msra.mxu0 %v297
  %646 = vmatprep.subr.bf16.mxu0 0
  %647 = vmatpush1.bf16.msra.mxu0 %v296
  %648 = vmatprep.subr.bf16.mxu0 0
  %649 = vmatpush2.bf16.msra.mxu0 0
  %650 = vmatprep.subr.bf16.mxu0 0
  %651 = vmatpush2.bf16.msra.mxu0 0
  %652 = vmatprep.subr.bf16.mxu0 0
  %653 = vmatpush2.bf16.msra.mxu0 0
  %654 = vmatprep.subr.bf16.mxu0 0
  %655 = vmatpush2.bf16.msra.mxu0 0
  %656 = vmatprep.subr.bf16.mxu0 0
  %657 = vmatpush2.bf16.msra.mxu0 0
  %658 = vmatprep.subr.bf16.mxu0 0
  %659 = vmatpush2.bf16.msra.mxu0 0
  %660 = vmatprep.subr.bf16.mxu0 0
  %661 = vmatpush2.bf16.msra.mxu0 0
  %662 = vmatprep.subr.bf16.mxu0 0
  %663 = vmatpush2.bf16.msra.mxu0 0
  %664 = vmatprep.mubr.bf16.mxu0 0
  %665 = vmatmul.mubr.bf16.gmra.mxu0 %v630
  %v666 = vpop.f32.mrf.mxu0
  %v667 = vadd.f32 0.0, %v666
  %v668 = vpop.f32.mrf.mxu0
  %v669 = vpop.f32.mrf.mxu0
  %v670 = vpop.f32.mrf.mxu0
  %671 = vdwg.mxu0
  %v672 = vadd.f32 %v624, %v667
  %s673 = scalar_lea.vmem [#allocation3], 40
  %v674 = vld [vmem:[%s673] sm:$0xff]
  %v675 = vpack.c.bf16 %v610, %v610
  %677 = vrot.lane.b32.xlu0 %v675, 32
  %v678 = vpop.permute.xlu0 %677
  %v680 = vsel %vm300, %v678, 0
  %682 = vmatprep.subr.bf16.mxu0 0
  %683 = vmatpush1.bf16.msra.mxu0 0
  %684 = vmatprep.subr.bf16.mxu0 0
  %685 = vmatpush1.bf16.msra.mxu0 0
  %686 = vmatprep.subr.bf16.mxu0 0
  %687 = vmatpush1.bf16.msra.mxu0 0
  %688 = vmatprep.subr.bf16.mxu0 0
  %689 = vmatpush1.bf16.msra.mxu0 0
  %690 = vmatprep.subr.bf16.mxu0 0
  %691 = vmatpush1.bf16.msra.mxu0 0
  %692 = vmatprep.subr.bf16.mxu0 0
  %693 = vmatpush1.bf16.msra.mxu0 0
  %694 = vmatprep.subr.bf16.mxu0 0
  %695 = vmatpush1.bf16.msra.mxu0 %v356
  %696 = vmatprep.subr.bf16.mxu0 0
  %697 = vmatpush1.bf16.msra.mxu0 %v355
  %698 = vmatprep.subr.bf16.mxu0 0
  %699 = vmatpush2.bf16.msra.mxu0 0
  %700 = vmatprep.subr.bf16.mxu0 0
  %701 = vmatpush2.bf16.msra.mxu0 0
  %702 = vmatprep.subr.bf16.mxu0 0
  %703 = vmatpush2.bf16.msra.mxu0 0
  %704 = vmatprep.subr.bf16.mxu0 0
  %705 = vmatpush2.bf16.msra.mxu0 0
  %706 = vmatprep.subr.bf16.mxu0 0
  %707 = vmatpush2.bf16.msra.mxu0 0
  %708 = vmatprep.subr.bf16.mxu0 0
  %709 = vmatpush2.bf16.msra.mxu0 0
  %710 = vmatprep.subr.bf16.mxu0 0
  %711 = vmatpush2.bf16.msra.mxu0 0
  %712 = vmatprep.subr.bf16.mxu0 0
  %713 = vmatpush2.bf16.msra.mxu0 0
  %714 = vmatprep.mubr.bf16.mxu0 0
  %715 = vmatmul.mubr.bf16.gmra.mxu0 %v680
  %v716 = vpop.f32.mrf.mxu0
  %v717 = vadd.f32 0.0, %v716
  %v718 = vpop.f32.mrf.mxu0
  %v719 = vpop.f32.mrf.mxu0
  %v720 = vpop.f32.mrf.mxu0
  %721 = vdwg.mxu0
  %v722 = vadd.f32 %v674, %v717
  %v723 = vtanh.pop %v672
  %v724 = vxor.u32 %v672, 2147483648
  %v725 = vmul.f32 %v724, 1.442695
  %v726 = vpow.pop %v725
  %v727 = vadd.f32 %v726, 1.0
  %v728 = vrcp.pop %v727
  %v729 = vmul.f32 1.0, %v728
  %v730 = vsel %vm286, %v723, %v729
  %v731 = vmul.f32 %v730, %v579
  %733 = vrot.lane.b32.xlu0 %v730, 64
  %v734 = vpop.permute.xlu0 %733
  %v736 = vmul.f32 %v730, %v734
  %738 = vrot.lane.b32.xlu0 %v736, 32
  %v739 = vpop.permute.xlu0 %738
  %v741 = vadd.f32 %v731, %v739
  %v742 = vtanh.pop %v741
  %744 = vrot.lane.b32.xlu0 %v742, 64
  %v745 = vpop.permute.xlu0 %744
  %v747 = vmul.f32 %v730, %v745
  %v748 = vtanh.pop %v722
  %v749 = vxor.u32 %v722, 2147483648
  %v750 = vmul.f32 %v749, 1.442695
  %v751 = vpow.pop %v750
  %v752 = vadd.f32 %v751, 1.0
  %v753 = vrcp.pop %v752
  %v754 = vmul.f32 1.0, %v753
  %v755 = vsel %vm286, %v748, %v754
  %v756 = vmul.f32 %v755, %v604
  %758 = vrot.lane.b32.xlu0 %v755, 64
  %v759 = vpop.permute.xlu0 %758
  %v761 = vmul.f32 %v755, %v759
  %763 = vrot.lane.b32.xlu0 %v761, 32
  %v764 = vpop.permute.xlu0 %763
  %v766 = vadd.f32 %v756, %v764
  %v767 = vtanh.pop %v766
  %769 = vrot.lane.b32.xlu0 %v767, 64
  %v770 = vpop.permute.xlu0 %769
  %v772 = vmul.f32 %v755, %v770
  %774 = vrot.lane.b32.xlu0 %v747, 32
  %v775 = vpop.permute.xlu0 %774
  %s777 = scalar_lea.vmem [#allocation4], 16
  %778 = vst.msk [vmem:[%s777] sm:$0xff] %vm300, %v775
  %780 = vrot.lane.b32.xlu0 %v772, 32
  %v781 = vpop.permute.xlu0 %780
  %s783 = scalar_lea.vmem [#allocation5], 40
  %784 = vst.msk [vmem:[%s783] sm:$0xff] %vm300, %v781
  %s785 = scalar_lea.vmem [#allocation2], 24
  %v786 = vld [vmem:[%s785] sm:$0xff]
  %v787 = vpack.c.bf16 %v747, %v747
  %789 = vrot.lane.b32.xlu0 %v787, 32
  %v790 = vpop.permute.xlu0 %789
  %v792 = vsel %vm300, %v790, 0
  %794 = vmatprep.subr.bf16.mxu0 0
  %795 = vmatpush1.bf16.msra.mxu0 0
  %796 = vmatprep.subr.bf16.mxu0 0
  %797 = vmatpush1.bf16.msra.mxu0 0
  %798 = vmatprep.subr.bf16.mxu0 0
  %799 = vmatpush1.bf16.msra.mxu0 0
  %800 = vmatprep.subr.bf16.mxu0 0
  %801 = vmatpush1.bf16.msra.mxu0 0
  %802 = vmatprep.subr.bf16.mxu0 0
  %803 = vmatpush1.bf16.msra.mxu0 0
  %804 = vmatprep.subr.bf16.mxu0 0
  %805 = vmatpush1.bf16.msra.mxu0 0
  %806 = vmatprep.subr.bf16.mxu0 0
  %807 = vmatpush1.bf16.msra.mxu0 %v297
  %808 = vmatprep.subr.bf16.mxu0 0
  %809 = vmatpush1.bf16.msra.mxu0 %v296
  %810 = vmatprep.subr.bf16.mxu0 0
  %811 = vmatpush2.bf16.msra.mxu0 0
  %812 = vmatprep.subr.bf16.mxu0 0
  %813 = vmatpush2.bf16.msra.mxu0 0
  %814 = vmatprep.subr.bf16.mxu0 0
  %815 = vmatpush2.bf16.msra.mxu0 0
  %816 = vmatprep.subr.bf16.mxu0 0
  %817 = vmatpush2.bf16.msra.mxu0 0
  %818 = vmatprep.subr.bf16.mxu0 0
  %819 = vmatpush2.bf16.msra.mxu0 0
  %820 = vmatprep.subr.bf16.mxu0 0
  %821 = vmatpush2.bf16.msra.mxu0 0
  %822 = vmatprep.subr.bf16.mxu0 0
  %823 = vmatpush2.bf16.msra.mxu0 0
  %824 = vmatprep.subr.bf16.mxu0 0
  %825 = vmatpush2.bf16.msra.mxu0 0
  %826 = vmatprep.mubr.bf16.mxu0 0
  %827 = vmatmul.mubr.bf16.gmra.mxu0 %v792
  %v828 = vpop.f32.mrf.mxu0
  %v829 = vadd.f32 0.0, %v828
  %v830 = vpop.f32.mrf.mxu0
  %v831 = vpop.f32.mrf.mxu0
  %v832 = vpop.f32.mrf.mxu0
  %833 = vdwg.mxu0
  %v834 = vadd.f32 %v786, %v829
  %s835 = scalar_lea.vmem [#allocation3], 32
  %v836 = vld [vmem:[%s835] sm:$0xff]
  %v837 = vpack.c.bf16 %v772, %v772
  %839 = vrot.lane.b32.xlu0 %v837, 32
  %v840 = vpop.permute.xlu0 %839
  %v842 = vsel %vm300, %v840, 0
  %844 = vmatprep.subr.bf16.mxu0 0
  %845 = vmatpush1.bf16.msra.mxu0 0
  %846 = vmatprep.subr.bf16.mxu0 0
  %847 = vmatpush1.bf16.msra.mxu0 0
  %848 = vmatprep.subr.bf16.mxu0 0
  %849 = vmatpush1.bf16.msra.mxu0 0
  %850 = vmatprep.subr.bf16.mxu0 0
  %851 = vmatpush1.bf16.msra.mxu0 0
  %852 = vmatprep.subr.bf16.mxu0 0
  %853 = vmatpush1.bf16.msra.mxu0 0
  %854 = vmatprep.subr.bf16.mxu0 0
  %855 = vmatpush1.bf16.msra.mxu0 0
  %856 = vmatprep.subr.bf16.mxu0 0
  %857 = vmatpush1.bf16.msra.mxu0 %v356
  %858 = vmatprep.subr.bf16.mxu0 0
  %859 = vmatpush1.bf16.msra.mxu0 %v355
  %860 = vmatprep.subr.bf16.mxu0 0
  %861 = vmatpush2.bf16.msra.mxu0 0
  %862 = vmatprep.subr.bf16.mxu0 0
  %863 = vmatpush2.bf16.msra.mxu0 0
  %864 = vmatprep.subr.bf16.mxu0 0
  %865 = vmatpush2.bf16.msra.mxu0 0
  %866 = vmatprep.subr.bf16.mxu0 0
  %867 = vmatpush2.bf16.msra.mxu0 0
  %868 = vmatprep.subr.bf16.mxu0 0
  %869 = vmatpush2.bf16.msra.mxu0 0
  %870 = vmatprep.subr.bf16.mxu0 0
  %871 = vmatpush2.bf16.msra.mxu0 0
  %872 = vmatprep.subr.bf16.mxu0 0
  %873 = vmatpush2.bf16.msra.mxu0 0
  %874 = vmatprep.subr.bf16.mxu0 0
  %875 = vmatpush2.bf16.msra.mxu0 0
  %876 = vmatprep.mubr.bf16.mxu0 0
  %877 = vmatmul.mubr.bf16.gmra.mxu0 %v842
  %v878 = vpop.f32.mrf.mxu0
  %v879 = vadd.f32 0.0, %v878
  %v880 = vpop.f32.mrf.mxu0
  %v881 = vpop.f32.mrf.mxu0
  %v882 = vpop.f32.mrf.mxu0
  %883 = vdwg.mxu0
  %v884 = vadd.f32 %v836, %v879
  %v885 = vtanh.pop %v834
  %v886 = vxor.u32 %v834, 2147483648
  %v887 = vmul.f32 %v886, 1.442695
  %v888 = vpow.pop %v887
  %v889 = vadd.f32 %v888, 1.0
  %v890 = vrcp.pop %v889
  %v891 = vmul.f32 1.0, %v890
  %v892 = vsel %vm286, %v885, %v891
  %v893 = vmul.f32 %v892, %v741
  %895 = vrot.lane.b32.xlu0 %v892, 64
  %v896 = vpop.permute.xlu0 %895
  %v898 = vmul.f32 %v892, %v896
  %900 = vrot.lane.b32.xlu0 %v898, 32
  %v901 = vpop.permute.xlu0 %900
  %v903 = vadd.f32 %v893, %v901
  %v904 = vtanh.pop %v903
  %906 = vrot.lane.b32.xlu0 %v904, 64
  %v907 = vpop.permute.xlu0 %906
  %v909 = vmul.f32 %v892, %v907
  %v910 = vtanh.pop %v884
  %v911 = vxor.u32 %v884, 2147483648
  %v912 = vmul.f32 %v911, 1.442695
  %v913 = vpow.pop %v912
  %v914 = vadd.f32 %v913, 1.0
  %v915 = vrcp.pop %v914
  %v916 = vmul.f32 1.0, %v915
  %v917 = vsel %vm286, %v910, %v916
  %v918 = vmul.f32 %v917, %v766
  %920 = vrot.lane.b32.xlu0 %v917, 64
  %v921 = vpop.permute.xlu0 %920
  %v923 = vmul.f32 %v917, %v921
  %925 = vrot.lane.b32.xlu0 %v923, 32
  %v926 = vpop.permute.xlu0 %925
  %v928 = vadd.f32 %v918, %v926
  %v929 = vtanh.pop %v928
  %931 = vrot.lane.b32.xlu0 %v929, 64
  %v932 = vpop.permute.xlu0 %931
  %v934 = vmul.f32 %v917, %v932
  %936 = vrot.lane.b32.xlu0 %v909, 32
  %v937 = vpop.permute.xlu0 %936
  %s939 = scalar_lea.vmem [#allocation4], 24
  %940 = vst.msk [vmem:[%s939] sm:$0xff] %vm300, %v937
  %942 = vrot.lane.b32.xlu0 %v934, 32
  %v943 = vpop.permute.xlu0 %942
  %s945 = scalar_lea.vmem [#allocation5], 32
  %946 = vst.msk [vmem:[%s945] sm:$0xff] %vm300, %v943
  %s947 = scalar_lea.vmem [#allocation2], 32
  %v948 = vld [vmem:[%s947] sm:$0xff]
  %v949 = vpack.c.bf16 %v909, %v909
  %951 = vrot.lane.b32.xlu0 %v949, 32
  %v952 = vpop.permute.xlu0 %951
  %v954 = vsel %vm300, %v952, 0
  %956 = vmatprep.subr.bf16.mxu0 0
  %957 = vmatpush1.bf16.msra.mxu0 0
  %958 = vmatprep.subr.bf16.mxu0 0
  %959 = vmatpush1.bf16.msra.mxu0 0
  %960 = vmatprep.subr.bf16.mxu0 0
  %961 = vmatpush1.bf16.msra.mxu0 0
  %962 = vmatprep.subr.bf16.mxu0 0
  %963 = vmatpush1.bf16.msra.mxu0 0
  %964 = vmatprep.subr.bf16.mxu0 0
  %965 = vmatpush1.bf16.msra.mxu0 0
  %966 = vmatprep.subr.bf16.mxu0 0
  %967 = vmatpush1.bf16.msra.mxu0 0
  %968 = vmatprep.subr.bf16.mxu0 0
  %969 = vmatpush1.bf16.msra.mxu0 %v297
  %970 = vmatprep.subr.bf16.mxu0 0
  %971 = vmatpush1.bf16.msra.mxu0 %v296
  %972 = vmatprep.subr.bf16.mxu0 0
  %973 = vmatpush2.bf16.msra.mxu0 0
  %974 = vmatprep.subr.bf16.mxu0 0
  %975 = vmatpush2.bf16.msra.mxu0 0
  %976 = vmatprep.subr.bf16.mxu0 0
  %977 = vmatpush2.bf16.msra.mxu0 0
  %978 = vmatprep.subr.bf16.mxu0 0
  %979 = vmatpush2.bf16.msra.mxu0 0
  %980 = vmatprep.subr.bf16.mxu0 0
  %981 = vmatpush2.bf16.msra.mxu0 0
  %982 = vmatprep.subr.bf16.mxu0 0
  %983 = vmatpush2.bf16.msra.mxu0 0
  %984 = vmatprep.subr.bf16.mxu0 0
  %985 = vmatpush2.bf16.msra.mxu0 0
  %986 = vmatprep.subr.bf16.mxu0 0
  %987 = vmatpush2.bf16.msra.mxu0 0
  %988 = vmatprep.mubr.bf16.mxu0 0
  %989 = vmatmul.mubr.bf16.gmra.mxu0 %v954
  %v990 = vpop.f32.mrf.mxu0
  %v991 = vadd.f32 0.0, %v990
  %v992 = vpop.f32.mrf.mxu0
  %v993 = vpop.f32.mrf.mxu0
  %v994 = vpop.f32.mrf.mxu0
  %995 = vdwg.mxu0
  %v996 = vadd.f32 %v948, %v991
  %s997 = scalar_lea.vmem [#allocation3], 24
  %v998 = vld [vmem:[%s997] sm:$0xff]
  %v999 = vpack.c.bf16 %v934, %v934
  %1001 = vrot.lane.b32.xlu0 %v999, 32
  %v1002 = vpop.permute.xlu0 %1001
  %v1004 = vsel %vm300, %v1002, 0
  %1006 = vmatprep.subr.bf16.mxu0 0
  %1007 = vmatpush1.bf16.msra.mxu0 0
  %1008 = vmatprep.subr.bf16.mxu0 0
  %1009 = vmatpush1.bf16.msra.mxu0 0
  %1010 = vmatprep.subr.bf16.mxu0 0
  %1011 = vmatpush1.bf16.msra.mxu0 0
  %1012 = vmatprep.subr.bf16.mxu0 0
  %1013 = vmatpush1.bf16.msra.mxu0 0
  %1014 = vmatprep.subr.bf16.mxu0 0
  %1015 = vmatpush1.bf16.msra.mxu0 0
  %1016 = vmatprep.subr.bf16.mxu0 0
  %1017 = vmatpush1.bf16.msra.mxu0 0
  %1018 = vmatprep.subr.bf16.mxu0 0
  %1019 = vmatpush1.bf16.msra.mxu0 %v356
  %1020 = vmatprep.subr.bf16.mxu0 0
  %1021 = vmatpush1.bf16.msra.mxu0 %v355
  %1022 = vmatprep.subr.bf16.mxu0 0
  %1023 = vmatpush2.bf16.msra.mxu0 0
  %1024 = vmatprep.subr.bf16.mxu0 0
  %1025 = vmatpush2.bf16.msra.mxu0 0
  %1026 = vmatprep.subr.bf16.mxu0 0
  %1027 = vmatpush2.bf16.msra.mxu0 0
  %1028 = vmatprep.subr.bf16.mxu0 0
  %1029 = vmatpush2.bf16.msra.mxu0 0
  %1030 = vmatprep.subr.bf16.mxu0 0
  %1031 = vmatpush2.bf16.msra.mxu0 0
  %1032 = vmatprep.subr.bf16.mxu0 0
  %1033 = vmatpush2.bf16.msra.mxu0 0
  %1034 = vmatprep.subr.bf16.mxu0 0
  %1035 = vmatpush2.bf16.msra.mxu0 0
  %1036 = vmatprep.subr.bf16.mxu0 0
  %1037 = vmatpush2.bf16.msra.mxu0 0
  %1038 = vmatprep.mubr.bf16.mxu0 0
  %1039 = vmatmul.mubr.bf16.gmra.mxu0 %v1004
  %v1040 = vpop.f32.mrf.mxu0
  %v1041 = vadd.f32 0.0, %v1040
  %v1042 = vpop.f32.mrf.mxu0
  %v1043 = vpop.f32.mrf.mxu0
  %v1044 = vpop.f32.mrf.mxu0
  %1045 = vdwg.mxu0
  %v1046 = vadd.f32 %v998, %v1041
  %v1047 = vtanh.pop %v996
  %v1048 = vxor.u32 %v996, 2147483648
  %v1049 = vmul.f32 %v1048, 1.442695
  %v1050 = vpow.pop %v1049
  %v1051 = vadd.f32 %v1050, 1.0
  %v1052 = vrcp.pop %v1051
  %v1053 = vmul.f32 1.0, %v1052
  %v1054 = vsel %vm286, %v1047, %v1053
  %v1055 = vmul.f32 %v1054, %v903
  %1057 = vrot.lane.b32.xlu0 %v1054, 64
  %v1058 = vpop.permute.xlu0 %1057
  %v1060 = vmul.f32 %v1054, %v1058
  %1062 = vrot.lane.b32.xlu0 %v1060, 32
  %v1063 = vpop.permute.xlu0 %1062
  %v1065 = vadd.f32 %v1055, %v1063
  %v1066 = vtanh.pop %v1065
  %1068 = vrot.lane.b32.xlu0 %v1066, 64
  %v1069 = vpop.permute.xlu0 %1068
  %v1071 = vmul.f32 %v1054, %v1069
  %v1072 = vtanh.pop %v1046
  %v1073 = vxor.u32 %v1046, 2147483648
  %v1074 = vmul.f32 %v1073, 1.442695
  %v1075 = vpow.pop %v1074
  %v1076 = vadd.f32 %v1075, 1.0
  %v1077 = vrcp.pop %v1076
  %v1078 = vmul.f32 1.0, %v1077
  %v1079 = vsel %vm286, %v1072, %v1078
  %v1080 = vmul.f32 %v1079, %v928
  %1082 = vrot.lane.b32.xlu0 %v1079, 64
  %v1083 = vpop.permute.xlu0 %1082
  %v1085 = vmul.f32 %v1079, %v1083
  %1087 = vrot.lane.b32.xlu0 %v1085, 32
  %v1088 = vpop.permute.xlu0 %1087
  %v1090 = vadd.f32 %v1080, %v1088
  %v1091 = vtanh.pop %v1090
  %1093 = vrot.lane.b32.xlu0 %v1091, 64
  %v1094 = vpop.permute.xlu0 %1093
  %v1096 = vmul.f32 %v1079, %v1094
  %1098 = vrot.lane.b32.xlu0 %v1071, 32
  %v1099 = vpop.permute.xlu0 %1098
  %s1101 = scalar_lea.vmem [#allocation4], 32
  %1102 = vst.msk [vmem:[%s1101] sm:$0xff] %vm300, %v1099
  %1104 = vrot.lane.b32.xlu0 %v1096, 32
  %v1105 = vpop.permute.xlu0 %1104
  %s1107 = scalar_lea.vmem [#allocation5], 24
  %1108 = vst.msk [vmem:[%s1107] sm:$0xff] %vm300, %v1105
  %s1109 = scalar_lea.vmem [#allocation2], 40
  %v1110 = vld [vmem:[%s1109] sm:$0xff]
  %v1111 = vpack.c.bf16 %v1071, %v1071
  %1113 = vrot.lane.b32.xlu0 %v1111, 32
  %v1114 = vpop.permute.xlu0 %1113
  %v1116 = vsel %vm300, %v1114, 0
  %1118 = vmatprep.subr.bf16.mxu0 0
  %1119 = vmatpush1.bf16.msra.mxu0 0
  %1120 = vmatprep.subr.bf16.mxu0 0
  %1121 = vmatpush1.bf16.msra.mxu0 0
  %1122 = vmatprep.subr.bf16.mxu0 0
  %1123 = vmatpush1.bf16.msra.mxu0 0
  %1124 = vmatprep.subr.bf16.mxu0 0
  %1125 = vmatpush1.bf16.msra.mxu0 0
  %1126 = vmatprep.subr.bf16.mxu0 0
  %1127 = vmatpush1.bf16.msra.mxu0 0
  %1128 = vmatprep.subr.bf16.mxu0 0
  %1129 = vmatpush1.bf16.msra.mxu0 0
  %1130 = vmatprep.subr.bf16.mxu0 0
  %1131 = vmatpush1.bf16.msra.mxu0 %v297
  %1132 = vmatprep.subr.bf16.mxu0 0
  %1133 = vmatpush1.bf16.msra.mxu0 %v296
  %1134 = vmatprep.subr.bf16.mxu0 0
  %1135 = vmatpush2.bf16.msra.mxu0 0
  %1136 = vmatprep.subr.bf16.mxu0 0
  %1137 = vmatpush2.bf16.msra.mxu0 0
  %1138 = vmatprep.subr.bf16.mxu0 0
  %1139 = vmatpush2.bf16.msra.mxu0 0
  %1140 = vmatprep.subr.bf16.mxu0 0
  %1141 = vmatpush2.bf16.msra.mxu0 0
  %1142 = vmatprep.subr.bf16.mxu0 0
  %1143 = vmatpush2.bf16.msra.mxu0 0
  %1144 = vmatprep.subr.bf16.mxu0 0
  %1145 = vmatpush2.bf16.msra.mxu0 0
  %1146 = vmatprep.subr.bf16.mxu0 0
  %1147 = vmatpush2.bf16.msra.mxu0 0
  %1148 = vmatprep.subr.bf16.mxu0 0
  %1149 = vmatpush2.bf16.msra.mxu0 0
  %1150 = vmatprep.mubr.bf16.mxu0 0
  %1151 = vmatmul.mubr.bf16.gmra.mxu0 %v1116
  %v1152 = vpop.f32.mrf.mxu0
  %v1153 = vadd.f32 0.0, %v1152
  %v1154 = vpop.f32.mrf.mxu0
  %v1155 = vpop.f32.mrf.mxu0
  %v1156 = vpop.f32.mrf.mxu0
  %1157 = vdwg.mxu0
  %v1158 = vadd.f32 %v1110, %v1153
  %s1159 = scalar_lea.vmem [#allocation3], 16
  %v1160 = vld [vmem:[%s1159] sm:$0xff]
  %v1161 = vpack.c.bf16 %v1096, %v1096
  %1163 = vrot.lane.b32.xlu0 %v1161, 32
  %v1164 = vpop.permute.xlu0 %1163
  %v1166 = vsel %vm300, %v1164, 0
  %1168 = vmatprep.subr.bf16.mxu0 0
  %1169 = vmatpush1.bf16.msra.mxu0 0
  %1170 = vmatprep.subr.bf16.mxu0 0
  %1171 = vmatpush1.bf16.msra.mxu0 0
  %1172 = vmatprep.subr.bf16.mxu0 0
  %1173 = vmatpush1.bf16.msra.mxu0 0
  %1174 = vmatprep.subr.bf16.mxu0 0
  %1175 = vmatpush1.bf16.msra.mxu0 0
  %1176 = vmatprep.subr.bf16.mxu0 0
  %1177 = vmatpush1.bf16.msra.mxu0 0
  %1178 = vmatprep.subr.bf16.mxu0 0
  %1179 = vmatpush1.bf16.msra.mxu0 0
  %1180 = vmatprep.subr.bf16.mxu0 0
  %1181 = vmatpush1.bf16.msra.mxu0 %v356
  %1182 = vmatprep.subr.bf16.mxu0 0
  %1183 = vmatpush1.bf16.msra.mxu0 %v355
  %1184 = vmatprep.subr.bf16.mxu0 0
  %1185 = vmatpush2.bf16.msra.mxu0 0
  %1186 = vmatprep.subr.bf16.mxu0 0
  %1187 = vmatpush2.bf16.msra.mxu0 0
  %1188 = vmatprep.subr.bf16.mxu0 0
  %1189 = vmatpush2.bf16.msra.mxu0 0
  %1190 = vmatprep.subr.bf16.mxu0 0
  %1191 = vmatpush2.bf16.msra.mxu0 0
  %1192 = vmatprep.subr.bf16.mxu0 0
  %1193 = vmatpush2.bf16.msra.mxu0 0
  %1194 = vmatprep.subr.bf16.mxu0 0
  %1195 = vmatpush2.bf16.msra.mxu0 0
  %1196 = vmatprep.subr.bf16.mxu0 0
  %1197 = vmatpush2.bf16.msra.mxu0 0
  %1198 = vmatprep.subr.bf16.mxu0 0
  %1199 = vmatpush2.bf16.msra.mxu0 0
  %1200 = vmatprep.mubr.bf16.mxu0 0
  %1201 = vmatmul.mubr.bf16.gmra.mxu0 %v1166
  %v1202 = vpop.f32.mrf.mxu0
  %v1203 = vadd.f32 0.0, %v1202
  %v1204 = vpop.f32.mrf.mxu0
  %v1205 = vpop.f32.mrf.mxu0
  %v1206 = vpop.f32.mrf.mxu0
  %1207 = vdwg.mxu0
  %v1208 = vadd.f32 %v1160, %v1203
  %v1209 = vtanh.pop %v1158
  %v1210 = vxor.u32 %v1158, 2147483648
  %v1211 = vmul.f32 %v1210, 1.442695
  %v1212 = vpow.pop %v1211
  %v1213 = vadd.f32 %v1212, 1.0
  %v1214 = vrcp.pop %v1213
  %v1215 = vmul.f32 1.0, %v1214
  %v1216 = vsel %vm286, %v1209, %v1215
  %v1217 = vmul.f32 %v1216, %v1065
  %1219 = vrot.lane.b32.xlu0 %v1216, 64
  %v1220 = vpop.permute.xlu0 %1219
  %v1222 = vmul.f32 %v1216, %v1220
  %1224 = vrot.lane.b32.xlu0 %v1222, 32
  %v1225 = vpop.permute.xlu0 %1224
  %v1227 = vadd.f32 %v1217, %v1225
  %v1228 = vtanh.pop %v1227
  %1230 = vrot.lane.b32.xlu0 %v1228, 64
  %v1231 = vpop.permute.xlu0 %1230
  %v1233 = vmul.f32 %v1216, %v1231
  %v1234 = vtanh.pop %v1208
  %v1235 = vxor.u32 %v1208, 2147483648
  %v1236 = vmul.f32 %v1235, 1.442695
  %v1237 = vpow.pop %v1236
  %v1238 = vadd.f32 %v1237, 1.0
  %v1239 = vrcp.pop %v1238
  %v1240 = vmul.f32 1.0, %v1239
  %v1241 = vsel %vm286, %v1234, %v1240
  %v1242 = vmul.f32 %v1241, %v1090
  %1244 = vrot.lane.b32.xlu0 %v1241, 64
  %v1245 = vpop.permute.xlu0 %1244
  %v1247 = vmul.f32 %v1241, %v1245
  %1249 = vrot.lane.b32.xlu0 %v1247, 32
  %v1250 = vpop.permute.xlu0 %1249
  %v1252 = vadd.f32 %v1242, %v1250
  %v1253 = vtanh.pop %v1252
  %1255 = vrot.lane.b32.xlu0 %v1253, 64
  %v1256 = vpop.permute.xlu0 %1255
  %v1258 = vmul.f32 %v1241, %v1256
  %1260 = vrot.lane.b32.xlu0 %v1233, 32
  %v1261 = vpop.permute.xlu0 %1260
  %s1263 = scalar_lea.vmem [#allocation4], 40
  %1264 = vst.msk [vmem:[%s1263] sm:$0xff] %vm300, %v1261
  %1266 = vrot.lane.b32.xlu0 %v1258, 32
  %v1267 = vpop.permute.xlu0 %1266
  %s1269 = scalar_lea.vmem [#allocation5], 16
  %1270 = vst.msk [vmem:[%s1269] sm:$0xff] %vm300, %v1267
  %s1271 = scalar_lea.vmem [#allocation2], 48
  %v1272 = vld [vmem:[%s1271] sm:$0xff]
  %v1273 = vpack.c.bf16 %v1233, %v1233
  %1275 = vrot.lane.b32.xlu0 %v1273, 32
  %v1276 = vpop.permute.xlu0 %1275
  %v1278 = vsel %vm300, %v1276, 0
  %1280 = vmatprep.subr.bf16.mxu0 0
  %1281 = vmatpush1.bf16.msra.mxu0 0
  %1282 = vmatprep.subr.bf16.mxu0 0
  %1283 = vmatpush1.bf16.msra.mxu0 0
  %1284 = vmatprep.subr.bf16.mxu0 0
  %1285 = vmatpush1.bf16.msra.mxu0 0
  %1286 = vmatprep.subr.bf16.mxu0 0
  %1287 = vmatpush1.bf16.msra.mxu0 0
  %1288 = vmatprep.subr.bf16.mxu0 0
  %1289 = vmatpush1.bf16.msra.mxu0 0
  %1290 = vmatprep.subr.bf16.mxu0 0
  %1291 = vmatpush1.bf16.msra.mxu0 0
  %1292 = vmatprep.subr.bf16.mxu0 0
  %1293 = vmatpush1.bf16.msra.mxu0 %v297
  %1294 = vmatprep.subr.bf16.mxu0 0
  %1295 = vmatpush1.bf16.msra.mxu0 %v296
  %1296 = vmatprep.subr.bf16.mxu0 0
  %1297 = vmatpush2.bf16.msra.mxu0 0
  %1298 = vmatprep.subr.bf16.mxu0 0
  %1299 = vmatpush2.bf16.msra.mxu0 0
  %1300 = vmatprep.subr.bf16.mxu0 0
  %1301 = vmatpush2.bf16.msra.mxu0 0
  %1302 = vmatprep.subr.bf16.mxu0 0
  %1303 = vmatpush2.bf16.msra.mxu0 0
  %1304 = vmatprep.subr.bf16.mxu0 0
  %1305 = vmatpush2.bf16.msra.mxu0 0
  %1306 = vmatprep.subr.bf16.mxu0 0
  %1307 = vmatpush2.bf16.msra.mxu0 0
  %1308 = vmatprep.subr.bf16.mxu0 0
  %1309 = vmatpush2.bf16.msra.mxu0 0
  %1310 = vmatprep.subr.bf16.mxu0 0
  %1311 = vmatpush2.bf16.msra.mxu0 0
  %1312 = vmatprep.mubr.bf16.mxu0 0
  %1313 = vmatmul.mubr.bf16.gmra.mxu0 %v1278
  %v1314 = vpop.f32.mrf.mxu0
  %v1315 = vadd.f32 0.0, %v1314
  %v1316 = vpop.f32.mrf.mxu0
  %v1317 = vpop.f32.mrf.mxu0
  %v1318 = vpop.f32.mrf.mxu0
  %1319 = vdwg.mxu0
  %v1320 = vadd.f32 %v1272, %v1315
  %s1321 = scalar_lea.vmem [#allocation3], 8
  %v1322 = vld [vmem:[%s1321] sm:$0xff]
  %v1323 = vpack.c.bf16 %v1258, %v1258
  %1325 = vrot.lane.b32.xlu0 %v1323, 32
  %v1326 = vpop.permute.xlu0 %1325
  %v1328 = vsel %vm300, %v1326, 0
  %1330 = vmatprep.subr.bf16.mxu0 0
  %1331 = vmatpush1.bf16.msra.mxu0 0
  %1332 = vmatprep.subr.bf16.mxu0 0
  %1333 = vmatpush1.bf16.msra.mxu0 0
  %1334 = vmatprep.subr.bf16.mxu0 0
  %1335 = vmatpush1.bf16.msra.mxu0 0
  %1336 = vmatprep.subr.bf16.mxu0 0
  %1337 = vmatpush1.bf16.msra.mxu0 0
  %1338 = vmatprep.subr.bf16.mxu0 0
  %1339 = vmatpush1.bf16.msra.mxu0 0
  %1340 = vmatprep.subr.bf16.mxu0 0
  %1341 = vmatpush1.bf16.msra.mxu0 0
  %1342 = vmatprep.subr.bf16.mxu0 0
  %1343 = vmatpush1.bf16.msra.mxu0 %v356
  %1344 = vmatprep.subr.bf16.mxu0 0
  %1345 = vmatpush1.bf16.msra.mxu0 %v355
  %1346 = vmatprep.subr.bf16.mxu0 0
  %1347 = vmatpush2.bf16.msra.mxu0 0
  %1348 = vmatprep.subr.bf16.mxu0 0
  %1349 = vmatpush2.bf16.msra.mxu0 0
  %1350 = vmatprep.subr.bf16.mxu0 0
  %1351 = vmatpush2.bf16.msra.mxu0 0
  %1352 = vmatprep.subr.bf16.mxu0 0
  %1353 = vmatpush2.bf16.msra.mxu0 0
  %1354 = vmatprep.subr.bf16.mxu0 0
  %1355 = vmatpush2.bf16.msra.mxu0 0
  %1356 = vmatprep.subr.bf16.mxu0 0
  %1357 = vmatpush2.bf16.msra.mxu0 0
  %1358 = vmatprep.subr.bf16.mxu0 0
  %1359 = vmatpush2.bf16.msra.mxu0 0
  %1360 = vmatprep.subr.bf16.mxu0 0
  %1361 = vmatpush2.bf16.msra.mxu0 0
  %1362 = vmatprep.mubr.bf16.mxu0 0
  %1363 = vmatmul.mubr.bf16.gmra.mxu0 %v1328
  %v1364 = vpop.f32.mrf.mxu0
  %v1365 = vadd.f32 0.0, %v1364
  %v1366 = vpop.f32.mrf.mxu0
  %v1367 = vpop.f32.mrf.mxu0
  %v1368 = vpop.f32.mrf.mxu0
  %1369 = vdwg.mxu0
  %v1370 = vadd.f32 %v1322, %v1365
  %v1371 = vtanh.pop %v1320
  %v1372 = vxor.u32 %v1320, 2147483648
  %v1373 = vmul.f32 %v1372, 1.442695
  %v1374 = vpow.pop %v1373
  %v1375 = vadd.f32 %v1374, 1.0
  %v1376 = vrcp.pop %v1375
  %v1377 = vmul.f32 1.0, %v1376
  %v1378 = vsel %vm286, %v1371, %v1377
  %v1379 = vmul.f32 %v1378, %v1227
  %1381 = vrot.lane.b32.xlu0 %v1378, 64
  %v1382 = vpop.permute.xlu0 %1381
  %v1384 = vmul.f32 %v1378, %v1382
  %1386 = vrot.lane.b32.xlu0 %v1384, 32
  %v1387 = vpop.permute.xlu0 %1386
  %v1389 = vadd.f32 %v1379, %v1387
  %v1390 = vtanh.pop %v1389
  %1392 = vrot.lane.b32.xlu0 %v1390, 64
  %v1393 = vpop.permute.xlu0 %1392
  %v1395 = vmul.f32 %v1378, %v1393
  %v1396 = vtanh.pop %v1370
  %v1397 = vxor.u32 %v1370, 2147483648
  %v1398 = vmul.f32 %v1397, 1.442695
  %v1399 = vpow.pop %v1398
  %v1400 = vadd.f32 %v1399, 1.0
  %v1401 = vrcp.pop %v1400
  %v1402 = vmul.f32 1.0, %v1401
  %v1403 = vsel %vm286, %v1396, %v1402
  %v1404 = vmul.f32 %v1403, %v1252
  %1406 = vrot.lane.b32.xlu0 %v1403, 64
  %v1407 = vpop.permute.xlu0 %1406
  %v1409 = vmul.f32 %v1403, %v1407
  %1411 = vrot.lane.b32.xlu0 %v1409, 32
  %v1412 = vpop.permute.xlu0 %1411
  %v1414 = vadd.f32 %v1404, %v1412
  %v1415 = vtanh.pop %v1414
  %1417 = vrot.lane.b32.xlu0 %v1415, 64
  %v1418 = vpop.permute.xlu0 %1417
  %v1420 = vmul.f32 %v1403, %v1418
  %1422 = vrot.lane.b32.xlu0 %v1395, 32
  %v1423 = vpop.permute.xlu0 %1422
  %s1425 = scalar_lea.vmem [#allocation4], 48
  %1426 = vst.msk [vmem:[%s1425] sm:$0xff] %vm300, %v1423
  %1428 = vrot.lane.b32.xlu0 %v1420, 32
  %v1429 = vpop.permute.xlu0 %1428
  %s1431 = scalar_lea.vmem [#allocation5], 8
  %1432 = vst.msk [vmem:[%s1431] sm:$0xff] %vm300, %v1429
  %s1433 = scalar_lea.vmem [#allocation2], 56
  %v1434 = vld [vmem:[%s1433] sm:$0xff]
  %v1435 = vpack.c.bf16 %v1395, %v1395
  %1437 = vrot.lane.b32.xlu0 %v1435, 32
  %v1438 = vpop.permute.xlu0 %1437
  %v1440 = vsel %vm300, %v1438, 0
  %1442 = vmatprep.subr.bf16.mxu0 0
  %1443 = vmatpush1.bf16.msra.mxu0 0
  %1444 = vmatprep.subr.bf16.mxu0 0
  %1445 = vmatpush1.bf16.msra.mxu0 0
  %1446 = vmatprep.subr.bf16.mxu0 0
  %1447 = vmatpush1.bf16.msra.mxu0 0
  %1448 = vmatprep.subr.bf16.mxu0 0
  %1449 = vmatpush1.bf16.msra.mxu0 0
  %1450 = vmatprep.subr.bf16.mxu0 0
  %1451 = vmatpush1.bf16.msra.mxu0 0
  %1452 = vmatprep.subr.bf16.mxu0 0
  %1453 = vmatpush1.bf16.msra.mxu0 0
  %1454 = vmatprep.subr.bf16.mxu0 0
  %1455 = vmatpush1.bf16.msra.mxu0 %v297
  %1456 = vmatprep.subr.bf16.mxu0 0
  %1457 = vmatpush1.bf16.msra.mxu0 %v296
  %1458 = vmatprep.subr.bf16.mxu0 0
  %1459 = vmatpush2.bf16.msra.mxu0 0
  %1460 = vmatprep.subr.bf16.mxu0 0
  %1461 = vmatpush2.bf16.msra.mxu0 0
  %1462 = vmatprep.subr.bf16.mxu0 0
  %1463 = vmatpush2.bf16.msra.mxu0 0
  %1464 = vmatprep.subr.bf16.mxu0 0
  %1465 = vmatpush2.bf16.msra.mxu0 0
  %1466 = vmatprep.subr.bf16.mxu0 0
  %1467 = vmatpush2.bf16.msra.mxu0 0
  %1468 = vmatprep.subr.bf16.mxu0 0
  %1469 = vmatpush2.bf16.msra.mxu0 0
  %1470 = vmatprep.subr.bf16.mxu0 0
  %1471 = vmatpush2.bf16.msra.mxu0 0
  %1472 = vmatprep.subr.bf16.mxu0 0
  %1473 = vmatpush2.bf16.msra.mxu0 0
  %1474 = vmatprep.mubr.bf16.mxu0 0
  %1475 = vmatmul.mubr.bf16.gmra.mxu0 %v1440
  %v1476 = vpop.f32.mrf.mxu0
  %v1477 = vadd.f32 0.0, %v1476
  %v1478 = vpop.f32.mrf.mxu0
  %v1479 = vpop.f32.mrf.mxu0
  %v1480 = vpop.f32.mrf.mxu0
  %1481 = vdwg.mxu0
  %v1482 = vadd.f32 %v1434, %v1477
  %v1483 = vld [vmem:[#allocation3] sm:$0xff]
  %v1484 = vpack.c.bf16 %v1420, %v1420
  %1486 = vrot.lane.b32.xlu0 %v1484, 32
  %v1487 = vpop.permute.xlu0 %1486
  %v1489 = vsel %vm300, %v1487, 0
  %1491 = vmatprep.subr.bf16.mxu0 0
  %1492 = vmatpush1.bf16.msra.mxu0 0
  %1493 = vmatprep.subr.bf16.mxu0 0
  %1494 = vmatpush1.bf16.msra.mxu0 0
  %1495 = vmatprep.subr.bf16.mxu0 0
  %1496 = vmatpush1.bf16.msra.mxu0 0
  %1497 = vmatprep.subr.bf16.mxu0 0
  %1498 = vmatpush1.bf16.msra.mxu0 0
  %1499 = vmatprep.subr.bf16.mxu0 0
  %1500 = vmatpush1.bf16.msra.mxu0 0
  %1501 = vmatprep.subr.bf16.mxu0 0
  %1502 = vmatpush1.bf16.msra.mxu0 0
  %1503 = vmatprep.subr.bf16.mxu0 0
  %1504 = vmatpush1.bf16.msra.mxu0 %v356
  %1505 = vmatprep.subr.bf16.mxu0 0
  %1506 = vmatpush1.bf16.msra.mxu0 %v355
  %1507 = vmatprep.subr.bf16.mxu0 0
  %1508 = vmatpush2.bf16.msra.mxu0 0
  %1509 = vmatprep.subr.bf16.mxu0 0
  %1510 = vmatpush2.bf16.msra.mxu0 0
  %1511 = vmatprep.subr.bf16.mxu0 0
  %1512 = vmatpush2.bf16.msra.mxu0 0
  %1513 = vmatprep.subr.bf16.mxu0 0
  %1514 = vmatpush2.bf16.msra.mxu0 0
  %1515 = vmatprep.subr.bf16.mxu0 0
  %1516 = vmatpush2.bf16.msra.mxu0 0
  %1517 = vmatprep.subr.bf16.mxu0 0
  %1518 = vmatpush2.bf16.msra.mxu0 0
  %1519 = vmatprep.subr.bf16.mxu0 0
  %1520 = vmatpush2.bf16.msra.mxu0 0
  %1521 = vmatprep.subr.bf16.mxu0 0
  %1522 = vmatpush2.bf16.msra.mxu0 0
  %1523 = vmatprep.mubr.bf16.mxu0 0
  %1524 = vmatmul.mubr.bf16.gmra.mxu0 %v1489
  %v1525 = vpop.f32.mrf.mxu0
  %v1526 = vadd.f32 0.0, %v1525
  %v1527 = vpop.f32.mrf.mxu0
  %v1528 = vpop.f32.mrf.mxu0
  %v1529 = vpop.f32.mrf.mxu0
  %1530 = vdwg.mxu0
  %v1531 = vadd.f32 %v1483, %v1526
  %v1532 = vtanh.pop %v1482
  %v1533 = vxor.u32 %v1482, 2147483648
  %v1534 = vmul.f32 %v1533, 1.442695
  %v1535 = vpow.pop %v1534
  %v1536 = vadd.f32 %v1535, 1.0
  %v1537 = vrcp.pop %v1536
  %v1538 = vmul.f32 1.0, %v1537
  %v1539 = vsel %vm286, %v1532, %v1538
  %v1540 = vmul.f32 %v1539, %v1389
  %1542 = vrot.lane.b32.xlu0 %v1539, 64
  %v1543 = vpop.permute.xlu0 %1542
  %v1545 = vmul.f32 %v1539, %v1543
  %1547 = vrot.lane.b32.xlu0 %v1545, 32
  %v1548 = vpop.permute.xlu0 %1547
  %v1550 = vadd.f32 %v1540, %v1548
  %v1551 = vtanh.pop %v1550
  %1553 = vrot.lane.b32.xlu0 %v1551, 64
  %v1554 = vpop.permute.xlu0 %1553
  %v1556 = vmul.f32 %v1539, %v1554
  %v1557 = vtanh.pop %v1531
  %v1558 = vxor.u32 %v1531, 2147483648
  %v1559 = vmul.f32 %v1558, 1.442695
  %v1560 = vpow.pop %v1559
  %v1561 = vadd.f32 %v1560, 1.0
  %v1562 = vrcp.pop %v1561
  %v1563 = vmul.f32 1.0, %v1562
  %v1564 = vsel %vm286, %v1557, %v1563
  %v1565 = vmul.f32 %v1564, %v1414
  %1567 = vrot.lane.b32.xlu0 %v1564, 64
  %v1568 = vpop.permute.xlu0 %1567
  %v1570 = vmul.f32 %v1564, %v1568
  %1572 = vrot.lane.b32.xlu0 %v1570, 32
  %v1573 = vpop.permute.xlu0 %1572
  %v1575 = vadd.f32 %v1565, %v1573
  %v1576 = vtanh.pop %v1575
  %1578 = vrot.lane.b32.xlu0 %v1576, 64
  %v1579 = vpop.permute.xlu0 %1578
  %v1581 = vmul.f32 %v1564, %v1579
  %1583 = vrot.lane.b32.xlu0 %v1556, 32
  %v1584 = vpop.permute.xlu0 %1583
  %s1586 = scalar_lea.vmem [#allocation4], 56
  %1587 = vst.msk [vmem:[%s1586] sm:$0xff] %vm300, %v1584
  %1589 = vrot.lane.b32.xlu0 %v1581, 32
  %v1590 = vpop.permute.xlu0 %1589
  %1592 = vst.msk [vmem:[#allocation5] sm:$0xff] %vm300, %v1590
  %v1593 = vld [vmem:[#allocation4] sm:$0xff]
  %v1594 = vld [vmem:[#allocation4 + $0x8] sm:$0xff]
  %v1595 = vld [vmem:[#allocation4 + $0x10] sm:$0xff]
  %v1596 = vld [vmem:[#allocation4 + $0x18] sm:$0xff]
  %v1597 = vld [vmem:[#allocation4 + $0x20] sm:$0xff]
  %v1598 = vld [vmem:[#allocation4 + $0x28] sm:$0xff]
  %v1599 = vld [vmem:[#allocation4 + $0x30] sm:$0xff]
  %v1600 = vld [vmem:[#allocation4 + $0x38] sm:$0xff]
  %v1601 = vpack.c.bf16 %v1594, %v1593
  %v1602 = vpack.c.bf16 %v1596, %v1595
  %v1603 = vpack.c.bf16 %v1598, %v1597
  %v1604 = vpack.c.bf16 %v1600, %v1599
  %v1605 = vld [vmem:[#allocation5] sm:$0xff]
  %v1606 = vld [vmem:[#allocation5 + $0x8] sm:$0xff]
  %v1607 = vld [vmem:[#allocation5 + $0x10] sm:$0xff]
  %v1608 = vld [vmem:[#allocation5 + $0x18] sm:$0xff]
  %v1609 = vld [vmem:[#allocation5 + $0x20] sm:$0xff]
  %v1610 = vld [vmem:[#allocation5 + $0x28] sm:$0xff]
  %v1611 = vld [vmem:[#allocation5 + $0x30] sm:$0xff]
  %v1612 = vld [vmem:[#allocation5 + $0x38] sm:$0xff]
  %v1613 = vpack.c.bf16 %v1606, %v1605
  %v1614 = vpack.c.bf16 %v1608, %v1607
  %v1615 = vpack.c.bf16 %v1610, %v1609
  %v1616 = vpack.c.bf16 %v1612, %v1611
  %v1617 = vld [vmem:[%s7] sm:$0xff]
  %v1618 = vld [vmem:[%s7 + $0x8] sm:$0xff]
  %v1619 = vld [vmem:[%s7 + $0x10] sm:$0xff]
  %v1620 = vld [vmem:[%s7 + $0x18] sm:$0xff]
  %v1621 = vld [vmem:[%s7 + $0x20] sm:$0xff]
  %v1622 = vld [vmem:[%s7 + $0x28] sm:$0xff]
  %v1623 = vld [vmem:[%s7 + $0x30] sm:$0xff]
  %v1624 = vld [vmem:[%s7 + $0x38] sm:$0xff]
  %v1625 = vld [vmem:[%s8] sm:$0xff]
  %v1626 = vld [vmem:[%s8 + $0x8] sm:$0xff]
  %v1627 = vld [vmem:[%s8 + $0x10] sm:$0xff]
  %v1628 = vld [vmem:[%s8 + $0x18] sm:$0xff]
  %v1629 = vld [vmem:[%s8 + $0x20] sm:$0xff]
  %v1630 = vld [vmem:[%s8 + $0x28] sm:$0xff]
  %v1631 = vld [vmem:[%s8 + $0x30] sm:$0xff]
  %v1632 = vld [vmem:[%s8 + $0x38] sm:$0xff]
  %v1641 = vunpack.c.l.b16 %v1625
  %v1642 = vunpack.c.h.b16 %v1625
  %v1643 = vunpack.c.l.b16 %v1626
  %v1644 = vunpack.c.h.b16 %v1626
  %v1645 = vunpack.c.l.b16 %v1627
  %v1646 = vunpack.c.h.b16 %v1627
  %v1647 = vunpack.c.l.b16 %v1628
  %v1648 = vunpack.c.h.b16 %v1628
  %v1649 = vunpack.c.l.b16 %v1629
  %v1650 = vunpack.c.h.b16 %v1629
  %v1651 = vunpack.c.l.b16 %v1630
  %v1652 = vunpack.c.h.b16 %v1630
  %v1653 = vunpack.c.l.b16 %v1631
  %v1654 = vunpack.c.h.b16 %v1631
  %v1655 = vunpack.c.l.b16 %v1632
  %v1656 = vunpack.c.h.b16 %v1632
  %v1657 = vpack.c.b16 %v1645, %v1641
  %v1658 = vpack.c.b16 %v1646, %v1642
  %v1659 = vpack.c.b16 %v1647, %v1643
  %v1660 = vpack.c.b16 %v1648, %v1644
  %v1661 = vpack.c.b16 %v1653, %v1649
  %v1662 = vpack.c.b16 %v1654, %v1650
  %v1663 = vpack.c.b16 %v1655, %v1651
  %v1664 = vpack.c.b16 %v1656, %v1652
  %v1674 = vsel %vm300, %v1613, 0
  %v1677 = vsel %vm300, %v1614, 0
  %v1680 = vsel %vm300, %v1615, 0
  %v1683 = vsel %vm300, %v1616, 0
  %1685 = vmatprep.subr.bf16.mxu0 0
  %1686 = vmatpush1.bf16.msra.mxu0 0
  %1687 = vmatprep.subr.bf16.mxu0 0
  %1688 = vmatpush1.bf16.msra.mxu0 0
  %1689 = vmatprep.subr.bf16.mxu0 0
  %1690 = vmatpush1.bf16.msra.mxu0 0
  %1691 = vmatprep.subr.bf16.mxu0 0
  %1692 = vmatpush1.bf16.msra.mxu0 0
  %1693 = vmatprep.subr.bf16.mxu0 0
  %1694 = vmatpush1.bf16.msra.mxu0 0
  %1695 = vmatprep.subr.bf16.mxu0 0
  %1696 = vmatpush1.bf16.msra.mxu0 0
  %1697 = vmatprep.subr.bf16.mxu0 %v1662
  %1698 = vmatpush1.bf16.msra.mxu0 %v1661
  %1699 = vmatprep.subr.bf16.mxu0 %v1658
  %1700 = vmatpush1.bf16.msra.mxu0 %v1657
  %1701 = vmatprep.subr.bf16.mxu0 0
  %1702 = vmatpush2.bf16.msra.mxu0 0
  %1703 = vmatprep.subr.bf16.mxu0 0
  %1704 = vmatpush2.bf16.msra.mxu0 0
  %1705 = vmatprep.subr.bf16.mxu0 0
  %1706 = vmatpush2.bf16.msra.mxu0 0
  %1707 = vmatprep.subr.bf16.mxu0 0
  %1708 = vmatpush2.bf16.msra.mxu0 0
  %1709 = vmatprep.subr.bf16.mxu0 0
  %1710 = vmatpush2.bf16.msra.mxu0 0
  %1711 = vmatprep.subr.bf16.mxu0 0
  %1712 = vmatpush2.bf16.msra.mxu0 0
  %1713 = vmatprep.subr.bf16.mxu0 0
  %1714 = vmatpush2.bf16.msra.mxu0 0
  %1715 = vmatprep.subr.bf16.mxu0 0
  %1716 = vmatpush2.bf16.msra.mxu0 0
  %1717 = vmatprep.mubr.bf16.mxu0 0
  %1718 = vmatmul.mubr.bf16.gmra.mxu0 %v1674
  %v1719 = vpop.f32.mrf.mxu0
  %v1720 = vadd.f32 0.0, %v1719
  %v1721 = vpop.f32.mrf.mxu0
  %v1722 = vadd.f32 0.0, %v1721
  %v1723 = vpop.f32.mrf.mxu0
  %v1724 = vadd.f32 0.0, %v1723
  %v1725 = vpop.f32.mrf.mxu0
  %v1726 = vadd.f32 0.0, %v1725
  %1727 = vmatprep.mubr.bf16.mxu0 0
  %1728 = vmatmul.mubr.bf16.gmra.mxu0 %v1677
  %v1729 = vpop.f32.mrf.mxu0
  %v1730 = vadd.f32 0.0, %v1729
  %v1731 = vpop.f32.mrf.mxu0
  %v1732 = vadd.f32 0.0, %v1731
  %v1733 = vpop.f32.mrf.mxu0
  %v1734 = vadd.f32 0.0, %v1733
  %v1735 = vpop.f32.mrf.mxu0
  %v1736 = vadd.f32 0.0, %v1735
  %1737 = vmatprep.mubr.bf16.mxu0 0
  %1738 = vmatmul.mubr.bf16.gmra.mxu0 %v1680
  %v1739 = vpop.f32.mrf.mxu0
  %v1740 = vadd.f32 0.0, %v1739
  %v1741 = vpop.f32.mrf.mxu0
  %v1742 = vadd.f32 0.0, %v1741
  %v1743 = vpop.f32.mrf.mxu0
  %v1744 = vadd.f32 0.0, %v1743
  %v1745 = vpop.f32.mrf.mxu0
  %v1746 = vadd.f32 0.0, %v1745
  %1747 = vmatprep.mubr.bf16.mxu0 0
  %1748 = vmatmul.mubr.bf16.gmra.mxu0 %v1683
  %v1749 = vpop.f32.mrf.mxu0
  %v1750 = vadd.f32 0.0, %v1749
  %v1751 = vpop.f32.mrf.mxu0
  %v1752 = vadd.f32 0.0, %v1751
  %v1753 = vpop.f32.mrf.mxu0
  %v1754 = vadd.f32 0.0, %v1753
  %v1755 = vpop.f32.mrf.mxu0
  %v1756 = vadd.f32 0.0, %v1755
  %1757 = vdwg.mxu0
  %1758 = vmatprep.subr.bf16.mxu0 0
  %1759 = vmatpush1.bf16.msra.mxu0 0
  %1760 = vmatprep.subr.bf16.mxu0 0
  %1761 = vmatpush1.bf16.msra.mxu0 0
  %1762 = vmatprep.subr.bf16.mxu0 0
  %1763 = vmatpush1.bf16.msra.mxu0 0
  %1764 = vmatprep.subr.bf16.mxu0 0
  %1765 = vmatpush1.bf16.msra.mxu0 0
  %1766 = vmatprep.subr.bf16.mxu0 0
  %1767 = vmatpush1.bf16.msra.mxu0 0
  %1768 = vmatprep.subr.bf16.mxu0 0
  %1769 = vmatpush1.bf16.msra.mxu0 0
  %1770 = vmatprep.subr.bf16.mxu0 %v1664
  %1771 = vmatpush1.bf16.msra.mxu0 %v1663
  %1772 = vmatprep.subr.bf16.mxu0 %v1660
  %1773 = vmatpush1.bf16.msra.mxu0 %v1659
  %1774 = vmatprep.subr.bf16.mxu0 0
  %1775 = vmatpush2.bf16.msra.mxu0 0
  %1776 = vmatprep.subr.bf16.mxu0 0
  %1777 = vmatpush2.bf16.msra.mxu0 0
  %1778 = vmatprep.subr.bf16.mxu0 0
  %1779 = vmatpush2.bf16.msra.mxu0 0
  %1780 = vmatprep.subr.bf16.mxu0 0
  %1781 = vmatpush2.bf16.msra.mxu0 0
  %1782 = vmatprep.subr.bf16.mxu0 0
  %1783 = vmatpush2.bf16.msra.mxu0 0
  %1784 = vmatprep.subr.bf16.mxu0 0
  %1785 = vmatpush2.bf16.msra.mxu0 0
  %1786 = vmatprep.subr.bf16.mxu0 0
  %1787 = vmatpush2.bf16.msra.mxu0 0
  %1788 = vmatprep.subr.bf16.mxu0 0
  %1789 = vmatpush2.bf16.msra.mxu0 0
  %1790 = vmatprep.mubr.bf16.mxu0 0
  %1791 = vmatmul.mubr.bf16.gmra.mxu0 %v1674
  %v1792 = vpop.f32.mrf.mxu0
  %v1793 = vadd.f32 0.0, %v1792
  %v1794 = vpop.f32.mrf.mxu0
  %v1795 = vadd.f32 0.0, %v1794
  %v1796 = vpop.f32.mrf.mxu0
  %v1797 = vadd.f32 0.0, %v1796
  %v1798 = vpop.f32.mrf.mxu0
  %v1799 = vadd.f32 0.0, %v1798
  %1800 = vmatprep.mubr.bf16.mxu0 0
  %1801 = vmatmul.mubr.bf16.gmra.mxu0 %v1677
  %v1802 = vpop.f32.mrf.mxu0
  %v1803 = vadd.f32 0.0, %v1802
  %v1804 = vpop.f32.mrf.mxu0
  %v1805 = vadd.f32 0.0, %v1804
  %v1806 = vpop.f32.mrf.mxu0
  %v1807 = vadd.f32 0.0, %v1806
  %v1808 = vpop.f32.mrf.mxu0
  %v1809 = vadd.f32 0.0, %v1808
  %1810 = vmatprep.mubr.bf16.mxu0 0
  %1811 = vmatmul.mubr.bf16.gmra.mxu0 %v1680
  %v1812 = vpop.f32.mrf.mxu0
  %v1813 = vadd.f32 0.0, %v1812
  %v1814 = vpop.f32.mrf.mxu0
  %v1815 = vadd.f32 0.0, %v1814
  %v1816 = vpop.f32.mrf.mxu0
  %v1817 = vadd.f32 0.0, %v1816
  %v1818 = vpop.f32.mrf.mxu0
  %v1819 = vadd.f32 0.0, %v1818
  %1820 = vmatprep.mubr.bf16.mxu0 0
  %1821 = vmatmul.mubr.bf16.gmra.mxu0 %v1683
  %v1822 = vpop.f32.mrf.mxu0
  %v1823 = vadd.f32 0.0, %v1822
  %v1824 = vpop.f32.mrf.mxu0
  %v1825 = vadd.f32 0.0, %v1824
  %v1826 = vpop.f32.mrf.mxu0
  %v1827 = vadd.f32 0.0, %v1826
  %v1828 = vpop.f32.mrf.mxu0
  %v1829 = vadd.f32 0.0, %v1828
  %1830 = vdwg.mxu0
  %v1839 = vunpack.c.l.b16 %v1617
  %v1840 = vunpack.c.h.b16 %v1617
  %v1841 = vunpack.c.l.b16 %v1618
  %v1842 = vunpack.c.h.b16 %v1618
  %v1843 = vunpack.c.l.b16 %v1619
  %v1844 = vunpack.c.h.b16 %v1619
  %v1845 = vunpack.c.l.b16 %v1620
  %v1846 = vunpack.c.h.b16 %v1620
  %v1847 = vunpack.c.l.b16 %v1621
  %v1848 = vunpack.c.h.b16 %v1621
  %v1849 = vunpack.c.l.b16 %v1622
  %v1850 = vunpack.c.h.b16 %v1622
  %v1851 = vunpack.c.l.b16 %v1623
  %v1852 = vunpack.c.h.b16 %v1623
  %v1853 = vunpack.c.l.b16 %v1624
  %v1854 = vunpack.c.h.b16 %v1624
  %v1855 = vpack.c.b16 %v1843, %v1839
  %v1856 = vpack.c.b16 %v1844, %v1840
  %v1857 = vpack.c.b16 %v1845, %v1841
  %v1858 = vpack.c.b16 %v1846, %v1842
  %v1859 = vpack.c.b16 %v1851, %v1847
  %v1860 = vpack.c.b16 %v1852, %v1848
  %v1861 = vpack.c.b16 %v1853, %v1849
  %v1862 = vpack.c.b16 %v1854, %v1850
  %v1872 = vsel %vm300, %v1601, 0
  %v1875 = vsel %vm300, %v1602, 0
  %v1878 = vsel %vm300, %v1603, 0
  %v1881 = vsel %vm300, %v1604, 0
  %1883 = vmatprep.subr.bf16.mxu0 0
  %1884 = vmatpush1.bf16.msra.mxu0 0
  %1885 = vmatprep.subr.bf16.mxu0 0
  %1886 = vmatpush1.bf16.msra.mxu0 0
  %1887 = vmatprep.subr.bf16.mxu0 0
  %1888 = vmatpush1.bf16.msra.mxu0 0
  %1889 = vmatprep.subr.bf16.mxu0 0
  %1890 = vmatpush1.bf16.msra.mxu0 0
  %1891 = vmatprep.subr.bf16.mxu0 0
  %1892 = vmatpush1.bf16.msra.mxu0 0
  %1893 = vmatprep.subr.bf16.mxu0 0
  %1894 = vmatpush1.bf16.msra.mxu0 0
  %1895 = vmatprep.subr.bf16.mxu0 %v1860
  %1896 = vmatpush1.bf16.msra.mxu0 %v1859
  %1897 = vmatprep.subr.bf16.mxu0 %v1856
  %1898 = vmatpush1.bf16.msra.mxu0 %v1855
  %1899 = vmatprep.subr.bf16.mxu0 0
  %1900 = vmatpush2.bf16.msra.mxu0 0
  %1901 = vmatprep.subr.bf16.mxu0 0
  %1902 = vmatpush2.bf16.msra.mxu0 0
  %1903 = vmatprep.subr.bf16.mxu0 0
  %1904 = vmatpush2.bf16.msra.mxu0 0
  %1905 = vmatprep.subr.bf16.mxu0 0
  %1906 = vmatpush2.bf16.msra.mxu0 0
  %1907 = vmatprep.subr.bf16.mxu0 0
  %1908 = vmatpush2.bf16.msra.mxu0 0
  %1909 = vmatprep.subr.bf16.mxu0 0
  %1910 = vmatpush2.bf16.msra.mxu0 0
  %1911 = vmatprep.subr.bf16.mxu0 0
  %1912 = vmatpush2.bf16.msra.mxu0 0
  %1913 = vmatprep.subr.bf16.mxu0 0
  %1914 = vmatpush2.bf16.msra.mxu0 0
  %1915 = vmatprep.mubr.bf16.mxu0 0
  %1916 = vmatmul.mubr.bf16.gmra.mxu0 %v1872
  %v1917 = vpop.f32.mrf.mxu0
  %v1918 = vadd.f32 %v1720, %v1917
  %v1919 = vpop.f32.mrf.mxu0
  %v1920 = vadd.f32 %v1722, %v1919
  %v1921 = vpop.f32.mrf.mxu0
  %v1922 = vadd.f32 %v1724, %v1921
  %v1923 = vpop.f32.mrf.mxu0
  %v1924 = vadd.f32 %v1726, %v1923
  %1925 = vmatprep.mubr.bf16.mxu0 0
  %1926 = vmatmul.mubr.bf16.gmra.mxu0 %v1875
  %v1927 = vpop.f32.mrf.mxu0
  %v1928 = vadd.f32 %v1730, %v1927
  %v1929 = vpop.f32.mrf.mxu0
  %v1930 = vadd.f32 %v1732, %v1929
  %v1931 = vpop.f32.mrf.mxu0
  %v1932 = vadd.f32 %v1734, %v1931
  %v1933 = vpop.f32.mrf.mxu0
  %v1934 = vadd.f32 %v1736, %v1933
  %1935 = vmatprep.mubr.bf16.mxu0 0
  %1936 = vmatmul.mubr.bf16.gmra.mxu0 %v1878
  %v1937 = vpop.f32.mrf.mxu0
  %v1938 = vadd.f32 %v1740, %v1937
  %v1939 = vpop.f32.mrf.mxu0
  %v1940 = vadd.f32 %v1742, %v1939
  %v1941 = vpop.f32.mrf.mxu0
  %v1942 = vadd.f32 %v1744, %v1941
  %v1943 = vpop.f32.mrf.mxu0
  %v1944 = vadd.f32 %v1746, %v1943
  %1945 = vmatprep.mubr.bf16.mxu0 0
  %1946 = vmatmul.mubr.bf16.gmra.mxu0 %v1881
  %v1947 = vpop.f32.mrf.mxu0
  %v1948 = vadd.f32 %v1750, %v1947
  %v1949 = vpop.f32.mrf.mxu0
  %v1950 = vadd.f32 %v1752, %v1949
  %v1951 = vpop.f32.mrf.mxu0
  %v1952 = vadd.f32 %v1754, %v1951
  %v1953 = vpop.f32.mrf.mxu0
  %v1954 = vadd.f32 %v1756, %v1953
  %1955 = vdwg.mxu0
  %1956 = vmatprep.subr.bf16.mxu0 0
  %1957 = vmatpush1.bf16.msra.mxu0 0
  %1958 = vmatprep.subr.bf16.mxu0 0
  %1959 = vmatpush1.bf16.msra.mxu0 0
  %1960 = vmatprep.subr.bf16.mxu0 0
  %1961 = vmatpush1.bf16.msra.mxu0 0
  %1962 = vmatprep.subr.bf16.mxu0 0
  %1963 = vmatpush1.bf16.msra.mxu0 0
  %1964 = vmatprep.subr.bf16.mxu0 0
  %1965 = vmatpush1.bf16.msra.mxu0 0
  %1966 = vmatprep.subr.bf16.mxu0 0
  %1967 = vmatpush1.bf16.msra.mxu0 0
  %1968 = vmatprep.subr.bf16.mxu0 %v1862
  %1969 = vmatpush1.bf16.msra.mxu0 %v1861
  %1970 = vmatprep.subr.bf16.mxu0 %v1858
  %1971 = vmatpush1.bf16.msra.mxu0 %v1857
  %1972 = vmatprep.subr.bf16.mxu0 0
  %1973 = vmatpush2.bf16.msra.mxu0 0
  %1974 = vmatprep.subr.bf16.mxu0 0
  %1975 = vmatpush2.bf16.msra.mxu0 0
  %1976 = vmatprep.subr.bf16.mxu0 0
  %1977 = vmatpush2.bf16.msra.mxu0 0
  %1978 = vmatprep.subr.bf16.mxu0 0
  %1979 = vmatpush2.bf16.msra.mxu0 0
  %1980 = vmatprep.subr.bf16.mxu0 0
  %1981 = vmatpush2.bf16.msra.mxu0 0
  %1982 = vmatprep.subr.bf16.mxu0 0
  %1983 = vmatpush2.bf16.msra.mxu0 0
  %1984 = vmatprep.subr.bf16.mxu0 0
  %1985 = vmatpush2.bf16.msra.mxu0 0
  %1986 = vmatprep.subr.bf16.mxu0 0
  %1987 = vmatpush2.bf16.msra.mxu0 0
  %1988 = vmatprep.mubr.bf16.mxu0 0
  %1989 = vmatmul.mubr.bf16.gmra.mxu0 %v1872
  %v1990 = vpop.f32.mrf.mxu0
  %v1991 = vadd.f32 %v1793, %v1990
  %v1992 = vpop.f32.mrf.mxu0
  %v1993 = vadd.f32 %v1795, %v1992
  %v1994 = vpop.f32.mrf.mxu0
  %v1995 = vadd.f32 %v1797, %v1994
  %v1996 = vpop.f32.mrf.mxu0
  %v1997 = vadd.f32 %v1799, %v1996
  %1998 = vmatprep.mubr.bf16.mxu0 0
  %1999 = vmatmul.mubr.bf16.gmra.mxu0 %v1875
  %v2000 = vpop.f32.mrf.mxu0
  %v2001 = vadd.f32 %v1803, %v2000
  %v2002 = vpop.f32.mrf.mxu0
  %v2003 = vadd.f32 %v1805, %v2002
  %v2004 = vpop.f32.mrf.mxu0
  %v2005 = vadd.f32 %v1807, %v2004
  %v2006 = vpop.f32.mrf.mxu0
  %v2007 = vadd.f32 %v1809, %v2006
  %2008 = vmatprep.mubr.bf16.mxu0 0
  %2009 = vmatmul.mubr.bf16.gmra.mxu0 %v1878
  %v2010 = vpop.f32.mrf.mxu0
  %v2011 = vadd.f32 %v1813, %v2010
  %v2012 = vpop.f32.mrf.mxu0
  %v2013 = vadd.f32 %v1815, %v2012
  %v2014 = vpop.f32.mrf.mxu0
  %v2015 = vadd.f32 %v1817, %v2014
  %v2016 = vpop.f32.mrf.mxu0
  %v2017 = vadd.f32 %v1819, %v2016
  %2018 = vmatprep.mubr.bf16.mxu0 0
  %2019 = vmatmul.mubr.bf16.gmra.mxu0 %v1881
  %v2020 = vpop.f32.mrf.mxu0
  %v2021 = vadd.f32 %v1823, %v2020
  %v2022 = vpop.f32.mrf.mxu0
  %v2023 = vadd.f32 %v1825, %v2022
  %v2024 = vpop.f32.mrf.mxu0
  %v2025 = vadd.f32 %v1827, %v2024
  %v2026 = vpop.f32.mrf.mxu0
  %v2027 = vadd.f32 %v1829, %v2026
  %2028 = vdwg.mxu0
  %v2029 = vld [vmem:[%s9] sm:$0xf]
  %v2031 = vlaneseq
  %v2032 = vshrl.u32 %v2031, 7
  %v2033 = vsub.s32 0, %v2032
  %v2034 = vrot.slane %v2029, %v2033
  %v2035 = vlaneseq
  %v2036 = vshrl.u32 %v2035, 7
  %v2037 = vsub.s32 1, %v2036
  %v2038 = vrot.slane %v2029, %v2037
  %v2039 = vlaneseq
  %v2040 = vshrl.u32 %v2039, 7
  %v2041 = vsub.s32 2, %v2040
  %v2042 = vrot.slane %v2029, %v2041
  %v2043 = vlaneseq
  %v2044 = vshrl.u32 %v2043, 7
  %v2045 = vsub.s32 3, %v2044
  %v2046 = vrot.slane %v2029, %v2045
  %v2051 = vadd.f32 %v1918, %v2034
  %v2052 = vadd.f32 %v1920, %v2038
  %v2053 = vadd.f32 %v1991, %v2042
  %v2054 = vadd.f32 %v1993, %v2046
  %v2055 = vadd.f32 %v1922, %v2034
  %v2056 = vadd.f32 %v1924, %v2038
  %v2057 = vadd.f32 %v1995, %v2042
  %v2058 = vadd.f32 %v1997, %v2046
  %v2059 = vadd.f32 %v1928, %v2034
  %v2060 = vadd.f32 %v1930, %v2038
  %v2061 = vadd.f32 %v2001, %v2042
  %v2062 = vadd.f32 %v2003, %v2046
  %v2063 = vadd.f32 %v1932, %v2034
  %v2064 = vadd.f32 %v1934, %v2038
  %v2065 = vadd.f32 %v2005, %v2042
  %v2066 = vadd.f32 %v2007, %v2046
  %v2067 = vadd.f32 %v1938, %v2034
  %v2068 = vadd.f32 %v1940, %v2038
  %v2069 = vadd.f32 %v2011, %v2042
  %v2070 = vadd.f32 %v2013, %v2046
  %v2071 = vadd.f32 %v1942, %v2034
  %v2072 = vadd.f32 %v1944, %v2038
  %v2073 = vadd.f32 %v2015, %v2042
  %v2074 = vadd.f32 %v2017, %v2046
  %v2075 = vadd.f32 %v1948, %v2034
  %v2076 = vadd.f32 %v1950, %v2038
  %v2077 = vadd.f32 %v2021, %v2042
  %v2078 = vadd.f32 %v2023, %v2046
  %v2079 = vadd.f32 %v1952, %v2034
  %v2080 = vadd.f32 %v1954, %v2038
  %v2081 = vadd.f32 %v2025, %v2042
  %v2082 = vadd.f32 %v2027, %v2046
  %v2083 = vmax.f32 %v2051, 0.0
  %v2084 = vmax.f32 %v2052, 0.0
  %v2085 = vmax.f32 %v2053, 0.0
  %v2086 = vmax.f32 %v2054, 0.0
  %v2087 = vmax.f32 %v2055, 0.0
  %v2088 = vmax.f32 %v2056, 0.0
  %v2089 = vmax.f32 %v2057, 0.0
  %v2090 = vmax.f32 %v2058, 0.0
  %v2091 = vmax.f32 %v2059, 0.0
  %v2092 = vmax.f32 %v2060, 0.0
  %v2093 = vmax.f32 %v2061, 0.0
  %v2094 = vmax.f32 %v2062, 0.0
  %v2095 = vmax.f32 %v2063, 0.0
  %v2096 = vmax.f32 %v2064, 0.0
  %v2097 = vmax.f32 %v2065, 0.0
  %v2098 = vmax.f32 %v2066, 0.0
  %v2099 = vmax.f32 %v2067, 0.0
  %v2100 = vmax.f32 %v2068, 0.0
  %v2101 = vmax.f32 %v2069, 0.0
  %v2102 = vmax.f32 %v2070, 0.0
  %v2103 = vmax.f32 %v2071, 0.0
  %v2104 = vmax.f32 %v2072, 0.0
  %v2105 = vmax.f32 %v2073, 0.0
  %v2106 = vmax.f32 %v2074, 0.0
  %v2107 = vmax.f32 %v2075, 0.0
  %v2108 = vmax.f32 %v2076, 0.0
  %v2109 = vmax.f32 %v2077, 0.0
  %v2110 = vmax.f32 %v2078, 0.0
  %v2111 = vmax.f32 %v2079, 0.0
  %v2112 = vmax.f32 %v2080, 0.0
  %v2113 = vmax.f32 %v2081, 0.0
  %v2114 = vmax.f32 %v2082, 0.0
  %v2115 = vpack.c.bf16 %v2087, %v2083
  %v2116 = vpack.c.bf16 %v2088, %v2084
  %v2117 = vpack.c.bf16 %v2089, %v2085
  %v2118 = vpack.c.bf16 %v2090, %v2086
  %v2119 = vpack.c.bf16 %v2095, %v2091
  %v2120 = vpack.c.bf16 %v2096, %v2092
  %v2121 = vpack.c.bf16 %v2097, %v2093
  %v2122 = vpack.c.bf16 %v2098, %v2094
  %v2123 = vpack.c.bf16 %v2103, %v2099
  %v2124 = vpack.c.bf16 %v2104, %v2100
  %v2125 = vpack.c.bf16 %v2105, %v2101
  %v2126 = vpack.c.bf16 %v2106, %v2102
  %v2127 = vpack.c.bf16 %v2111, %v2107
  %v2128 = vpack.c.bf16 %v2112, %v2108
  %v2129 = vpack.c.bf16 %v2113, %v2109
  %v2130 = vpack.c.bf16 %v2114, %v2110
  %v2131 = vld [vmem:[%s10] sm:$0xf]
  %v2132 = vld [vmem:[%s10 + $0x4] sm:$0xf]
  %v2133 = vld [vmem:[%s10 + $0x8] sm:$0xf]
  %v2134 = vld [vmem:[%s10 + $0xc] sm:$0xf]
  %v2135 = vld [vmem:[%s10 + $0x10] sm:$0xf]
  %v2136 = vld [vmem:[%s10 + $0x14] sm:$0xf]
  %v2137 = vld [vmem:[%s10 + $0x18] sm:$0xf]
  %v2138 = vld [vmem:[%s10 + $0x1c] sm:$0xf]
  %v2139 = vld [vmem:[%s10 + $0x20] sm:$0xf]
  %v2140 = vld [vmem:[%s10 + $0x24] sm:$0xf]
  %v2141 = vld [vmem:[%s10 + $0x28] sm:$0xf]
  %v2142 = vld [vmem:[%s10 + $0x2c] sm:$0xf]
  %v2143 = vld [vmem:[%s10 + $0x30] sm:$0xf]
  %v2144 = vld [vmem:[%s10 + $0x34] sm:$0xf]
  %v2145 = vld [vmem:[%s10 + $0x38] sm:$0xf]
  %v2146 = vld [vmem:[%s10 + $0x3c] sm:$0xf]
  %v2147 = vld [vmem:[%s10 + $0x40] sm:$0xf]
  %v2148 = vld [vmem:[%s10 + $0x44] sm:$0xf]
  %v2149 = vld [vmem:[%s10 + $0x48] sm:$0xf]
  %v2150 = vld [vmem:[%s10 + $0x4c] sm:$0xf]
  %v2151 = vld [vmem:[%s10 + $0x50] sm:$0xf]
  %v2152 = vld [vmem:[%s10 + $0x54] sm:$0xf]
  %v2153 = vld [vmem:[%s10 + $0x58] sm:$0xf]
  %v2154 = vld [vmem:[%s10 + $0x5c] sm:$0xf]
  %v2155 = vld [vmem:[%s10 + $0x60] sm:$0xf]
  %v2156 = vld [vmem:[%s10 + $0x64] sm:$0xf]
  %v2157 = vld [vmem:[%s10 + $0x68] sm:$0xf]
  %v2158 = vld [vmem:[%s10 + $0x6c] sm:$0xf]
  %v2159 = vld [vmem:[%s10 + $0x70] sm:$0xf]
  %v2160 = vld [vmem:[%s10 + $0x74] sm:$0xf]
  %v2161 = vld [vmem:[%s10 + $0x78] sm:$0xf]
  %v2162 = vld [vmem:[%s10 + $0x7c] sm:$0xf]
  %v2163 = vld [vmem:[%s10 + $0x80] sm:$0xf]
  %v2164 = vld [vmem:[%s10 + $0x84] sm:$0xf]
  %v2165 = vld [vmem:[%s10 + $0x88] sm:$0xf]
  %v2166 = vld [vmem:[%s10 + $0x8c] sm:$0xf]
  %v2167 = vld [vmem:[%s10 + $0x90] sm:$0xf]
  %v2168 = vld [vmem:[%s10 + $0x94] sm:$0xf]
  %v2169 = vld [vmem:[%s10 + $0x98] sm:$0xf]
  %v2170 = vld [vmem:[%s10 + $0x9c] sm:$0xf]
  %v2171 = vld [vmem:[%s10 + $0xa0] sm:$0xf]
  %v2172 = vld [vmem:[%s10 + $0xa4] sm:$0xf]
  %v2173 = vld [vmem:[%s10 + $0xa8] sm:$0xf]
  %v2174 = vld [vmem:[%s10 + $0xac] sm:$0xf]
  %v2175 = vld [vmem:[%s10 + $0xb0] sm:$0xf]
  %v2176 = vld [vmem:[%s10 + $0xb4] sm:$0xf]
  %v2177 = vld [vmem:[%s10 + $0xb8] sm:$0xf]
  %v2178 = vld [vmem:[%s10 + $0xbc] sm:$0xf]
  %v2179 = vld [vmem:[%s10 + $0xc0] sm:$0xf]
  %v2180 = vld [vmem:[%s10 + $0xc4] sm:$0xf]
  %v2181 = vld [vmem:[%s10 + $0xc8] sm:$0xf]
  %v2182 = vld [vmem:[%s10 + $0xcc] sm:$0xf]
  %v2183 = vld [vmem:[%s10 + $0xd0] sm:$0xf]
  %v2184 = vld [vmem:[%s10 + $0xd4] sm:$0xf]
  %v2185 = vld [vmem:[%s10 + $0xd8] sm:$0xf]
  %v2186 = vld [vmem:[%s10 + $0xdc] sm:$0xf]
  %v2187 = vld [vmem:[%s10 + $0xe0] sm:$0xf]
  %v2188 = vld [vmem:[%s10 + $0xe4] sm:$0xf]
  %v2189 = vld [vmem:[%s10 + $0xe8] sm:$0xf]
  %v2190 = vld [vmem:[%s10 + $0xec] sm:$0xf]
  %v2191 = vld [vmem:[%s10 + $0xf0] sm:$0xf]
  %v2192 = vld [vmem:[%s10 + $0xf4] sm:$0xf]
  %v2193 = vld [vmem:[%s10 + $0xf8] sm:$0xf]
  %v2194 = vld [vmem:[%s10 + $0xfc] sm:$0xf]
  %v2195 = vld [vmem:[%s11] sm:$0x1]
  %v2197 = vlaneseq
  %v2198 = vshrl.u32 %v2197, 7
  %v2199 = vsub.s32 0, %v2198
  %v2200 = vrot.slane %v2195, %v2199
  %v2266 = vunpack.c.l.b16 %v2131
  %v2267 = vunpack.c.l.b16 %v2132
  %v2268 = vunpack.c.l.b16 %v2133
  %v2269 = vunpack.c.l.b16 %v2134
  %v2270 = vunpack.c.l.b16 %v2135
  %v2271 = vunpack.c.l.b16 %v2136
  %v2272 = vunpack.c.l.b16 %v2137
  %v2273 = vunpack.c.l.b16 %v2138
  %v2274 = vunpack.c.l.b16 %v2139
  %v2275 = vunpack.c.l.b16 %v2140
  %v2276 = vunpack.c.l.b16 %v2141
  %v2277 = vunpack.c.l.b16 %v2142
  %v2278 = vunpack.c.l.b16 %v2143
  %v2279 = vunpack.c.l.b16 %v2144
  %v2280 = vunpack.c.l.b16 %v2145
  %v2281 = vunpack.c.l.b16 %v2146
  %v2282 = vunpack.c.l.b16 %v2147
  %v2283 = vunpack.c.l.b16 %v2148
  %v2284 = vunpack.c.l.b16 %v2149
  %v2285 = vunpack.c.l.b16 %v2150
  %v2286 = vunpack.c.l.b16 %v2151
  %v2287 = vunpack.c.l.b16 %v2152
  %v2288 = vunpack.c.l.b16 %v2153
  %v2289 = vunpack.c.l.b16 %v2154
  %v2290 = vunpack.c.l.b16 %v2155
  %v2291 = vunpack.c.l.b16 %v2156
  %v2292 = vunpack.c.l.b16 %v2157
  %v2293 = vunpack.c.l.b16 %v2158
  %v2294 = vunpack.c.l.b16 %v2159
  %v2295 = vunpack.c.l.b16 %v2160
  %v2296 = vunpack.c.l.b16 %v2161
  %v2297 = vunpack.c.l.b16 %v2162
  %v2298 = vunpack.c.l.b16 %v2163
  %v2299 = vunpack.c.l.b16 %v2164
  %v2300 = vunpack.c.l.b16 %v2165
  %v2301 = vunpack.c.l.b16 %v2166
  %v2302 = vunpack.c.l.b16 %v2167
  %v2303 = vunpack.c.l.b16 %v2168
  %v2304 = vunpack.c.l.b16 %v2169
  %v2305 = vunpack.c.l.b16 %v2170
  %v2306 = vunpack.c.l.b16 %v2171
  %v2307 = vunpack.c.l.b16 %v2172
  %v2308 = vunpack.c.l.b16 %v2173
  %v2309 = vunpack.c.l.b16 %v2174
  %v2310 = vunpack.c.l.b16 %v2175
  %v2311 = vunpack.c.l.b16 %v2176
  %v2312 = vunpack.c.l.b16 %v2177
  %v2313 = vunpack.c.l.b16 %v2178
  %v2314 = vunpack.c.l.b16 %v2179
  %v2315 = vunpack.c.l.b16 %v2180
  %v2316 = vunpack.c.l.b16 %v2181
  %v2317 = vunpack.c.l.b16 %v2182
  %v2318 = vunpack.c.l.b16 %v2183
  %v2319 = vunpack.c.l.b16 %v2184
  %v2320 = vunpack.c.l.b16 %v2185
  %v2321 = vunpack.c.l.b16 %v2186
  %v2322 = vunpack.c.l.b16 %v2187
  %v2323 = vunpack.c.l.b16 %v2188
  %v2324 = vunpack.c.l.b16 %v2189
  %v2325 = vunpack.c.l.b16 %v2190
  %v2326 = vunpack.c.l.b16 %v2191
  %v2327 = vunpack.c.l.b16 %v2192
  %v2328 = vunpack.c.l.b16 %v2193
  %v2329 = vunpack.c.l.b16 %v2194
  %v2330 = vpack.c.b16 %v2267, %v2266
  %v2331 = vpack.c.b16 %v2269, %v2268
  %v2332 = vpack.c.b16 %v2271, %v2270
  %v2333 = vpack.c.b16 %v2273, %v2272
  %v2334 = vpack.c.b16 %v2275, %v2274
  %v2335 = vpack.c.b16 %v2277, %v2276
  %v2336 = vpack.c.b16 %v2279, %v2278
  %v2337 = vpack.c.b16 %v2281, %v2280
  %v2338 = vpack.c.b16 %v2283, %v2282
  %v2339 = vpack.c.b16 %v2285, %v2284
  %v2340 = vpack.c.b16 %v2287, %v2286
  %v2341 = vpack.c.b16 %v2289, %v2288
  %v2342 = vpack.c.b16 %v2291, %v2290
  %v2343 = vpack.c.b16 %v2293, %v2292
  %v2344 = vpack.c.b16 %v2295, %v2294
  %v2345 = vpack.c.b16 %v2297, %v2296
  %v2346 = vpack.c.b16 %v2299, %v2298
  %v2347 = vpack.c.b16 %v2301, %v2300
  %v2348 = vpack.c.b16 %v2303, %v2302
  %v2349 = vpack.c.b16 %v2305, %v2304
  %v2350 = vpack.c.b16 %v2307, %v2306
  %v2351 = vpack.c.b16 %v2309, %v2308
  %v2352 = vpack.c.b16 %v2311, %v2310
  %v2353 = vpack.c.b16 %v2313, %v2312
  %v2354 = vpack.c.b16 %v2315, %v2314
  %v2355 = vpack.c.b16 %v2317, %v2316
  %v2356 = vpack.c.b16 %v2319, %v2318
  %v2357 = vpack.c.b16 %v2321, %v2320
  %v2358 = vpack.c.b16 %v2323, %v2322
  %v2359 = vpack.c.b16 %v2325, %v2324
  %v2360 = vpack.c.b16 %v2327, %v2326
  %v2361 = vpack.c.b16 %v2329, %v2328
  %2394 = vmatprep.subr.bf16.mxu0 0
  %2395 = vmatpush1.bf16.msra.mxu0 %v2337
  %2396 = vmatprep.subr.bf16.mxu0 0
  %2397 = vmatpush1.bf16.msra.mxu0 %v2336
  %2398 = vmatprep.subr.bf16.mxu0 0
  %2399 = vmatpush1.bf16.msra.mxu0 %v2335
  %2400 = vmatprep.subr.bf16.mxu0 0
  %2401 = vmatpush1.bf16.msra.mxu0 %v2334
  %2402 = vmatprep.subr.bf16.mxu0 0
  %2403 = vmatpush1.bf16.msra.mxu0 %v2333
  %2404 = vmatprep.subr.bf16.mxu0 0
  %2405 = vmatpush1.bf16.msra.mxu0 %v2332
  %2406 = vmatprep.subr.bf16.mxu0 0
  %2407 = vmatpush1.bf16.msra.mxu0 %v2331
  %2408 = vmatprep.subr.bf16.mxu0 0
  %2409 = vmatpush1.bf16.msra.mxu0 %v2330
  %2410 = vmatprep.subr.bf16.mxu0 0
  %2411 = vmatpush2.bf16.msra.mxu0 %v2345
  %2412 = vmatprep.subr.bf16.mxu0 0
  %2413 = vmatpush2.bf16.msra.mxu0 %v2344
  %2414 = vmatprep.subr.bf16.mxu0 0
  %2415 = vmatpush2.bf16.msra.mxu0 %v2343
  %2416 = vmatprep.subr.bf16.mxu0 0
  %2417 = vmatpush2.bf16.msra.mxu0 %v2342
  %2418 = vmatprep.subr.bf16.mxu0 0
  %2419 = vmatpush2.bf16.msra.mxu0 %v2341
  %2420 = vmatprep.subr.bf16.mxu0 0
  %2421 = vmatpush2.bf16.msra.mxu0 %v2340
  %2422 = vmatprep.subr.bf16.mxu0 0
  %2423 = vmatpush2.bf16.msra.mxu0 %v2339
  %2424 = vmatprep.subr.bf16.mxu0 0
  %2425 = vmatpush2.bf16.msra.mxu0 %v2338
  %2426 = vmatprep.mubr.bf16.mxu0 %v2116
  %2427 = vmatmul.mubr.bf16.gmra.mxu0 %v2115
  %v2428 = vpop.f32.mrf.mxu0
  %v2429 = vadd.f32 %v2200, %v2428
  %v2430 = vpop.f32.mrf.mxu0
  %v2431 = vpop.f32.mrf.mxu0
  %v2432 = vadd.f32 %v2200, %v2431
  %v2433 = vpop.f32.mrf.mxu0
  %2434 = vmatprep.mubr.bf16.mxu0 %v2120
  %2435 = vmatmul.mubr.bf16.gmra.mxu0 %v2119
  %v2436 = vpop.f32.mrf.mxu0
  %v2437 = vadd.f32 %v2200, %v2436
  %v2438 = vpop.f32.mrf.mxu0
  %v2439 = vpop.f32.mrf.mxu0
  %v2440 = vadd.f32 %v2200, %v2439
  %v2441 = vpop.f32.mrf.mxu0
  %2442 = vmatprep.mubr.bf16.mxu0 %v2124
  %2443 = vmatmul.mubr.bf16.gmra.mxu0 %v2123
  %v2444 = vpop.f32.mrf.mxu0
  %v2445 = vadd.f32 %v2200, %v2444
  %v2446 = vpop.f32.mrf.mxu0
  %v2447 = vpop.f32.mrf.mxu0
  %v2448 = vadd.f32 %v2200, %v2447
  %v2449 = vpop.f32.mrf.mxu0
  %2450 = vmatprep.mubr.bf16.mxu0 %v2128
  %2451 = vmatmul.mubr.bf16.gmra.mxu0 %v2127
  %v2452 = vpop.f32.mrf.mxu0
  %v2453 = vadd.f32 %v2200, %v2452
  %v2454 = vpop.f32.mrf.mxu0
  %v2455 = vpop.f32.mrf.mxu0
  %v2456 = vadd.f32 %v2200, %v2455
  %v2457 = vpop.f32.mrf.mxu0
  %2458 = vdwg.mxu0
  %2459 = vmatprep.subr.bf16.mxu0 0
  %2460 = vmatpush1.bf16.msra.mxu0 %v2353
  %2461 = vmatprep.subr.bf16.mxu0 0
  %2462 = vmatpush1.bf16.msra.mxu0 %v2352
  %2463 = vmatprep.subr.bf16.mxu0 0
  %2464 = vmatpush1.bf16.msra.mxu0 %v2351
  %2465 = vmatprep.subr.bf16.mxu0 0
  %2466 = vmatpush1.bf16.msra.mxu0 %v2350
  %2467 = vmatprep.subr.bf16.mxu0 0
  %2468 = vmatpush1.bf16.msra.mxu0 %v2349
  %2469 = vmatprep.subr.bf16.mxu0 0
  %2470 = vmatpush1.bf16.msra.mxu0 %v2348
  %2471 = vmatprep.subr.bf16.mxu0 0
  %2472 = vmatpush1.bf16.msra.mxu0 %v2347
  %2473 = vmatprep.subr.bf16.mxu0 0
  %2474 = vmatpush1.bf16.msra.mxu0 %v2346
  %2475 = vmatprep.subr.bf16.mxu0 0
  %2476 = vmatpush2.bf16.msra.mxu0 %v2361
  %2477 = vmatprep.subr.bf16.mxu0 0
  %2478 = vmatpush2.bf16.msra.mxu0 %v2360
  %2479 = vmatprep.subr.bf16.mxu0 0
  %2480 = vmatpush2.bf16.msra.mxu0 %v2359
  %2481 = vmatprep.subr.bf16.mxu0 0
  %2482 = vmatpush2.bf16.msra.mxu0 %v2358
  %2483 = vmatprep.subr.bf16.mxu0 0
  %2484 = vmatpush2.bf16.msra.mxu0 %v2357
  %2485 = vmatprep.subr.bf16.mxu0 0
  %2486 = vmatpush2.bf16.msra.mxu0 %v2356
  %2487 = vmatprep.subr.bf16.mxu0 0
  %2488 = vmatpush2.bf16.msra.mxu0 %v2355
  %2489 = vmatprep.subr.bf16.mxu0 0
  %2490 = vmatpush2.bf16.msra.mxu0 %v2354
  %2491 = vmatprep.mubr.bf16.mxu0 %v2118
  %2492 = vmatmul.mubr.bf16.gmra.mxu0 %v2117
  %v2493 = vpop.f32.mrf.mxu0
  %v2494 = vadd.f32 %v2429, %v2493
  %v2495 = vpop.f32.mrf.mxu0
  %v2496 = vpop.f32.mrf.mxu0
  %v2497 = vadd.f32 %v2432, %v2496
  %v2498 = vpop.f32.mrf.mxu0
  %2499 = vmatprep.mubr.bf16.mxu0 %v2122
  %2500 = vmatmul.mubr.bf16.gmra.mxu0 %v2121
  %v2501 = vpop.f32.mrf.mxu0
  %v2502 = vadd.f32 %v2437, %v2501
  %v2503 = vpop.f32.mrf.mxu0
  %v2504 = vpop.f32.mrf.mxu0
  %v2505 = vadd.f32 %v2440, %v2504
  %v2506 = vpop.f32.mrf.mxu0
  %2507 = vmatprep.mubr.bf16.mxu0 %v2126
  %2508 = vmatmul.mubr.bf16.gmra.mxu0 %v2125
  %v2509 = vpop.f32.mrf.mxu0
  %v2510 = vadd.f32 %v2445, %v2509
  %v2511 = vpop.f32.mrf.mxu0
  %v2512 = vpop.f32.mrf.mxu0
  %v2513 = vadd.f32 %v2448, %v2512
  %v2514 = vpop.f32.mrf.mxu0
  %2515 = vmatprep.mubr.bf16.mxu0 %v2130
  %2516 = vmatmul.mubr.bf16.gmra.mxu0 %v2129
  %v2517 = vpop.f32.mrf.mxu0
  %v2518 = vadd.f32 %v2453, %v2517
  %v2519 = vpop.f32.mrf.mxu0
  %v2520 = vpop.f32.mrf.mxu0
  %v2521 = vadd.f32 %v2456, %v2520
  %v2522 = vpop.f32.mrf.mxu0
  %2523 = vdwg.mxu0
  %v2524 = vmax.f32 %v2494, 0.0
  %v2525 = vmax.f32 %v2497, 0.0
  %v2526 = vmax.f32 %v2502, 0.0
  %v2527 = vmax.f32 %v2505, 0.0
  %v2528 = vmax.f32 %v2510, 0.0
  %v2529 = vmax.f32 %v2513, 0.0
  %v2530 = vmax.f32 %v2518, 0.0
  %v2531 = vmax.f32 %v2521, 0.0
  %2532 = vst [vmem:[%s12] sm:$0xff] %v2524
  %2533 = vst [vmem:[%s12 + $0x8] sm:$0xff] %v2525
  %2534 = vst [vmem:[%s12 + $0x10] sm:$0xff] %v2526
  %2535 = vst [vmem:[%s12 + $0x18] sm:$0xff] %v2527
  %2536 = vst [vmem:[%s12 + $0x20] sm:$0xff] %v2528
  %2537 = vst [vmem:[%s12 + $0x28] sm:$0xff] %v2529
  %2538 = vst [vmem:[%s12 + $0x30] sm:$0xff] %v2530
  %2539 = vst [vmem:[%s12 + $0x38] sm:$0xff] %v2531
  // Predicated region
  $region50: #{lstm_model_forward.1} parent=0 // pred_check
    _
  $region51: #{lstm_model_forward.1} parent=0 // pred_check_branch
    %2541 = sbr.rel (0) target = $region53
  $region52: #{lstm_model_forward.1} parent=0 // pred_region
    _
  $region53: #{lstm_model_forward.1} parent=0 // pred_fallthru
    _
  // Predicated region
  $region54: #{lstm_model_forward.1} parent=0 // pred_check
    _
  $region55: #{lstm_model_forward.1} parent=0 // pred_check_branch
    %2543 = sbr.rel (0) target = $region57
  $region56: #{lstm_model_forward.1} parent=0 // pred_region
    _
  $region57: #{lstm_model_forward.1} parent=0 // pred_fallthru
    _

</llo_original>
